<compile_context>
chip_gen: v7x
topology: tpu7x:2x2x1
jax: 0.10.0
libtpu: 0.0.40
codegen_flags: <defaults>
</compile_context>

<pallas_src>
import functools

import jax
import jax.numpy as jnp
import numpy as np
from jax import lax
from jax.experimental import pallas as pl
from jax.experimental.pallas import tpu as pltpu


# ----------------------------------------------------------------------------
# Fused kernel: 2-layer BiLSTM + attention + BN(eval) + MLP head
# ----------------------------------------------------------------------------
def _fused_kernel(len_ref, x_ref,
                  w0_ih, w0_hh, b0,
                  w1_ih, w1_hh, b1,
                  aw1, ab1, aw2, ab2,
                  bn_g, bn_b, bn_mu, bn_var,
                  f1w, f1b, f2w, f2b,
                  out_ref,
                  ig_ref, seq_ref,
                  *, T, B_pad, H):
    HH = 2 * H            # fused feature / state width: [fwd | bwd]
    G8 = 8 * H            # fused gate width: [i_f i_b | f_f f_b | g_f g_b | o_f o_b]

    # ---- hoisted lane-dense masks (computed once, full width) ---------------
    # Per-step validity: fwd half (lanes 0:H) uses t = s, bwd half uses t = T-1-s.
    t_iota = lax.broadcasted_iota(jnp.int32, (T, B_pad, HH), 0)
    lane = lax.broadcasted_iota(jnp.int32, (T, B_pad, HH), 2)
    t_eff = jnp.where(lane < H, t_iota, (T - 1) - t_iota)
    valid = t_eff < len_ref[...]                          # (T, B_pad, 2H) bool

    col = lax.broadcasted_iota(jnp.int32, (B_pad, G8), 1)
    fwd_cols = (col % HH) < H                             # fwd lanes of each gate block
    g_cols = (col >= 4 * H) & (col < 6 * H)               # tanh (g) gate block

    layers = ((w0_ih, w0_hh, b0), (w1_ih, w1_hh, b1))
    for li, (w_ih, w_hh, bb) in enumerate(layers):
        # Input-gate contributions for ALL timesteps and BOTH directions with one
        # MXU matmul: (T*Bp, Din) @ (Din, 8H), bias folded in.
        x_in = x_ref[...] if li == 0 else seq_ref[...]
        ig_ref[...] = jnp.dot(x_in, w_ih[...],
                              preferred_element_type=jnp.float32) + bb[...]

        w_hh_v = w_hh[...]                                # hoist: (2H, 8H)
        # TODO(synk): pltpu.matmul_push_rhs could keep w_hh_v MXU-resident across
        # the time loop (and core_map could split directions on v7x); skipped to
        # keep lowering simple at these tiny shapes.
        h = jnp.zeros((B_pad, HH), jnp.float32)           # [h_f | h_b]
        c = jnp.zeros((B_pad, HH), jnp.float32)           # [c_f | c_b]
        for s in range(T):                                # static T -> fully unrolled
            tf, tb = s, T - 1 - s
            # Fused gate inputs: fwd lanes from timestep tf, bwd lanes from tb.
            gi = jnp.where(fwd_cols,
                           ig_ref[tf * B_pad:(tf + 1) * B_pad, :],
                           ig_ref[tb * B_pad:(tb + 1) * B_pad, :])
            # One recurrent matmul for both directions (block-diag W_hh): (Bp,2H)@(2H,8H).
            gates = gi + jnp.dot(h, w_hh_v, preferred_element_type=jnp.float32)
            # Full-width nonlinearity + a single lane select (no per-gate slices).
            act = jnp.where(g_cols, jnp.tanh(gates), jax.nn.sigmoid(gates))
            i_g = act[:, 0 * HH:1 * HH]
            f_g = act[:, 1 * HH:2 * HH]
            g_g = act[:, 2 * HH:3 * HH]
            o_g = act[:, 3 * HH:4 * HH]
            c_new = f_g * c + i_g * g_g
            h_new = o_g * jnp.tanh(c_new)
            vmask = valid[s]                              # (B_pad, 2H) bool
            h = jnp.where(vmask, h_new, h)
            c = jnp.where(vmask, c_new, c)
            emit = jnp.where(vmask, h_new, 0.0)           # padded steps emit 0
            seq_ref[tf * B_pad:(tf + 1) * B_pad, 0:H] = emit[:, 0:H]
            seq_ref[tb * B_pad:(tb + 1) * B_pad, H:HH] = emit[:, H:HH]

    # ---------------- attention + BN(eval) + MLP head -------------------------
    flat = seq_ref[...]                                   # (T*Bp, 2H)
    e = jnp.tanh(jnp.dot(flat, aw1[...],
                         preferred_element_type=jnp.float32) + ab1[...])
    logits = jnp.sum(e * aw2[...], axis=-1, keepdims=True) + ab2[...]   # (T*Bp, 1)
    logits3 = logits.reshape(T, B_pad, 1)
    # softmax over the sequence dim (torch.nn.Softmax(dim=1)); deliberately NOT
    # masked for padded timesteps, matching the original PyTorch module.
    m = jnp.max(logits3, axis=0, keepdims=True)
    p = jnp.exp(logits3 - m)
    attn = p * pl.reciprocal(jnp.sum(p, axis=0, keepdims=True), approx=True)

    ctx = jnp.sum(attn * flat.reshape(T, B_pad, HH), axis=0)            # (Bp, 2H)

    # BatchNorm1d in eval mode.
    eps = 1e-5
    ctx = (ctx - bn_mu[...]) * lax.rsqrt(bn_var[...] + eps) * bn_g[...] + bn_b[...]

    h1 = jnp.maximum(jnp.dot(ctx, f1w[...],
                             preferred_element_type=jnp.float32) + f1b[...], 0.0)
    out_ref[...] = jnp.dot(h1, f2w[...],
                           preferred_element_type=jnp.float32) + f2b[...]


# ----------------------------------------------------------------------------
# Wrapper
# ----------------------------------------------------------------------------
def forward(params, x, lengths):
    B, T, D = x.shape
    H = params["att_w1"].shape[1]
    C = params["fc2_b"].shape[-1]
    B_pad = max(8, ((B + 7) // 8) * 8)        # fill the 8-sublane vreg rows

    # Pad batch, go time-major-flat (row = t*B_pad + b) so one matmul covers all
    # timesteps; this is the only wrapper-side layout op (tiny input).
    x_p = jnp.zeros((B_pad, T, D), jnp.float32).at[:B].set(x.astype(jnp.float32))
    x_flat = jnp.transpose(x_p, (1, 0, 2)).reshape(T * B_pad, D)
    len_p = jnp.zeros((B_pad,), jnp.int32).at[:B].set(lengths.astype(jnp.int32))
    len_in = len_p.reshape(1, B_pad, 1)

    kernel = functools.partial(_fused_kernel, T=T, B_pad=B_pad, H=H)
    out = pl.pallas_call(
        kernel,
        out_shape=jax.ShapeDtypeStruct((B_pad, C), jnp.float32),
        scratch_shapes=[
            pltpu.VMEM((T * B_pad, 8 * H), jnp.float32),   # fused input-gate buffer
            pltpu.VMEM((T * B_pad, 2 * H), jnp.float32),   # merged fwd|bwd seq outputs
        ],
    )(len_in, x_flat,
      params["k_l0_ih"], params["k_l0_hh"], params["k_l0_b"],
      params["k_l1_ih"], params["k_l1_hh"], params["k_l1_b"],
      params["att_w1"], params["att_b1"], params["att_w2"], params["att_b2"],
      params["bn_gamma"], params["bn_beta"], params["bn_mean"], params["bn_var"],
      params["fc1_w"], params["fc1_b"], params["fc2_w"], params["fc2_b"])
    return out[:B]


# ----------------------------------------------------------------------------
# Deterministic parameter init (synthetic; shapes follow the PyTorch module)
# ----------------------------------------------------------------------------
def init_params(key, input_size, hidden, num_classes):
    H = hidden
    keys = iter(jax.random.split(key, 40))

    def unif(k, shape, scale):
        return jax.random.uniform(k, shape, dtype=jnp.float32,
                                  minval=-scale, maxval=scale)

    def interleave_gates(a_f, a_b):
        # (*, 4H) fwd & bwd -> (*, 8H) packed [i_f i_b | f_f f_b | g_f g_b | o_f o_b]
        blocks = []
        for g in range(4):
            blocks.append(a_f[..., g * H:(g + 1) * H])
            blocks.append(a_b[..., g * H:(g + 1) * H])
        return jnp.concatenate(blocks, axis=-1)

    params = {}
    k_lstm = 1.0 / np.sqrt(H)
    d_in = input_size
    for l in range(2):
        per_dir = {}
        for dname in ("fwd", "bwd"):
            w_ih = unif(next(keys), (4 * H, d_in), k_lstm)
            w_hh = unif(next(keys), (4 * H, H), k_lstm)
            b_ih = unif(next(keys), (4 * H,), k_lstm)
            b_hh = unif(next(keys), (4 * H,), k_lstm)
            per_dir[dname] = (w_ih.T, w_hh.T, (b_ih + b_hh).reshape(1, 4 * H))
            params[f"lstm_l{l}_{dname}"] = per_dir[dname]     # for the reference
        wf_ih, wf_hh, bf = per_dir["fwd"]
        wb_ih, wb_hh, bb = per_dir["bwd"]
        # Kernel packing (host-side, free): interleaved gate order + block-diag W_hh.
        params[f"k_l{l}_ih"] = interleave_gates(wf_ih, wb_ih)            # (Din, 8H)
        params[f"k_l{l}_b"] = interleave_gates(bf, bb)                   # (1, 8H)
        w_hh_bd = jnp.zeros((2 * H, 8 * H), jnp.float32)
        for g in range(4):
            w_hh_bd = w_hh_bd.at[0:H, (2 * g) * H:(2 * g + 1) * H].set(
                wf_hh[:, g * H:(g + 1) * H])
            w_hh_bd = w_hh_bd.at[H:2 * H, (2 * g + 1) * H:(2 * g + 2) * H].set(
                wb_hh[:, g * H:(g + 1) * H])
        params[f"k_l{l}_hh"] = w_hh_bd                                    # (2H, 8H)
        d_in = 2 * H

    params["att_w1"] = unif(next(keys), (H, 2 * H), 1 / np.sqrt(2 * H)).T  # (2H, H)
    params["att_b1"] = unif(next(keys), (1, H), 1 / np.sqrt(2 * H))
    params["att_w2"] = unif(next(keys), (1, H), 1 / np.sqrt(H))            # (1, H)
    params["att_b2"] = unif(next(keys), (1, 1), 1 / np.sqrt(H))

    params["bn_gamma"] = jnp.ones((1, 2 * H), jnp.float32)
    params["bn_beta"] = jnp.zeros((1, 2 * H), jnp.float32)
    params["bn_mean"] = jnp.zeros((1, 2 * H), jnp.float32)
    params["bn_var"] = jnp.ones((1, 2 * H), jnp.float32)

    params["fc1_w"] = unif(next(keys), (H, 2 * H), 1 / np.sqrt(2 * H)).T   # (2H, H)
    params["fc1_b"] = unif(next(keys), (1, H), 1 / np.sqrt(2 * H))
    params["fc2_w"] = unif(next(keys), (num_classes, H), 1 / np.sqrt(H)).T  # (H, C)
    params["fc2_b"] = unif(next(keys), (1, num_classes), 1 / np.sqrt(H))
    return params


# ----------------------------------------------------------------------------
# Pure-JAX reference (same math) for a correctness check
# ----------------------------------------------------------------------------
def ref_lstm_dir(x_tm, w_ih_T, w_hh_T, b, lengths_b1, reverse):
    T, B, D = x_tm.shape
    H = w_hh_T.shape[0]
    ts = jnp.arange(T)
    if reverse:
        ts = ts[::-1]

    def step(carry, t):
        h, c = carry
        x_t = x_tm[t]
        gates = x_t @ w_ih_T + h @ w_hh_T + b
        i = jax.nn.sigmoid(gates[:, :H])
        f = jax.nn.sigmoid(gates[:, H:2 * H])
        g = jnp.tanh(gates[:, 2 * H:3 * H])
        o = jax.nn.sigmoid(gates[:, 3 * H:])
        c_new = f * c + i * g
        h_new = o * jnp.tanh(c_new)
        valid = (lengths_b1 > t).astype(jnp.float32)
        h2 = valid * h_new + (1 - valid) * h
        c2 = valid * c_new + (1 - valid) * c
        return (h2, c2), valid * h_new

    init = (jnp.zeros((B, H), jnp.float32), jnp.zeros((B, H), jnp.float32))
    _, outs = lax.scan(step, init, ts)
    if reverse:
        outs = outs[::-1]
    return outs


def ref_forward(params, x, lengths):
    B, T, D = x.shape
    lengths_b1 = lengths.astype(jnp.int32).reshape(B, 1)
    layer_in = jnp.transpose(x, (1, 0, 2))
    for l in range(2):
        hf = ref_lstm_dir(layer_in, *params[f"lstm_l{l}_fwd"], lengths_b1, False)
        hb = ref_lstm_dir(layer_in, *params[f"lstm_l{l}_bwd"], lengths_b1, True)
        layer_in = jnp.concatenate([hf, hb], axis=-1)
    o = jnp.transpose(layer_in, (1, 0, 2))                      # (B, T, 2H)
    e = jnp.tanh(jnp.einsum('btd,dh->bth', o, params["att_w1"]) + params["att_b1"])
    logits = jnp.sum(e * params["att_w2"][None, :, :], axis=-1, keepdims=True) \
        + params["att_b2"]
    attn = jax.nn.softmax(logits, axis=1)
    ctx = jnp.sum(attn * o, axis=1)
    ctx = (ctx - params["bn_mean"]) / jnp.sqrt(params["bn_var"] + 1e-5) \
        * params["bn_gamma"] + params["bn_beta"]
    h1 = jnp.maximum(ctx @ params["fc1_w"] + params["fc1_b"], 0.0)
    return h1 @ params["fc2_w"] + params["fc2_b"]


if __name__ == "__main__":
    B, T, D_IN, H, C = 2, 8, 32, 32, 2   # small shapes consistent with the module
    key = jax.random.PRNGKey(0)
    kx, kp = jax.random.split(key)
    x = jax.random.normal(kx, (B, T, D_IN), dtype=jnp.float32)
    lengths = jnp.array([8, 5], dtype=jnp.int32)   # max length == T (pad_packed)

    params = init_params(kp, D_IN, H, C)

    out = jax.block_until_ready(forward(params, x, lengths))
    ref = jax.block_until_ready(ref_forward(params, x, lengths))
    if not np.allclose(np.asarray(out), np.asarray(ref), atol=1e-2, rtol=1e-2):
        raise AssertionError(f"Pallas kernel mismatch:\n{out}\nvs\n{ref}")

    print("KERNEL_OK")
</pallas_src>

<mosaic_0001>
module attributes {stable_mosaic.version = 11 : i64} {
  func.func @_fused_kernel(%arg0: memref<1x8x1xi32, #tpu.memory_space<vmem>>, %arg1: memref<64x32xf32, #tpu.memory_space<vmem>>, %arg2: memref<32x256xf32, #tpu.memory_space<vmem>>, %arg3: memref<64x256xf32, #tpu.memory_space<vmem>>, %arg4: memref<1x256xf32, #tpu.memory_space<vmem>>, %arg5: memref<64x256xf32, #tpu.memory_space<vmem>>, %arg6: memref<64x256xf32, #tpu.memory_space<vmem>>, %arg7: memref<1x256xf32, #tpu.memory_space<vmem>>, %arg8: memref<64x32xf32, #tpu.memory_space<vmem>>, %arg9: memref<1x32xf32, #tpu.memory_space<vmem>>, %arg10: memref<1x32xf32, #tpu.memory_space<vmem>>, %arg11: memref<1x1xf32, #tpu.memory_space<vmem>>, %arg12: memref<1x64xf32, #tpu.memory_space<vmem>>, %arg13: memref<1x64xf32, #tpu.memory_space<vmem>>, %arg14: memref<1x64xf32, #tpu.memory_space<vmem>>, %arg15: memref<1x64xf32, #tpu.memory_space<vmem>>, %arg16: memref<64x32xf32, #tpu.memory_space<vmem>>, %arg17: memref<1x32xf32, #tpu.memory_space<vmem>>, %arg18: memref<32x2xf32, #tpu.memory_space<vmem>>, %arg19: memref<1x2xf32, #tpu.memory_space<vmem>>, %arg20: memref<8x2xf32, #tpu.memory_space<vmem>>, %arg21: memref<64x256xf32, #tpu.memory_space<vmem>>, %arg22: memref<64x64xf32, #tpu.memory_space<vmem>>) attributes {dimension_semantics = [], scalar_prefetch = 0 : i64, scratch_operands = 2 : i64, tpu.core_type = #tpu.core_type<tc>} {
    %0 = tpu.iota {dimensions = array<i32: 0>} : vector<8x8x64xi32>
    %1 = tpu.iota {dimensions = array<i32: 2>} : vector<8x8x64xi32>
    %c32_i32 = arith.constant 32 : i32
    %2 = vector.broadcast %c32_i32 : i32 to vector<8x8x64xi32>
    %3 = arith.cmpi slt, %1, %2 : vector<8x8x64xi32>
    %c7_i32 = arith.constant 7 : i32
    %4 = vector.broadcast %c7_i32 : i32 to vector<8x8x64xi32>
    %5 = arith.subi %4, %0 : vector<8x8x64xi32>
    %6 = arith.select %3, %0, %5 : vector<8x8x64xi1>, vector<8x8x64xi32>
    %c0 = arith.constant 0 : index
    %c0_0 = arith.constant 0 : index
    %c0_1 = arith.constant 0 : index
    %7 = vector.load %arg0[%c0, %c0_0, %c0_1] : memref<1x8x1xi32, #tpu.memory_space<vmem>>, vector<1x8x1xi32>
    %8 = vector.broadcast %7 : vector<1x8x1xi32> to vector<8x8x64xi32>
    %9 = arith.cmpi slt, %6, %8 : vector<8x8x64xi32>
    %10 = tpu.iota {dimensions = array<i32: 1>} : vector<8x256xi32>
    %c64_i32 = arith.constant 64 : i32
    %c0_i32 = arith.constant 0 : i32
    %11 = arith.cmpi eq, %c64_i32, %c0_i32 : i32
    %c1_i32 = arith.constant 1 : i32
    %12 = arith.select %11, %c1_i32, %c64_i32 : i32
    %13 = vector.broadcast %12 : i32 to vector<8x256xi32>
    %14 = arith.remsi %10, %13 : vector<8x256xi32>
    %c0_i32_2 = arith.constant 0 : i32
    %15 = vector.broadcast %c0_i32_2 : i32 to vector<8x256xi32>
    %16 = arith.cmpi ne, %14, %15 : vector<8x256xi32>
    %c0_i32_3 = arith.constant 0 : i32
    %17 = vector.broadcast %c0_i32_3 : i32 to vector<8x256xi32>
    %18 = arith.cmpi slt, %14, %17 : vector<8x256xi32>
    %c0_i32_4 = arith.constant 0 : i32
    %19 = arith.cmpi slt, %12, %c0_i32_4 : i32
    %20 = vector.broadcast %19 : i1 to vector<8x256xi1>
    %21 = vector.broadcast %20 : vector<8x256xi1> to vector<8x256xi1>
    %22 = arith.xori %18, %21 : vector<8x256xi1>
    %23 = arith.andi %22, %16 : vector<8x256xi1>
    %24 = vector.broadcast %12 : i32 to vector<8x256xi32>
    %25 = arith.addi %14, %24 : vector<8x256xi32>
    %26 = arith.select %23, %25, %14 : vector<8x256xi1>, vector<8x256xi32>
    %c32_i32_5 = arith.constant 32 : i32
    %27 = vector.broadcast %c32_i32_5 : i32 to vector<8x256xi32>
    %28 = arith.cmpi slt, %26, %27 : vector<8x256xi32>
    %c128_i32 = arith.constant 128 : i32
    %29 = vector.broadcast %c128_i32 : i32 to vector<8x256xi32>
    %30 = arith.cmpi sge, %10, %29 : vector<8x256xi32>
    %c192_i32 = arith.constant 192 : i32
    %31 = vector.broadcast %c192_i32 : i32 to vector<8x256xi32>
    %32 = arith.cmpi slt, %10, %31 : vector<8x256xi32>
    %33 = arith.andi %30, %32 : vector<8x256xi1>
    %c0_6 = arith.constant 0 : index
    %c0_7 = arith.constant 0 : index
    %34 = vector.load %arg1[%c0_6, %c0_7] : memref<64x32xf32, #tpu.memory_space<vmem>>, vector<64x32xf32>
    %c0_8 = arith.constant 0 : index
    %c0_9 = arith.constant 0 : index
    %35 = vector.load %arg2[%c0_8, %c0_9] : memref<32x256xf32, #tpu.memory_space<vmem>>, vector<32x256xf32>
    %cst = arith.constant dense<0.000000e+00> : vector<64x256xf32>
    %36 = tpu.matmul %34, %35, %cst {dimension_numbers = #tpu.dot_dimension_numbers<[1], [0], [0], [1], [0, 0, 1, 1], [], []>} : vector<64x32xf32>, vector<32x256xf32>, vector<64x256xf32> -> vector<64x256xf32>
    %c0_10 = arith.constant 0 : index
    %c0_11 = arith.constant 0 : index
    %37 = vector.load %arg4[%c0_10, %c0_11] : memref<1x256xf32, #tpu.memory_space<vmem>>, vector<1x256xf32>
    %38 = vector.broadcast %37 : vector<1x256xf32> to vector<64x256xf32>
    %39 = arith.addf %36, %38 : vector<64x256xf32>
    %c0_12 = arith.constant 0 : index
    %c0_13 = arith.constant 0 : index
    %40 = vector.load %arg21[%c0_12, %c0_13] : memref<64x256xf32, #tpu.memory_space<vmem>>, vector<64x256xf32>
    tpu.vector_store %arg21[%c0_12, %c0_13], %39 {strides = array<i32>} : memref<64x256xf32, #tpu.memory_space<vmem>>, vector<64x256xf32>,
    %c0_14 = arith.constant 0 : index
    %c0_15 = arith.constant 0 : index
    %41 = vector.load %arg3[%c0_14, %c0_15] : memref<64x256xf32, #tpu.memory_space<vmem>>, vector<64x256xf32>
    %cst_16 = arith.constant 0.000000e+00 : f32
    %42 = vector.broadcast %cst_16 : f32 to vector<8x64xf32>
    %cst_17 = arith.constant 0.000000e+00 : f32
    %43 = vector.broadcast %cst_17 : f32 to vector<8x64xf32>
    %c0_18 = arith.constant 0 : index
    %c0_19 = arith.constant 0 : index
    %44 = vector.load %arg21[%c0_18, %c0_19] : memref<64x256xf32, #tpu.memory_space<vmem>>, vector<8x256xf32>
    %c56 = arith.constant 56 : index
    %c0_20 = arith.constant 0 : index
    %45 = vector.load %arg21[%c56, %c0_20] : memref<64x256xf32, #tpu.memory_space<vmem>>, vector<8x256xf32>
    %46 = arith.select %28, %44, %45 : vector<8x256xi1>, vector<8x256xf32>
    %cst_21 = arith.constant dense<0.000000e+00> : vector<8x256xf32>
    %47 = tpu.matmul %42, %41, %cst_21 {dimension_numbers = #tpu.dot_dimension_numbers<[1], [0], [0], [1], [0, 0, 1, 1], [], []>} : vector<8x64xf32>, vector<64x256xf32>, vector<8x256xf32> -> vector<8x256xf32>
    %48 = arith.addf %46, %47 : vector<8x256xf32>
    %49 = math.tanh %48 : vector<8x256xf32>
    %50 = arith.negf %48 : vector<8x256xf32>
    %51 = math.exp %50 : vector<8x256xf32>
    %cst_22 = arith.constant 1.000000e+00 : f32
    %52 = vector.broadcast %cst_22 : f32 to vector<8x256xf32>
    %53 = arith.addf %52, %51 : vector<8x256xf32>
    %54 = arith.divf %52, %53 : vector<8x256xf32>
    %55 = arith.select %33, %49, %54 : vector<8x256xi1>, vector<8x256xf32>
    %56 = vector.extract_strided_slice %55 {offsets = [0, 0], sizes = [8, 64], strides = [1, 1]} : vector<8x256xf32> to vector<8x64xf32>
    %57 = vector.extract_strided_slice %55 {offsets = [0, 64], sizes = [8, 64], strides = [1, 1]} : vector<8x256xf32> to vector<8x64xf32>
    %58 = vector.extract_strided_slice %55 {offsets = [0, 128], sizes = [8, 64], strides = [1, 1]} : vector<8x256xf32> to vector<8x64xf32>
    %59 = vector.extract_strided_slice %55 {offsets = [0, 192], sizes = [8, 64], strides = [1, 1]} : vector<8x256xf32> to vector<8x64xf32>
    %60 = arith.mulf %57, %43 : vector<8x64xf32>
    %61 = arith.mulf %56, %58 : vector<8x64xf32>
    %62 = arith.addf %60, %61 : vector<8x64xf32>
    %63 = math.tanh %62 : vector<8x64xf32>
    %64 = arith.mulf %59, %63 : vector<8x64xf32>
    %65 = vector.extract_strided_slice %9 {offsets = [0, 0, 0], sizes = [1, 8, 64], strides = [1, 1, 1]} : vector<8x8x64xi1> to vector<1x8x64xi1>
    %66 = vector.shape_cast %65 : vector<1x8x64xi1> to vector<8x64xi1>
    %67 = arith.select %66, %64, %42 : vector<8x64xi1>, vector<8x64xf32>
    %68 = arith.select %66, %62, %43 : vector<8x64xi1>, vector<8x64xf32>
    %cst_23 = arith.constant 0.000000e+00 : f32
    %69 = vector.broadcast %cst_23 : f32 to vector<8x64xf32>
    %70 = arith.select %66, %64, %69 : vector<8x64xi1>, vector<8x64xf32>
    %71 = vector.extract_strided_slice %70 {offsets = [0, 0], sizes = [8, 32], strides = [1, 1]} : vector<8x64xf32> to vector<8x32xf32>
    %c0_24 = arith.constant 0 : index
    %c0_25 = arith.constant 0 : index
    %72 = vector.load %arg22[%c0_24, %c0_25] : memref<64x64xf32, #tpu.memory_space<vmem>>, vector<8x32xf32>
    tpu.vector_store %arg22[%c0_24, %c0_25], %71 {strides = array<i32>} : memref<64x64xf32, #tpu.memory_space<vmem>>, vector<8x32xf32>,
    %73 = vector.extract_strided_slice %70 {offsets = [0, 32], sizes = [8, 32], strides = [1, 1]} : vector<8x64xf32> to vector<8x32xf32>
    %c56_26 = arith.constant 56 : index
    %c32 = arith.constant 32 : index
    %74 = vector.load %arg22[%c56_26, %c32] : memref<64x64xf32, #tpu.memory_space<vmem>>, vector<8x32xf32>
    tpu.vector_store %arg22[%c56_26, %c32], %73 {strides = array<i32>} : memref<64x64xf32, #tpu.memory_space<vmem>>, vector<8x32xf32>,
    %c8 = arith.constant 8 : index
    %c0_27 = arith.constant 0 : index
    %75 = vector.load %arg21[%c8, %c0_27] : memref<64x256xf32, #tpu.memory_space<vmem>>, vector<8x256xf32>
    %c48 = arith.constant 48 : index
    %c0_28 = arith.constant 0 : index
    %76 = vector.load %arg21[%c48, %c0_28] : memref<64x256xf32, #tpu.memory_space<vmem>>, vector<8x256xf32>
    %77 = arith.select %28, %75, %76 : vector<8x256xi1>, vector<8x256xf32>
    %cst_29 = arith.constant dense<0.000000e+00> : vector<8x256xf32>
    %78 = tpu.matmul %67, %41, %cst_29 {dimension_numbers = #tpu.dot_dimension_numbers<[1], [0], [0], [1], [0, 0, 1, 1], [], []>} : vector<8x64xf32>, vector<64x256xf32>, vector<8x256xf32> -> vector<8x256xf32>
    %79 = arith.addf %77, %78 : vector<8x256xf32>
    %80 = math.tanh %79 : vector<8x256xf32>
    %81 = arith.negf %79 : vector<8x256xf32>
    %82 = math.exp %81 : vector<8x256xf32>
    %cst_30 = arith.constant 1.000000e+00 : f32
    %83 = vector.broadcast %cst_30 : f32 to vector<8x256xf32>
    %84 = arith.addf %83, %82 : vector<8x256xf32>
    %85 = arith.divf %83, %84 : vector<8x256xf32>
    %86 = arith.select %33, %80, %85 : vector<8x256xi1>, vector<8x256xf32>
    %87 = vector.extract_strided_slice %86 {offsets = [0, 0], sizes = [8, 64], strides = [1, 1]} : vector<8x256xf32> to vector<8x64xf32>
    %88 = vector.extract_strided_slice %86 {offsets = [0, 64], sizes = [8, 64], strides = [1, 1]} : vector<8x256xf32> to vector<8x64xf32>
    %89 = vector.extract_strided_slice %86 {offsets = [0, 128], sizes = [8, 64], strides = [1, 1]} : vector<8x256xf32> to vector<8x64xf32>
    %90 = vector.extract_strided_slice %86 {offsets = [0, 192], sizes = [8, 64], strides = [1, 1]} : vector<8x256xf32> to vector<8x64xf32>
    %91 = arith.mulf %88, %68 : vector<8x64xf32>
    %92 = arith.mulf %87, %89 : vector<8x64xf32>
    %93 = arith.addf %91, %92 : vector<8x64xf32>
    %94 = math.tanh %93 : vector<8x64xf32>
    %95 = arith.mulf %90, %94 : vector<8x64xf32>
    %96 = vector.extract_strided_slice %9 {offsets = [1, 0, 0], sizes = [1, 8, 64], strides = [1, 1, 1]} : vector<8x8x64xi1> to vector<1x8x64xi1>
    %97 = vector.shape_cast %96 : vector<1x8x64xi1> to vector<8x64xi1>
    %98 = arith.select %97, %95, %67 : vector<8x64xi1>, vector<8x64xf32>
    %99 = arith.select %97, %93, %68 : vector<8x64xi1>, vector<8x64xf32>
    %cst_31 = arith.constant 0.000000e+00 : f32
    %100 = vector.broadcast %cst_31 : f32 to vector<8x64xf32>
    %101 = arith.select %97, %95, %100 : vector<8x64xi1>, vector<8x64xf32>
    %102 = vector.extract_strided_slice %101 {offsets = [0, 0], sizes = [8, 32], strides = [1, 1]} : vector<8x64xf32> to vector<8x32xf32>
    %c8_32 = arith.constant 8 : index
    %c0_33 = arith.constant 0 : index
    %103 = vector.load %arg22[%c8_32, %c0_33] : memref<64x64xf32, #tpu.memory_space<vmem>>, vector<8x32xf32>
    tpu.vector_store %arg22[%c8_32, %c0_33], %102 {strides = array<i32>} : memref<64x64xf32, #tpu.memory_space<vmem>>, vector<8x32xf32>,
    %104 = vector.extract_strided_slice %101 {offsets = [0, 32], sizes = [8, 32], strides = [1, 1]} : vector<8x64xf32> to vector<8x32xf32>
    %c48_34 = arith.constant 48 : index
    %c32_35 = arith.constant 32 : index
    %105 = vector.load %arg22[%c48_34, %c32_35] : memref<64x64xf32, #tpu.memory_space<vmem>>, vector<8x32xf32>
    tpu.vector_store %arg22[%c48_34, %c32_35], %104 {strides = array<i32>} : memref<64x64xf32, #tpu.memory_space<vmem>>, vector<8x32xf32>,
    %c16 = arith.constant 16 : index
    %c0_36 = arith.constant 0 : index
    %106 = vector.load %arg21[%c16, %c0_36] : memref<64x256xf32, #tpu.memory_space<vmem>>, vector<8x256xf32>
    %c40 = arith.constant 40 : index
    %c0_37 = arith.constant 0 : index
    %107 = vector.load %arg21[%c40, %c0_37] : memref<64x256xf32, #tpu.memory_space<vmem>>, vector<8x256xf32>
    %108 = arith.select %28, %106, %107 : vector<8x256xi1>, vector<8x256xf32>
    %cst_38 = arith.constant dense<0.000000e+00> : vector<8x256xf32>
    %109 = tpu.matmul %98, %41, %cst_38 {dimension_numbers = #tpu.dot_dimension_numbers<[1], [0], [0], [1], [0, 0, 1, 1], [], []>} : vector<8x64xf32>, vector<64x256xf32>, vector<8x256xf32> -> vector<8x256xf32>
    %110 = arith.addf %108, %109 : vector<8x256xf32>
    %111 = math.tanh %110 : vector<8x256xf32>
    %112 = arith.negf %110 : vector<8x256xf32>
    %113 = math.exp %112 : vector<8x256xf32>
    %cst_39 = arith.constant 1.000000e+00 : f32
    %114 = vector.broadcast %cst_39 : f32 to vector<8x256xf32>
    %115 = arith.addf %114, %113 : vector<8x256xf32>
    %116 = arith.divf %114, %115 : vector<8x256xf32>
    %117 = arith.select %33, %111, %116 : vector<8x256xi1>, vector<8x256xf32>
    %118 = vector.extract_strided_slice %117 {offsets = [0, 0], sizes = [8, 64], strides = [1, 1]} : vector<8x256xf32> to vector<8x64xf32>
    %119 = vector.extract_strided_slice %117 {offsets = [0, 64], sizes = [8, 64], strides = [1, 1]} : vector<8x256xf32> to vector<8x64xf32>
    %120 = vector.extract_strided_slice %117 {offsets = [0, 128], sizes = [8, 64], strides = [1, 1]} : vector<8x256xf32> to vector<8x64xf32>
    %121 = vector.extract_strided_slice %117 {offsets = [0, 192], sizes = [8, 64], strides = [1, 1]} : vector<8x256xf32> to vector<8x64xf32>
    %122 = arith.mulf %119, %99 : vector<8x64xf32>
    %123 = arith.mulf %118, %120 : vector<8x64xf32>
    %124 = arith.addf %122, %123 : vector<8x64xf32>
    %125 = math.tanh %124 : vector<8x64xf32>
    %126 = arith.mulf %121, %125 : vector<8x64xf32>
    %127 = vector.extract_strided_slice %9 {offsets = [2, 0, 0], sizes = [1, 8, 64], strides = [1, 1, 1]} : vector<8x8x64xi1> to vector<1x8x64xi1>
    %128 = vector.shape_cast %127 : vector<1x8x64xi1> to vector<8x64xi1>
    %129 = arith.select %128, %126, %98 : vector<8x64xi1>, vector<8x64xf32>
    %130 = arith.select %128, %124, %99 : vector<8x64xi1>, vector<8x64xf32>
    %cst_40 = arith.constant 0.000000e+00 : f32
    %131 = vector.broadcast %cst_40 : f32 to vector<8x64xf32>
    %132 = arith.select %128, %126, %131 : vector<8x64xi1>, vector<8x64xf32>
    %133 = vector.extract_strided_slice %132 {offsets = [0, 0], sizes = [8, 32], strides = [1, 1]} : vector<8x64xf32> to vector<8x32xf32>
    %c16_41 = arith.constant 16 : index
    %c0_42 = arith.constant 0 : index
    %134 = vector.load %arg22[%c16_41, %c0_42] : memref<64x64xf32, #tpu.memory_space<vmem>>, vector<8x32xf32>
    tpu.vector_store %arg22[%c16_41, %c0_42], %133 {strides = array<i32>} : memref<64x64xf32, #tpu.memory_space<vmem>>, vector<8x32xf32>,
    %135 = vector.extract_strided_slice %132 {offsets = [0, 32], sizes = [8, 32], strides = [1, 1]} : vector<8x64xf32> to vector<8x32xf32>
    %c40_43 = arith.constant 40 : index
    %c32_44 = arith.constant 32 : index
    %136 = vector.load %arg22[%c40_43, %c32_44] : memref<64x64xf32, #tpu.memory_space<vmem>>, vector<8x32xf32>
    tpu.vector_store %arg22[%c40_43, %c32_44], %135 {strides = array<i32>} : memref<64x64xf32, #tpu.memory_space<vmem>>, vector<8x32xf32>,
    %c24 = arith.constant 24 : index
    %c0_45 = arith.constant 0 : index
    %137 = vector.load %arg21[%c24, %c0_45] : memref<64x256xf32, #tpu.memory_space<vmem>>, vector<8x256xf32>
    %c32_46 = arith.constant 32 : index
    %c0_47 = arith.constant 0 : index
    %138 = vector.load %arg21[%c32_46, %c0_47] : memref<64x256xf32, #tpu.memory_space<vmem>>, vector<8x256xf32>
    %139 = arith.select %28, %137, %138 : vector<8x256xi1>, vector<8x256xf32>
    %cst_48 = arith.constant dense<0.000000e+00> : vector<8x256xf32>
    %140 = tpu.matmul %129, %41, %cst_48 {dimension_numbers = #tpu.dot_dimension_numbers<[1], [0], [0], [1], [0, 0, 1, 1], [], []>} : vector<8x64xf32>, vector<64x256xf32>, vector<8x256xf32> -> vector<8x256xf32>
    %141 = arith.addf %139, %140 : vector<8x256xf32>
    %142 = math.tanh %141 : vector<8x256xf32>
    %143 = arith.negf %141 : vector<8x256xf32>
    %144 = math.exp %143 : vector<8x256xf32>
    %cst_49 = arith.constant 1.000000e+00 : f32
    %145 = vector.broadcast %cst_49 : f32 to vector<8x256xf32>
    %146 = arith.addf %145, %144 : vector<8x256xf32>
    %147 = arith.divf %145, %146 : vector<8x256xf32>
    %148 = arith.select %33, %142, %147 : vector<8x256xi1>, vector<8x256xf32>
    %149 = vector.extract_strided_slice %148 {offsets = [0, 0], sizes = [8, 64], strides = [1, 1]} : vector<8x256xf32> to vector<8x64xf32>
    %150 = vector.extract_strided_slice %148 {offsets = [0, 64], sizes = [8, 64], strides = [1, 1]} : vector<8x256xf32> to vector<8x64xf32>
    %151 = vector.extract_strided_slice %148 {offsets = [0, 128], sizes = [8, 64], strides = [1, 1]} : vector<8x256xf32> to vector<8x64xf32>
    %152 = vector.extract_strided_slice %148 {offsets = [0, 192], sizes = [8, 64], strides = [1, 1]} : vector<8x256xf32> to vector<8x64xf32>
    %153 = arith.mulf %150, %130 : vector<8x64xf32>
    %154 = arith.mulf %149, %151 : vector<8x64xf32>
    %155 = arith.addf %153, %154 : vector<8x64xf32>
    %156 = math.tanh %155 : vector<8x64xf32>
    %157 = arith.mulf %152, %156 : vector<8x64xf32>
    %158 = vector.extract_strided_slice %9 {offsets = [3, 0, 0], sizes = [1, 8, 64], strides = [1, 1, 1]} : vector<8x8x64xi1> to vector<1x8x64xi1>
    %159 = vector.shape_cast %158 : vector<1x8x64xi1> to vector<8x64xi1>
    %160 = arith.select %159, %157, %129 : vector<8x64xi1>, vector<8x64xf32>
    %161 = arith.select %159, %155, %130 : vector<8x64xi1>, vector<8x64xf32>
    %cst_50 = arith.constant 0.000000e+00 : f32
    %162 = vector.broadcast %cst_50 : f32 to vector<8x64xf32>
    %163 = arith.select %159, %157, %162 : vector<8x64xi1>, vector<8x64xf32>
    %164 = vector.extract_strided_slice %163 {offsets = [0, 0], sizes = [8, 32], strides = [1, 1]} : vector<8x64xf32> to vector<8x32xf32>
    %c24_51 = arith.constant 24 : index
    %c0_52 = arith.constant 0 : index
    %165 = vector.load %arg22[%c24_51, %c0_52] : memref<64x64xf32, #tpu.memory_space<vmem>>, vector<8x32xf32>
    tpu.vector_store %arg22[%c24_51, %c0_52], %164 {strides = array<i32>} : memref<64x64xf32, #tpu.memory_space<vmem>>, vector<8x32xf32>,
    %166 = vector.extract_strided_slice %163 {offsets = [0, 32], sizes = [8, 32], strides = [1, 1]} : vector<8x64xf32> to vector<8x32xf32>
    %c32_53 = arith.constant 32 : index
    %c32_54 = arith.constant 32 : index
    %167 = vector.load %arg22[%c32_53, %c32_54] : memref<64x64xf32, #tpu.memory_space<vmem>>, vector<8x32xf32>
    tpu.vector_store %arg22[%c32_53, %c32_54], %166 {strides = array<i32>} : memref<64x64xf32, #tpu.memory_space<vmem>>, vector<8x32xf32>,
    %c32_55 = arith.constant 32 : index
    %c0_56 = arith.constant 0 : index
    %168 = vector.load %arg21[%c32_55, %c0_56] : memref<64x256xf32, #tpu.memory_space<vmem>>, vector<8x256xf32>
    %c24_57 = arith.constant 24 : index
    %c0_58 = arith.constant 0 : index
    %169 = vector.load %arg21[%c24_57, %c0_58] : memref<64x256xf32, #tpu.memory_space<vmem>>, vector<8x256xf32>
    %170 = arith.select %28, %168, %169 : vector<8x256xi1>, vector<8x256xf32>
    %cst_59 = arith.constant dense<0.000000e+00> : vector<8x256xf32>
    %171 = tpu.matmul %160, %41, %cst_59 {dimension_numbers = #tpu.dot_dimension_numbers<[1], [0], [0], [1], [0, 0, 1, 1], [], []>} : vector<8x64xf32>, vector<64x256xf32>, vector<8x256xf32> -> vector<8x256xf32>
    %172 = arith.addf %170, %171 : vector<8x256xf32>
    %173 = math.tanh %172 : vector<8x256xf32>
    %174 = arith.negf %172 : vector<8x256xf32>
    %175 = math.exp %174 : vector<8x256xf32>
    %cst_60 = arith.constant 1.000000e+00 : f32
    %176 = vector.broadcast %cst_60 : f32 to vector<8x256xf32>
    %177 = arith.addf %176, %175 : vector<8x256xf32>
    %178 = arith.divf %176, %177 : vector<8x256xf32>
    %179 = arith.select %33, %173, %178 : vector<8x256xi1>, vector<8x256xf32>
    %180 = vector.extract_strided_slice %179 {offsets = [0, 0], sizes = [8, 64], strides = [1, 1]} : vector<8x256xf32> to vector<8x64xf32>
    %181 = vector.extract_strided_slice %179 {offsets = [0, 64], sizes = [8, 64], strides = [1, 1]} : vector<8x256xf32> to vector<8x64xf32>
    %182 = vector.extract_strided_slice %179 {offsets = [0, 128], sizes = [8, 64], strides = [1, 1]} : vector<8x256xf32> to vector<8x64xf32>
    %183 = vector.extract_strided_slice %179 {offsets = [0, 192], sizes = [8, 64], strides = [1, 1]} : vector<8x256xf32> to vector<8x64xf32>
    %184 = arith.mulf %181, %161 : vector<8x64xf32>
    %185 = arith.mulf %180, %182 : vector<8x64xf32>
    %186 = arith.addf %184, %185 : vector<8x64xf32>
    %187 = math.tanh %186 : vector<8x64xf32>
    %188 = arith.mulf %183, %187 : vector<8x64xf32>
    %189 = vector.extract_strided_slice %9 {offsets = [4, 0, 0], sizes = [1, 8, 64], strides = [1, 1, 1]} : vector<8x8x64xi1> to vector<1x8x64xi1>
    %190 = vector.shape_cast %189 : vector<1x8x64xi1> to vector<8x64xi1>
    %191 = arith.select %190, %188, %160 : vector<8x64xi1>, vector<8x64xf32>
    %192 = arith.select %190, %186, %161 : vector<8x64xi1>, vector<8x64xf32>
    %cst_61 = arith.constant 0.000000e+00 : f32
    %193 = vector.broadcast %cst_61 : f32 to vector<8x64xf32>
    %194 = arith.select %190, %188, %193 : vector<8x64xi1>, vector<8x64xf32>
    %195 = vector.extract_strided_slice %194 {offsets = [0, 0], sizes = [8, 32], strides = [1, 1]} : vector<8x64xf32> to vector<8x32xf32>
    %c32_62 = arith.constant 32 : index
    %c0_63 = arith.constant 0 : index
    %196 = vector.load %arg22[%c32_62, %c0_63] : memref<64x64xf32, #tpu.memory_space<vmem>>, vector<8x32xf32>
    tpu.vector_store %arg22[%c32_62, %c0_63], %195 {strides = array<i32>} : memref<64x64xf32, #tpu.memory_space<vmem>>, vector<8x32xf32>,
    %197 = vector.extract_strided_slice %194 {offsets = [0, 32], sizes = [8, 32], strides = [1, 1]} : vector<8x64xf32> to vector<8x32xf32>
    %c24_64 = arith.constant 24 : index
    %c32_65 = arith.constant 32 : index
    %198 = vector.load %arg22[%c24_64, %c32_65] : memref<64x64xf32, #tpu.memory_space<vmem>>, vector<8x32xf32>
    tpu.vector_store %arg22[%c24_64, %c32_65], %197 {strides = array<i32>} : memref<64x64xf32, #tpu.memory_space<vmem>>, vector<8x32xf32>,
    %c40_66 = arith.constant 40 : index
    %c0_67 = arith.constant 0 : index
    %199 = vector.load %arg21[%c40_66, %c0_67] : memref<64x256xf32, #tpu.memory_space<vmem>>, vector<8x256xf32>
    %c16_68 = arith.constant 16 : index
    %c0_69 = arith.constant 0 : index
    %200 = vector.load %arg21[%c16_68, %c0_69] : memref<64x256xf32, #tpu.memory_space<vmem>>, vector<8x256xf32>
    %201 = arith.select %28, %199, %200 : vector<8x256xi1>, vector<8x256xf32>
    %cst_70 = arith.constant dense<0.000000e+00> : vector<8x256xf32>
    %202 = tpu.matmul %191, %41, %cst_70 {dimension_numbers = #tpu.dot_dimension_numbers<[1], [0], [0], [1], [0, 0, 1, 1], [], []>} : vector<8x64xf32>, vector<64x256xf32>, vector<8x256xf32> -> vector<8x256xf32>
    %203 = arith.addf %201, %202 : vector<8x256xf32>
    %204 = math.tanh %203 : vector<8x256xf32>
    %205 = arith.negf %203 : vector<8x256xf32>
    %206 = math.exp %205 : vector<8x256xf32>
    %cst_71 = arith.constant 1.000000e+00 : f32
    %207 = vector.broadcast %cst_71 : f32 to vector<8x256xf32>
    %208 = arith.addf %207, %206 : vector<8x256xf32>
    %209 = arith.divf %207, %208 : vector<8x256xf32>
    %210 = arith.select %33, %204, %209 : vector<8x256xi1>, vector<8x256xf32>
    %211 = vector.extract_strided_slice %210 {offsets = [0, 0], sizes = [8, 64], strides = [1, 1]} : vector<8x256xf32> to vector<8x64xf32>
    %212 = vector.extract_strided_slice %210 {offsets = [0, 64], sizes = [8, 64], strides = [1, 1]} : vector<8x256xf32> to vector<8x64xf32>
    %213 = vector.extract_strided_slice %210 {offsets = [0, 128], sizes = [8, 64], strides = [1, 1]} : vector<8x256xf32> to vector<8x64xf32>
    %214 = vector.extract_strided_slice %210 {offsets = [0, 192], sizes = [8, 64], strides = [1, 1]} : vector<8x256xf32> to vector<8x64xf32>
    %215 = arith.mulf %212, %192 : vector<8x64xf32>
    %216 = arith.mulf %211, %213 : vector<8x64xf32>
    %217 = arith.addf %215, %216 : vector<8x64xf32>
    %218 = math.tanh %217 : vector<8x64xf32>
    %219 = arith.mulf %214, %218 : vector<8x64xf32>
    %220 = vector.extract_strided_slice %9 {offsets = [5, 0, 0], sizes = [1, 8, 64], strides = [1, 1, 1]} : vector<8x8x64xi1> to vector<1x8x64xi1>
    %221 = vector.shape_cast %220 : vector<1x8x64xi1> to vector<8x64xi1>
    %222 = arith.select %221, %219, %191 : vector<8x64xi1>, vector<8x64xf32>
    %223 = arith.select %221, %217, %192 : vector<8x64xi1>, vector<8x64xf32>
    %cst_72 = arith.constant 0.000000e+00 : f32
    %224 = vector.broadcast %cst_72 : f32 to vector<8x64xf32>
    %225 = arith.select %221, %219, %224 : vector<8x64xi1>, vector<8x64xf32>
    %226 = vector.extract_strided_slice %225 {offsets = [0, 0], sizes = [8, 32], strides = [1, 1]} : vector<8x64xf32> to vector<8x32xf32>
    %c40_73 = arith.constant 40 : index
    %c0_74 = arith.constant 0 : index
    %227 = vector.load %arg22[%c40_73, %c0_74] : memref<64x64xf32, #tpu.memory_space<vmem>>, vector<8x32xf32>
    tpu.vector_store %arg22[%c40_73, %c0_74], %226 {strides = array<i32>} : memref<64x64xf32, #tpu.memory_space<vmem>>, vector<8x32xf32>,
    %228 = vector.extract_strided_slice %225 {offsets = [0, 32], sizes = [8, 32], strides = [1, 1]} : vector<8x64xf32> to vector<8x32xf32>
    %c16_75 = arith.constant 16 : index
    %c32_76 = arith.constant 32 : index
    %229 = vector.load %arg22[%c16_75, %c32_76] : memref<64x64xf32, #tpu.memory_space<vmem>>, vector<8x32xf32>
    tpu.vector_store %arg22[%c16_75, %c32_76], %228 {strides = array<i32>} : memref<64x64xf32, #tpu.memory_space<vmem>>, vector<8x32xf32>,
    %c48_77 = arith.constant 48 : index
    %c0_78 = arith.constant 0 : index
    %230 = vector.load %arg21[%c48_77, %c0_78] : memref<64x256xf32, #tpu.memory_space<vmem>>, vector<8x256xf32>
    %c8_79 = arith.constant 8 : index
    %c0_80 = arith.constant 0 : index
    %231 = vector.load %arg21[%c8_79, %c0_80] : memref<64x256xf32, #tpu.memory_space<vmem>>, vector<8x256xf32>
    %232 = arith.select %28, %230, %231 : vector<8x256xi1>, vector<8x256xf32>
    %cst_81 = arith.constant dense<0.000000e+00> : vector<8x256xf32>
    %233 = tpu.matmul %222, %41, %cst_81 {dimension_numbers = #tpu.dot_dimension_numbers<[1], [0], [0], [1], [0, 0, 1, 1], [], []>} : vector<8x64xf32>, vector<64x256xf32>, vector<8x256xf32> -> vector<8x256xf32>
    %234 = arith.addf %232, %233 : vector<8x256xf32>
    %235 = math.tanh %234 : vector<8x256xf32>
    %236 = arith.negf %234 : vector<8x256xf32>
    %237 = math.exp %236 : vector<8x256xf32>
    %cst_82 = arith.constant 1.000000e+00 : f32
    %238 = vector.broadcast %cst_82 : f32 to vector<8x256xf32>
    %239 = arith.addf %238, %237 : vector<8x256xf32>
    %240 = arith.divf %238, %239 : vector<8x256xf32>
    %241 = arith.select %33, %235, %240 : vector<8x256xi1>, vector<8x256xf32>
    %242 = vector.extract_strided_slice %241 {offsets = [0, 0], sizes = [8, 64], strides = [1, 1]} : vector<8x256xf32> to vector<8x64xf32>
    %243 = vector.extract_strided_slice %241 {offsets = [0, 64], sizes = [8, 64], strides = [1, 1]} : vector<8x256xf32> to vector<8x64xf32>
    %244 = vector.extract_strided_slice %241 {offsets = [0, 128], sizes = [8, 64], strides = [1, 1]} : vector<8x256xf32> to vector<8x64xf32>
    %245 = vector.extract_strided_slice %241 {offsets = [0, 192], sizes = [8, 64], strides = [1, 1]} : vector<8x256xf32> to vector<8x64xf32>
    %246 = arith.mulf %243, %223 : vector<8x64xf32>
    %247 = arith.mulf %242, %244 : vector<8x64xf32>
    %248 = arith.addf %246, %247 : vector<8x64xf32>
    %249 = math.tanh %248 : vector<8x64xf32>
    %250 = arith.mulf %245, %249 : vector<8x64xf32>
    %251 = vector.extract_strided_slice %9 {offsets = [6, 0, 0], sizes = [1, 8, 64], strides = [1, 1, 1]} : vector<8x8x64xi1> to vector<1x8x64xi1>
    %252 = vector.shape_cast %251 : vector<1x8x64xi1> to vector<8x64xi1>
    %253 = arith.select %252, %250, %222 : vector<8x64xi1>, vector<8x64xf32>
    %254 = arith.select %252, %248, %223 : vector<8x64xi1>, vector<8x64xf32>
    %cst_83 = arith.constant 0.000000e+00 : f32
    %255 = vector.broadcast %cst_83 : f32 to vector<8x64xf32>
    %256 = arith.select %252, %250, %255 : vector<8x64xi1>, vector<8x64xf32>
    %257 = vector.extract_strided_slice %256 {offsets = [0, 0], sizes = [8, 32], strides = [1, 1]} : vector<8x64xf32> to vector<8x32xf32>
    %c48_84 = arith.constant 48 : index
    %c0_85 = arith.constant 0 : index
    %258 = vector.load %arg22[%c48_84, %c0_85] : memref<64x64xf32, #tpu.memory_space<vmem>>, vector<8x32xf32>
    tpu.vector_store %arg22[%c48_84, %c0_85], %257 {strides = array<i32>} : memref<64x64xf32, #tpu.memory_space<vmem>>, vector<8x32xf32>,
    %259 = vector.extract_strided_slice %256 {offsets = [0, 32], sizes = [8, 32], strides = [1, 1]} : vector<8x64xf32> to vector<8x32xf32>
    %c8_86 = arith.constant 8 : index
    %c32_87 = arith.constant 32 : index
    %260 = vector.load %arg22[%c8_86, %c32_87] : memref<64x64xf32, #tpu.memory_space<vmem>>, vector<8x32xf32>
    tpu.vector_store %arg22[%c8_86, %c32_87], %259 {strides = array<i32>} : memref<64x64xf32, #tpu.memory_space<vmem>>, vector<8x32xf32>,
    %c56_88 = arith.constant 56 : index
    %c0_89 = arith.constant 0 : index
    %261 = vector.load %arg21[%c56_88, %c0_89] : memref<64x256xf32, #tpu.memory_space<vmem>>, vector<8x256xf32>
    %c0_90 = arith.constant 0 : index
    %c0_91 = arith.constant 0 : index
    %262 = vector.load %arg21[%c0_90, %c0_91] : memref<64x256xf32, #tpu.memory_space<vmem>>, vector<8x256xf32>
    %263 = arith.select %28, %261, %262 : vector<8x256xi1>, vector<8x256xf32>
    %cst_92 = arith.constant dense<0.000000e+00> : vector<8x256xf32>
    %264 = tpu.matmul %253, %41, %cst_92 {dimension_numbers = #tpu.dot_dimension_numbers<[1], [0], [0], [1], [0, 0, 1, 1], [], []>} : vector<8x64xf32>, vector<64x256xf32>, vector<8x256xf32> -> vector<8x256xf32>
    %265 = arith.addf %263, %264 : vector<8x256xf32>
    %266 = math.tanh %265 : vector<8x256xf32>
    %267 = arith.negf %265 : vector<8x256xf32>
    %268 = math.exp %267 : vector<8x256xf32>
    %cst_93 = arith.constant 1.000000e+00 : f32
    %269 = vector.broadcast %cst_93 : f32 to vector<8x256xf32>
    %270 = arith.addf %269, %268 : vector<8x256xf32>
    %271 = arith.divf %269, %270 : vector<8x256xf32>
    %272 = arith.select %33, %266, %271 : vector<8x256xi1>, vector<8x256xf32>
    %273 = vector.extract_strided_slice %272 {offsets = [0, 0], sizes = [8, 64], strides = [1, 1]} : vector<8x256xf32> to vector<8x64xf32>
    %274 = vector.extract_strided_slice %272 {offsets = [0, 64], sizes = [8, 64], strides = [1, 1]} : vector<8x256xf32> to vector<8x64xf32>
    %275 = vector.extract_strided_slice %272 {offsets = [0, 128], sizes = [8, 64], strides = [1, 1]} : vector<8x256xf32> to vector<8x64xf32>
    %276 = vector.extract_strided_slice %272 {offsets = [0, 192], sizes = [8, 64], strides = [1, 1]} : vector<8x256xf32> to vector<8x64xf32>
    %277 = arith.mulf %274, %254 : vector<8x64xf32>
    %278 = arith.mulf %273, %275 : vector<8x64xf32>
    %279 = arith.addf %277, %278 : vector<8x64xf32>
    %280 = math.tanh %279 : vector<8x64xf32>
    %281 = arith.mulf %276, %280 : vector<8x64xf32>
    %282 = vector.extract_strided_slice %9 {offsets = [7, 0, 0], sizes = [1, 8, 64], strides = [1, 1, 1]} : vector<8x8x64xi1> to vector<1x8x64xi1>
    %283 = vector.shape_cast %282 : vector<1x8x64xi1> to vector<8x64xi1>
    %cst_94 = arith.constant 0.000000e+00 : f32
    %284 = vector.broadcast %cst_94 : f32 to vector<8x64xf32>
    %285 = arith.select %283, %281, %284 : vector<8x64xi1>, vector<8x64xf32>
    %286 = vector.extract_strided_slice %285 {offsets = [0, 0], sizes = [8, 32], strides = [1, 1]} : vector<8x64xf32> to vector<8x32xf32>
    %c56_95 = arith.constant 56 : index
    %c0_96 = arith.constant 0 : index
    %287 = vector.load %arg22[%c56_95, %c0_96] : memref<64x64xf32, #tpu.memory_space<vmem>>, vector<8x32xf32>
    tpu.vector_store %arg22[%c56_95, %c0_96], %286 {strides = array<i32>} : memref<64x64xf32, #tpu.memory_space<vmem>>, vector<8x32xf32>,
    %288 = vector.extract_strided_slice %285 {offsets = [0, 32], sizes = [8, 32], strides = [1, 1]} : vector<8x64xf32> to vector<8x32xf32>
    %c0_97 = arith.constant 0 : index
    %c32_98 = arith.constant 32 : index
    %289 = vector.load %arg22[%c0_97, %c32_98] : memref<64x64xf32, #tpu.memory_space<vmem>>, vector<8x32xf32>
    tpu.vector_store %arg22[%c0_97, %c32_98], %288 {strides = array<i32>} : memref<64x64xf32, #tpu.memory_space<vmem>>, vector<8x32xf32>,
    %c0_99 = arith.constant 0 : index
    %c0_100 = arith.constant 0 : index
    %290 = vector.load %arg22[%c0_99, %c0_100] : memref<64x64xf32, #tpu.memory_space<vmem>>, vector<64x64xf32>
    %c0_101 = arith.constant 0 : index
    %c0_102 = arith.constant 0 : index
    %291 = vector.load %arg5[%c0_101, %c0_102] : memref<64x256xf32, #tpu.memory_space<vmem>>, vector<64x256xf32>
    %cst_103 = arith.constant dense<0.000000e+00> : vector<64x256xf32>
    %292 = tpu.matmul %290, %291, %cst_103 {dimension_numbers = #tpu.dot_dimension_numbers<[1], [0], [0], [1], [0, 0, 1, 1], [], []>} : vector<64x64xf32>, vector<64x256xf32>, vector<64x256xf32> -> vector<64x256xf32>
    %c0_104 = arith.constant 0 : index
    %c0_105 = arith.constant 0 : index
    %293 = vector.load %arg7[%c0_104, %c0_105] : memref<1x256xf32, #tpu.memory_space<vmem>>, vector<1x256xf32>
    %294 = vector.broadcast %293 : vector<1x256xf32> to vector<64x256xf32>
    %295 = arith.addf %292, %294 : vector<64x256xf32>
    %c0_106 = arith.constant 0 : index
    %c0_107 = arith.constant 0 : index
    %296 = vector.load %arg21[%c0_106, %c0_107] : memref<64x256xf32, #tpu.memory_space<vmem>>, vector<64x256xf32>
    tpu.vector_store %arg21[%c0_106, %c0_107], %295 {strides = array<i32>} : memref<64x256xf32, #tpu.memory_space<vmem>>, vector<64x256xf32>,
    %c0_108 = arith.constant 0 : index
    %c0_109 = arith.constant 0 : index
    %297 = vector.load %arg6[%c0_108, %c0_109] : memref<64x256xf32, #tpu.memory_space<vmem>>, vector<64x256xf32>
    %cst_110 = arith.constant 0.000000e+00 : f32
    %298 = vector.broadcast %cst_110 : f32 to vector<8x64xf32>
    %cst_111 = arith.constant 0.000000e+00 : f32
    %299 = vector.broadcast %cst_111 : f32 to vector<8x64xf32>
    %c0_112 = arith.constant 0 : index
    %c0_113 = arith.constant 0 : index
    %300 = vector.load %arg21[%c0_112, %c0_113] : memref<64x256xf32, #tpu.memory_space<vmem>>, vector<8x256xf32>
    %c56_114 = arith.constant 56 : index
    %c0_115 = arith.constant 0 : index
    %301 = vector.load %arg21[%c56_114, %c0_115] : memref<64x256xf32, #tpu.memory_space<vmem>>, vector<8x256xf32>
    %302 = arith.select %28, %300, %301 : vector<8x256xi1>, vector<8x256xf32>
    %cst_116 = arith.constant dense<0.000000e+00> : vector<8x256xf32>
    %303 = tpu.matmul %298, %297, %cst_116 {dimension_numbers = #tpu.dot_dimension_numbers<[1], [0], [0], [1], [0, 0, 1, 1], [], []>} : vector<8x64xf32>, vector<64x256xf32>, vector<8x256xf32> -> vector<8x256xf32>
    %304 = arith.addf %302, %303 : vector<8x256xf32>
    %305 = math.tanh %304 : vector<8x256xf32>
    %306 = arith.negf %304 : vector<8x256xf32>
    %307 = math.exp %306 : vector<8x256xf32>
    %cst_117 = arith.constant 1.000000e+00 : f32
    %308 = vector.broadcast %cst_117 : f32 to vector<8x256xf32>
    %309 = arith.addf %308, %307 : vector<8x256xf32>
    %310 = arith.divf %308, %309 : vector<8x256xf32>
    %311 = arith.select %33, %305, %310 : vector<8x256xi1>, vector<8x256xf32>
    %312 = vector.extract_strided_slice %311 {offsets = [0, 0], sizes = [8, 64], strides = [1, 1]} : vector<8x256xf32> to vector<8x64xf32>
    %313 = vector.extract_strided_slice %311 {offsets = [0, 64], sizes = [8, 64], strides = [1, 1]} : vector<8x256xf32> to vector<8x64xf32>
    %314 = vector.extract_strided_slice %311 {offsets = [0, 128], sizes = [8, 64], strides = [1, 1]} : vector<8x256xf32> to vector<8x64xf32>
    %315 = vector.extract_strided_slice %311 {offsets = [0, 192], sizes = [8, 64], strides = [1, 1]} : vector<8x256xf32> to vector<8x64xf32>
    %316 = arith.mulf %313, %299 : vector<8x64xf32>
    %317 = arith.mulf %312, %314 : vector<8x64xf32>
    %318 = arith.addf %316, %317 : vector<8x64xf32>
    %319 = math.tanh %318 : vector<8x64xf32>
    %320 = arith.mulf %315, %319 : vector<8x64xf32>
    %321 = vector.extract_strided_slice %9 {offsets = [0, 0, 0], sizes = [1, 8, 64], strides = [1, 1, 1]} : vector<8x8x64xi1> to vector<1x8x64xi1>
    %322 = vector.shape_cast %321 : vector<1x8x64xi1> to vector<8x64xi1>
    %323 = arith.select %322, %320, %298 : vector<8x64xi1>, vector<8x64xf32>
    %324 = arith.select %322, %318, %299 : vector<8x64xi1>, vector<8x64xf32>
    %cst_118 = arith.constant 0.000000e+00 : f32
    %325 = vector.broadcast %cst_118 : f32 to vector<8x64xf32>
    %326 = arith.select %322, %320, %325 : vector<8x64xi1>, vector<8x64xf32>
    %327 = vector.extract_strided_slice %326 {offsets = [0, 0], sizes = [8, 32], strides = [1, 1]} : vector<8x64xf32> to vector<8x32xf32>
    %c0_119 = arith.constant 0 : index
    %c0_120 = arith.constant 0 : index
    %328 = vector.load %arg22[%c0_119, %c0_120] : memref<64x64xf32, #tpu.memory_space<vmem>>, vector<8x32xf32>
    tpu.vector_store %arg22[%c0_119, %c0_120], %327 {strides = array<i32>} : memref<64x64xf32, #tpu.memory_space<vmem>>, vector<8x32xf32>,
    %329 = vector.extract_strided_slice %326 {offsets = [0, 32], sizes = [8, 32], strides = [1, 1]} : vector<8x64xf32> to vector<8x32xf32>
    %c56_121 = arith.constant 56 : index
    %c32_122 = arith.constant 32 : index
    %330 = vector.load %arg22[%c56_121, %c32_122] : memref<64x64xf32, #tpu.memory_space<vmem>>, vector<8x32xf32>
    tpu.vector_store %arg22[%c56_121, %c32_122], %329 {strides = array<i32>} : memref<64x64xf32, #tpu.memory_space<vmem>>, vector<8x32xf32>,
    %c8_123 = arith.constant 8 : index
    %c0_124 = arith.constant 0 : index
    %331 = vector.load %arg21[%c8_123, %c0_124] : memref<64x256xf32, #tpu.memory_space<vmem>>, vector<8x256xf32>
    %c48_125 = arith.constant 48 : index
    %c0_126 = arith.constant 0 : index
    %332 = vector.load %arg21[%c48_125, %c0_126] : memref<64x256xf32, #tpu.memory_space<vmem>>, vector<8x256xf32>
    %333 = arith.select %28, %331, %332 : vector<8x256xi1>, vector<8x256xf32>
    %cst_127 = arith.constant dense<0.000000e+00> : vector<8x256xf32>
    %334 = tpu.matmul %323, %297, %cst_127 {dimension_numbers = #tpu.dot_dimension_numbers<[1], [0], [0], [1], [0, 0, 1, 1], [], []>} : vector<8x64xf32>, vector<64x256xf32>, vector<8x256xf32> -> vector<8x256xf32>
    %335 = arith.addf %333, %334 : vector<8x256xf32>
    %336 = math.tanh %335 : vector<8x256xf32>
    %337 = arith.negf %335 : vector<8x256xf32>
    %338 = math.exp %337 : vector<8x256xf32>
    %cst_128 = arith.constant 1.000000e+00 : f32
    %339 = vector.broadcast %cst_128 : f32 to vector<8x256xf32>
    %340 = arith.addf %339, %338 : vector<8x256xf32>
    %341 = arith.divf %339, %340 : vector<8x256xf32>
    %342 = arith.select %33, %336, %341 : vector<8x256xi1>, vector<8x256xf32>
    %343 = vector.extract_strided_slice %342 {offsets = [0, 0], sizes = [8, 64], strides = [1, 1]} : vector<8x256xf32> to vector<8x64xf32>
    %344 = vector.extract_strided_slice %342 {offsets = [0, 64], sizes = [8, 64], strides = [1, 1]} : vector<8x256xf32> to vector<8x64xf32>
    %345 = vector.extract_strided_slice %342 {offsets = [0, 128], sizes = [8, 64], strides = [1, 1]} : vector<8x256xf32> to vector<8x64xf32>
    %346 = vector.extract_strided_slice %342 {offsets = [0, 192], sizes = [8, 64], strides = [1, 1]} : vector<8x256xf32> to vector<8x64xf32>
    %347 = arith.mulf %344, %324 : vector<8x64xf32>
    %348 = arith.mulf %343, %345 : vector<8x64xf32>
    %349 = arith.addf %347, %348 : vector<8x64xf32>
    %350 = math.tanh %349 : vector<8x64xf32>
    %351 = arith.mulf %346, %350 : vector<8x64xf32>
    %352 = vector.extract_strided_slice %9 {offsets = [1, 0, 0], sizes = [1, 8, 64], strides = [1, 1, 1]} : vector<8x8x64xi1> to vector<1x8x64xi1>
    %353 = vector.shape_cast %352 : vector<1x8x64xi1> to vector<8x64xi1>
    %354 = arith.select %353, %351, %323 : vector<8x64xi1>, vector<8x64xf32>
    %355 = arith.select %353, %349, %324 : vector<8x64xi1>, vector<8x64xf32>
    %cst_129 = arith.constant 0.000000e+00 : f32
    %356 = vector.broadcast %cst_129 : f32 to vector<8x64xf32>
    %357 = arith.select %353, %351, %356 : vector<8x64xi1>, vector<8x64xf32>
    %358 = vector.extract_strided_slice %357 {offsets = [0, 0], sizes = [8, 32], strides = [1, 1]} : vector<8x64xf32> to vector<8x32xf32>
    %c8_130 = arith.constant 8 : index
    %c0_131 = arith.constant 0 : index
    %359 = vector.load %arg22[%c8_130, %c0_131] : memref<64x64xf32, #tpu.memory_space<vmem>>, vector<8x32xf32>
    tpu.vector_store %arg22[%c8_130, %c0_131], %358 {strides = array<i32>} : memref<64x64xf32, #tpu.memory_space<vmem>>, vector<8x32xf32>,
    %360 = vector.extract_strided_slice %357 {offsets = [0, 32], sizes = [8, 32], strides = [1, 1]} : vector<8x64xf32> to vector<8x32xf32>
    %c48_132 = arith.constant 48 : index
    %c32_133 = arith.constant 32 : index
    %361 = vector.load %arg22[%c48_132, %c32_133] : memref<64x64xf32, #tpu.memory_space<vmem>>, vector<8x32xf32>
    tpu.vector_store %arg22[%c48_132, %c32_133], %360 {strides = array<i32>} : memref<64x64xf32, #tpu.memory_space<vmem>>, vector<8x32xf32>,
    %c16_134 = arith.constant 16 : index
    %c0_135 = arith.constant 0 : index
    %362 = vector.load %arg21[%c16_134, %c0_135] : memref<64x256xf32, #tpu.memory_space<vmem>>, vector<8x256xf32>
    %c40_136 = arith.constant 40 : index
    %c0_137 = arith.constant 0 : index
    %363 = vector.load %arg21[%c40_136, %c0_137] : memref<64x256xf32, #tpu.memory_space<vmem>>, vector<8x256xf32>
    %364 = arith.select %28, %362, %363 : vector<8x256xi1>, vector<8x256xf32>
    %cst_138 = arith.constant dense<0.000000e+00> : vector<8x256xf32>
    %365 = tpu.matmul %354, %297, %cst_138 {dimension_numbers = #tpu.dot_dimension_numbers<[1], [0], [0], [1], [0, 0, 1, 1], [], []>} : vector<8x64xf32>, vector<64x256xf32>, vector<8x256xf32> -> vector<8x256xf32>
    %366 = arith.addf %364, %365 : vector<8x256xf32>
    %367 = math.tanh %366 : vector<8x256xf32>
    %368 = arith.negf %366 : vector<8x256xf32>
    %369 = math.exp %368 : vector<8x256xf32>
    %cst_139 = arith.constant 1.000000e+00 : f32
    %370 = vector.broadcast %cst_139 : f32 to vector<8x256xf32>
    %371 = arith.addf %370, %369 : vector<8x256xf32>
    %372 = arith.divf %370, %371 : vector<8x256xf32>
    %373 = arith.select %33, %367, %372 : vector<8x256xi1>, vector<8x256xf32>
    %374 = vector.extract_strided_slice %373 {offsets = [0, 0], sizes = [8, 64], strides = [1, 1]} : vector<8x256xf32> to vector<8x64xf32>
    %375 = vector.extract_strided_slice %373 {offsets = [0, 64], sizes = [8, 64], strides = [1, 1]} : vector<8x256xf32> to vector<8x64xf32>
    %376 = vector.extract_strided_slice %373 {offsets = [0, 128], sizes = [8, 64], strides = [1, 1]} : vector<8x256xf32> to vector<8x64xf32>
    %377 = vector.extract_strided_slice %373 {offsets = [0, 192], sizes = [8, 64], strides = [1, 1]} : vector<8x256xf32> to vector<8x64xf32>
    %378 = arith.mulf %375, %355 : vector<8x64xf32>
    %379 = arith.mulf %374, %376 : vector<8x64xf32>
    %380 = arith.addf %378, %379 : vector<8x64xf32>
    %381 = math.tanh %380 : vector<8x64xf32>
    %382 = arith.mulf %377, %381 : vector<8x64xf32>
    %383 = vector.extract_strided_slice %9 {offsets = [2, 0, 0], sizes = [1, 8, 64], strides = [1, 1, 1]} : vector<8x8x64xi1> to vector<1x8x64xi1>
    %384 = vector.shape_cast %383 : vector<1x8x64xi1> to vector<8x64xi1>
    %385 = arith.select %384, %382, %354 : vector<8x64xi1>, vector<8x64xf32>
    %386 = arith.select %384, %380, %355 : vector<8x64xi1>, vector<8x64xf32>
    %cst_140 = arith.constant 0.000000e+00 : f32
    %387 = vector.broadcast %cst_140 : f32 to vector<8x64xf32>
    %388 = arith.select %384, %382, %387 : vector<8x64xi1>, vector<8x64xf32>
    %389 = vector.extract_strided_slice %388 {offsets = [0, 0], sizes = [8, 32], strides = [1, 1]} : vector<8x64xf32> to vector<8x32xf32>
    %c16_141 = arith.constant 16 : index
    %c0_142 = arith.constant 0 : index
    %390 = vector.load %arg22[%c16_141, %c0_142] : memref<64x64xf32, #tpu.memory_space<vmem>>, vector<8x32xf32>
    tpu.vector_store %arg22[%c16_141, %c0_142], %389 {strides = array<i32>} : memref<64x64xf32, #tpu.memory_space<vmem>>, vector<8x32xf32>,
    %391 = vector.extract_strided_slice %388 {offsets = [0, 32], sizes = [8, 32], strides = [1, 1]} : vector<8x64xf32> to vector<8x32xf32>
    %c40_143 = arith.constant 40 : index
    %c32_144 = arith.constant 32 : index
    %392 = vector.load %arg22[%c40_143, %c32_144] : memref<64x64xf32, #tpu.memory_space<vmem>>, vector<8x32xf32>
    tpu.vector_store %arg22[%c40_143, %c32_144], %391 {strides = array<i32>} : memref<64x64xf32, #tpu.memory_space<vmem>>, vector<8x32xf32>,
    %c24_145 = arith.constant 24 : index
    %c0_146 = arith.constant 0 : index
    %393 = vector.load %arg21[%c24_145, %c0_146] : memref<64x256xf32, #tpu.memory_space<vmem>>, vector<8x256xf32>
    %c32_147 = arith.constant 32 : index
    %c0_148 = arith.constant 0 : index
    %394 = vector.load %arg21[%c32_147, %c0_148] : memref<64x256xf32, #tpu.memory_space<vmem>>, vector<8x256xf32>
    %395 = arith.select %28, %393, %394 : vector<8x256xi1>, vector<8x256xf32>
    %cst_149 = arith.constant dense<0.000000e+00> : vector<8x256xf32>
    %396 = tpu.matmul %385, %297, %cst_149 {dimension_numbers = #tpu.dot_dimension_numbers<[1], [0], [0], [1], [0, 0, 1, 1], [], []>} : vector<8x64xf32>, vector<64x256xf32>, vector<8x256xf32> -> vector<8x256xf32>
    %397 = arith.addf %395, %396 : vector<8x256xf32>
    %398 = math.tanh %397 : vector<8x256xf32>
    %399 = arith.negf %397 : vector<8x256xf32>
    %400 = math.exp %399 : vector<8x256xf32>
    %cst_150 = arith.constant 1.000000e+00 : f32
    %401 = vector.broadcast %cst_150 : f32 to vector<8x256xf32>
    %402 = arith.addf %401, %400 : vector<8x256xf32>
    %403 = arith.divf %401, %402 : vector<8x256xf32>
    %404 = arith.select %33, %398, %403 : vector<8x256xi1>, vector<8x256xf32>
    %405 = vector.extract_strided_slice %404 {offsets = [0, 0], sizes = [8, 64], strides = [1, 1]} : vector<8x256xf32> to vector<8x64xf32>
    %406 = vector.extract_strided_slice %404 {offsets = [0, 64], sizes = [8, 64], strides = [1, 1]} : vector<8x256xf32> to vector<8x64xf32>
    %407 = vector.extract_strided_slice %404 {offsets = [0, 128], sizes = [8, 64], strides = [1, 1]} : vector<8x256xf32> to vector<8x64xf32>
    %408 = vector.extract_strided_slice %404 {offsets = [0, 192], sizes = [8, 64], strides = [1, 1]} : vector<8x256xf32> to vector<8x64xf32>
    %409 = arith.mulf %406, %386 : vector<8x64xf32>
    %410 = arith.mulf %405, %407 : vector<8x64xf32>
    %411 = arith.addf %409, %410 : vector<8x64xf32>
    %412 = math.tanh %411 : vector<8x64xf32>
    %413 = arith.mulf %408, %412 : vector<8x64xf32>
    %414 = vector.extract_strided_slice %9 {offsets = [3, 0, 0], sizes = [1, 8, 64], strides = [1, 1, 1]} : vector<8x8x64xi1> to vector<1x8x64xi1>
    %415 = vector.shape_cast %414 : vector<1x8x64xi1> to vector<8x64xi1>
    %416 = arith.select %415, %413, %385 : vector<8x64xi1>, vector<8x64xf32>
    %417 = arith.select %415, %411, %386 : vector<8x64xi1>, vector<8x64xf32>
    %cst_151 = arith.constant 0.000000e+00 : f32
    %418 = vector.broadcast %cst_151 : f32 to vector<8x64xf32>
    %419 = arith.select %415, %413, %418 : vector<8x64xi1>, vector<8x64xf32>
    %420 = vector.extract_strided_slice %419 {offsets = [0, 0], sizes = [8, 32], strides = [1, 1]} : vector<8x64xf32> to vector<8x32xf32>
    %c24_152 = arith.constant 24 : index
    %c0_153 = arith.constant 0 : index
    %421 = vector.load %arg22[%c24_152, %c0_153] : memref<64x64xf32, #tpu.memory_space<vmem>>, vector<8x32xf32>
    tpu.vector_store %arg22[%c24_152, %c0_153], %420 {strides = array<i32>} : memref<64x64xf32, #tpu.memory_space<vmem>>, vector<8x32xf32>,
    %422 = vector.extract_strided_slice %419 {offsets = [0, 32], sizes = [8, 32], strides = [1, 1]} : vector<8x64xf32> to vector<8x32xf32>
    %c32_154 = arith.constant 32 : index
    %c32_155 = arith.constant 32 : index
    %423 = vector.load %arg22[%c32_154, %c32_155] : memref<64x64xf32, #tpu.memory_space<vmem>>, vector<8x32xf32>
    tpu.vector_store %arg22[%c32_154, %c32_155], %422 {strides = array<i32>} : memref<64x64xf32, #tpu.memory_space<vmem>>, vector<8x32xf32>,
    %c32_156 = arith.constant 32 : index
    %c0_157 = arith.constant 0 : index
    %424 = vector.load %arg21[%c32_156, %c0_157] : memref<64x256xf32, #tpu.memory_space<vmem>>, vector<8x256xf32>
    %c24_158 = arith.constant 24 : index
    %c0_159 = arith.constant 0 : index
    %425 = vector.load %arg21[%c24_158, %c0_159] : memref<64x256xf32, #tpu.memory_space<vmem>>, vector<8x256xf32>
    %426 = arith.select %28, %424, %425 : vector<8x256xi1>, vector<8x256xf32>
    %cst_160 = arith.constant dense<0.000000e+00> : vector<8x256xf32>
    %427 = tpu.matmul %416, %297, %cst_160 {dimension_numbers = #tpu.dot_dimension_numbers<[1], [0], [0], [1], [0, 0, 1, 1], [], []>} : vector<8x64xf32>, vector<64x256xf32>, vector<8x256xf32> -> vector<8x256xf32>
    %428 = arith.addf %426, %427 : vector<8x256xf32>
    %429 = math.tanh %428 : vector<8x256xf32>
    %430 = arith.negf %428 : vector<8x256xf32>
    %431 = math.exp %430 : vector<8x256xf32>
    %cst_161 = arith.constant 1.000000e+00 : f32
    %432 = vector.broadcast %cst_161 : f32 to vector<8x256xf32>
    %433 = arith.addf %432, %431 : vector<8x256xf32>
    %434 = arith.divf %432, %433 : vector<8x256xf32>
    %435 = arith.select %33, %429, %434 : vector<8x256xi1>, vector<8x256xf32>
    %436 = vector.extract_strided_slice %435 {offsets = [0, 0], sizes = [8, 64], strides = [1, 1]} : vector<8x256xf32> to vector<8x64xf32>
    %437 = vector.extract_strided_slice %435 {offsets = [0, 64], sizes = [8, 64], strides = [1, 1]} : vector<8x256xf32> to vector<8x64xf32>
    %438 = vector.extract_strided_slice %435 {offsets = [0, 128], sizes = [8, 64], strides = [1, 1]} : vector<8x256xf32> to vector<8x64xf32>
    %439 = vector.extract_strided_slice %435 {offsets = [0, 192], sizes = [8, 64], strides = [1, 1]} : vector<8x256xf32> to vector<8x64xf32>
    %440 = arith.mulf %437, %417 : vector<8x64xf32>
    %441 = arith.mulf %436, %438 : vector<8x64xf32>
    %442 = arith.addf %440, %441 : vector<8x64xf32>
    %443 = math.tanh %442 : vector<8x64xf32>
    %444 = arith.mulf %439, %443 : vector<8x64xf32>
    %445 = vector.extract_strided_slice %9 {offsets = [4, 0, 0], sizes = [1, 8, 64], strides = [1, 1, 1]} : vector<8x8x64xi1> to vector<1x8x64xi1>
    %446 = vector.shape_cast %445 : vector<1x8x64xi1> to vector<8x64xi1>
    %447 = arith.select %446, %444, %416 : vector<8x64xi1>, vector<8x64xf32>
    %448 = arith.select %446, %442, %417 : vector<8x64xi1>, vector<8x64xf32>
    %cst_162 = arith.constant 0.000000e+00 : f32
    %449 = vector.broadcast %cst_162 : f32 to vector<8x64xf32>
    %450 = arith.select %446, %444, %449 : vector<8x64xi1>, vector<8x64xf32>
    %451 = vector.extract_strided_slice %450 {offsets = [0, 0], sizes = [8, 32], strides = [1, 1]} : vector<8x64xf32> to vector<8x32xf32>
    %c32_163 = arith.constant 32 : index
    %c0_164 = arith.constant 0 : index
    %452 = vector.load %arg22[%c32_163, %c0_164] : memref<64x64xf32, #tpu.memory_space<vmem>>, vector<8x32xf32>
    tpu.vector_store %arg22[%c32_163, %c0_164], %451 {strides = array<i32>} : memref<64x64xf32, #tpu.memory_space<vmem>>, vector<8x32xf32>,
    %453 = vector.extract_strided_slice %450 {offsets = [0, 32], sizes = [8, 32], strides = [1, 1]} : vector<8x64xf32> to vector<8x32xf32>
    %c24_165 = arith.constant 24 : index
    %c32_166 = arith.constant 32 : index
    %454 = vector.load %arg22[%c24_165, %c32_166] : memref<64x64xf32, #tpu.memory_space<vmem>>, vector<8x32xf32>
    tpu.vector_store %arg22[%c24_165, %c32_166], %453 {strides = array<i32>} : memref<64x64xf32, #tpu.memory_space<vmem>>, vector<8x32xf32>,
    %c40_167 = arith.constant 40 : index
    %c0_168 = arith.constant 0 : index
    %455 = vector.load %arg21[%c40_167, %c0_168] : memref<64x256xf32, #tpu.memory_space<vmem>>, vector<8x256xf32>
    %c16_169 = arith.constant 16 : index
    %c0_170 = arith.constant 0 : index
    %456 = vector.load %arg21[%c16_169, %c0_170] : memref<64x256xf32, #tpu.memory_space<vmem>>, vector<8x256xf32>
    %457 = arith.select %28, %455, %456 : vector<8x256xi1>, vector<8x256xf32>
    %cst_171 = arith.constant dense<0.000000e+00> : vector<8x256xf32>
    %458 = tpu.matmul %447, %297, %cst_171 {dimension_numbers = #tpu.dot_dimension_numbers<[1], [0], [0], [1], [0, 0, 1, 1], [], []>} : vector<8x64xf32>, vector<64x256xf32>, vector<8x256xf32> -> vector<8x256xf32>
    %459 = arith.addf %457, %458 : vector<8x256xf32>
    %460 = math.tanh %459 : vector<8x256xf32>
    %461 = arith.negf %459 : vector<8x256xf32>
    %462 = math.exp %461 : vector<8x256xf32>
    %cst_172 = arith.constant 1.000000e+00 : f32
    %463 = vector.broadcast %cst_172 : f32 to vector<8x256xf32>
    %464 = arith.addf %463, %462 : vector<8x256xf32>
    %465 = arith.divf %463, %464 : vector<8x256xf32>
    %466 = arith.select %33, %460, %465 : vector<8x256xi1>, vector<8x256xf32>
    %467 = vector.extract_strided_slice %466 {offsets = [0, 0], sizes = [8, 64], strides = [1, 1]} : vector<8x256xf32> to vector<8x64xf32>
    %468 = vector.extract_strided_slice %466 {offsets = [0, 64], sizes = [8, 64], strides = [1, 1]} : vector<8x256xf32> to vector<8x64xf32>
    %469 = vector.extract_strided_slice %466 {offsets = [0, 128], sizes = [8, 64], strides = [1, 1]} : vector<8x256xf32> to vector<8x64xf32>
    %470 = vector.extract_strided_slice %466 {offsets = [0, 192], sizes = [8, 64], strides = [1, 1]} : vector<8x256xf32> to vector<8x64xf32>
    %471 = arith.mulf %468, %448 : vector<8x64xf32>
    %472 = arith.mulf %467, %469 : vector<8x64xf32>
    %473 = arith.addf %471, %472 : vector<8x64xf32>
    %474 = math.tanh %473 : vector<8x64xf32>
    %475 = arith.mulf %470, %474 : vector<8x64xf32>
    %476 = vector.extract_strided_slice %9 {offsets = [5, 0, 0], sizes = [1, 8, 64], strides = [1, 1, 1]} : vector<8x8x64xi1> to vector<1x8x64xi1>
    %477 = vector.shape_cast %476 : vector<1x8x64xi1> to vector<8x64xi1>
    %478 = arith.select %477, %475, %447 : vector<8x64xi1>, vector<8x64xf32>
    %479 = arith.select %477, %473, %448 : vector<8x64xi1>, vector<8x64xf32>
    %cst_173 = arith.constant 0.000000e+00 : f32
    %480 = vector.broadcast %cst_173 : f32 to vector<8x64xf32>
    %481 = arith.select %477, %475, %480 : vector<8x64xi1>, vector<8x64xf32>
    %482 = vector.extract_strided_slice %481 {offsets = [0, 0], sizes = [8, 32], strides = [1, 1]} : vector<8x64xf32> to vector<8x32xf32>
    %c40_174 = arith.constant 40 : index
    %c0_175 = arith.constant 0 : index
    %483 = vector.load %arg22[%c40_174, %c0_175] : memref<64x64xf32, #tpu.memory_space<vmem>>, vector<8x32xf32>
    tpu.vector_store %arg22[%c40_174, %c0_175], %482 {strides = array<i32>} : memref<64x64xf32, #tpu.memory_space<vmem>>, vector<8x32xf32>,
    %484 = vector.extract_strided_slice %481 {offsets = [0, 32], sizes = [8, 32], strides = [1, 1]} : vector<8x64xf32> to vector<8x32xf32>
    %c16_176 = arith.constant 16 : index
    %c32_177 = arith.constant 32 : index
    %485 = vector.load %arg22[%c16_176, %c32_177] : memref<64x64xf32, #tpu.memory_space<vmem>>, vector<8x32xf32>
    tpu.vector_store %arg22[%c16_176, %c32_177], %484 {strides = array<i32>} : memref<64x64xf32, #tpu.memory_space<vmem>>, vector<8x32xf32>,
    %c48_178 = arith.constant 48 : index
    %c0_179 = arith.constant 0 : index
    %486 = vector.load %arg21[%c48_178, %c0_179] : memref<64x256xf32, #tpu.memory_space<vmem>>, vector<8x256xf32>
    %c8_180 = arith.constant 8 : index
    %c0_181 = arith.constant 0 : index
    %487 = vector.load %arg21[%c8_180, %c0_181] : memref<64x256xf32, #tpu.memory_space<vmem>>, vector<8x256xf32>
    %488 = arith.select %28, %486, %487 : vector<8x256xi1>, vector<8x256xf32>
    %cst_182 = arith.constant dense<0.000000e+00> : vector<8x256xf32>
    %489 = tpu.matmul %478, %297, %cst_182 {dimension_numbers = #tpu.dot_dimension_numbers<[1], [0], [0], [1], [0, 0, 1, 1], [], []>} : vector<8x64xf32>, vector<64x256xf32>, vector<8x256xf32> -> vector<8x256xf32>
    %490 = arith.addf %488, %489 : vector<8x256xf32>
    %491 = math.tanh %490 : vector<8x256xf32>
    %492 = arith.negf %490 : vector<8x256xf32>
    %493 = math.exp %492 : vector<8x256xf32>
    %cst_183 = arith.constant 1.000000e+00 : f32
    %494 = vector.broadcast %cst_183 : f32 to vector<8x256xf32>
    %495 = arith.addf %494, %493 : vector<8x256xf32>
    %496 = arith.divf %494, %495 : vector<8x256xf32>
    %497 = arith.select %33, %491, %496 : vector<8x256xi1>, vector<8x256xf32>
    %498 = vector.extract_strided_slice %497 {offsets = [0, 0], sizes = [8, 64], strides = [1, 1]} : vector<8x256xf32> to vector<8x64xf32>
    %499 = vector.extract_strided_slice %497 {offsets = [0, 64], sizes = [8, 64], strides = [1, 1]} : vector<8x256xf32> to vector<8x64xf32>
    %500 = vector.extract_strided_slice %497 {offsets = [0, 128], sizes = [8, 64], strides = [1, 1]} : vector<8x256xf32> to vector<8x64xf32>
    %501 = vector.extract_strided_slice %497 {offsets = [0, 192], sizes = [8, 64], strides = [1, 1]} : vector<8x256xf32> to vector<8x64xf32>
    %502 = arith.mulf %499, %479 : vector<8x64xf32>
    %503 = arith.mulf %498, %500 : vector<8x64xf32>
    %504 = arith.addf %502, %503 : vector<8x64xf32>
    %505 = math.tanh %504 : vector<8x64xf32>
    %506 = arith.mulf %501, %505 : vector<8x64xf32>
    %507 = vector.extract_strided_slice %9 {offsets = [6, 0, 0], sizes = [1, 8, 64], strides = [1, 1, 1]} : vector<8x8x64xi1> to vector<1x8x64xi1>
    %508 = vector.shape_cast %507 : vector<1x8x64xi1> to vector<8x64xi1>
    %509 = arith.select %508, %506, %478 : vector<8x64xi1>, vector<8x64xf32>
    %510 = arith.select %508, %504, %479 : vector<8x64xi1>, vector<8x64xf32>
    %cst_184 = arith.constant 0.000000e+00 : f32
    %511 = vector.broadcast %cst_184 : f32 to vector<8x64xf32>
    %512 = arith.select %508, %506, %511 : vector<8x64xi1>, vector<8x64xf32>
    %513 = vector.extract_strided_slice %512 {offsets = [0, 0], sizes = [8, 32], strides = [1, 1]} : vector<8x64xf32> to vector<8x32xf32>
    %c48_185 = arith.constant 48 : index
    %c0_186 = arith.constant 0 : index
    %514 = vector.load %arg22[%c48_185, %c0_186] : memref<64x64xf32, #tpu.memory_space<vmem>>, vector<8x32xf32>
    tpu.vector_store %arg22[%c48_185, %c0_186], %513 {strides = array<i32>} : memref<64x64xf32, #tpu.memory_space<vmem>>, vector<8x32xf32>,
    %515 = vector.extract_strided_slice %512 {offsets = [0, 32], sizes = [8, 32], strides = [1, 1]} : vector<8x64xf32> to vector<8x32xf32>
    %c8_187 = arith.constant 8 : index
    %c32_188 = arith.constant 32 : index
    %516 = vector.load %arg22[%c8_187, %c32_188] : memref<64x64xf32, #tpu.memory_space<vmem>>, vector<8x32xf32>
    tpu.vector_store %arg22[%c8_187, %c32_188], %515 {strides = array<i32>} : memref<64x64xf32, #tpu.memory_space<vmem>>, vector<8x32xf32>,
    %c56_189 = arith.constant 56 : index
    %c0_190 = arith.constant 0 : index
    %517 = vector.load %arg21[%c56_189, %c0_190] : memref<64x256xf32, #tpu.memory_space<vmem>>, vector<8x256xf32>
    %c0_191 = arith.constant 0 : index
    %c0_192 = arith.constant 0 : index
    %518 = vector.load %arg21[%c0_191, %c0_192] : memref<64x256xf32, #tpu.memory_space<vmem>>, vector<8x256xf32>
    %519 = arith.select %28, %517, %518 : vector<8x256xi1>, vector<8x256xf32>
    %cst_193 = arith.constant dense<0.000000e+00> : vector<8x256xf32>
    %520 = tpu.matmul %509, %297, %cst_193 {dimension_numbers = #tpu.dot_dimension_numbers<[1], [0], [0], [1], [0, 0, 1, 1], [], []>} : vector<8x64xf32>, vector<64x256xf32>, vector<8x256xf32> -> vector<8x256xf32>
    %521 = arith.addf %519, %520 : vector<8x256xf32>
    %522 = math.tanh %521 : vector<8x256xf32>
    %523 = arith.negf %521 : vector<8x256xf32>
    %524 = math.exp %523 : vector<8x256xf32>
    %cst_194 = arith.constant 1.000000e+00 : f32
    %525 = vector.broadcast %cst_194 : f32 to vector<8x256xf32>
    %526 = arith.addf %525, %524 : vector<8x256xf32>
    %527 = arith.divf %525, %526 : vector<8x256xf32>
    %528 = arith.select %33, %522, %527 : vector<8x256xi1>, vector<8x256xf32>
    %529 = vector.extract_strided_slice %528 {offsets = [0, 0], sizes = [8, 64], strides = [1, 1]} : vector<8x256xf32> to vector<8x64xf32>
    %530 = vector.extract_strided_slice %528 {offsets = [0, 64], sizes = [8, 64], strides = [1, 1]} : vector<8x256xf32> to vector<8x64xf32>
    %531 = vector.extract_strided_slice %528 {offsets = [0, 128], sizes = [8, 64], strides = [1, 1]} : vector<8x256xf32> to vector<8x64xf32>
    %532 = vector.extract_strided_slice %528 {offsets = [0, 192], sizes = [8, 64], strides = [1, 1]} : vector<8x256xf32> to vector<8x64xf32>
    %533 = arith.mulf %530, %510 : vector<8x64xf32>
    %534 = arith.mulf %529, %531 : vector<8x64xf32>
    %535 = arith.addf %533, %534 : vector<8x64xf32>
    %536 = math.tanh %535 : vector<8x64xf32>
    %537 = arith.mulf %532, %536 : vector<8x64xf32>
    %538 = vector.extract_strided_slice %9 {offsets = [7, 0, 0], sizes = [1, 8, 64], strides = [1, 1, 1]} : vector<8x8x64xi1> to vector<1x8x64xi1>
    %539 = vector.shape_cast %538 : vector<1x8x64xi1> to vector<8x64xi1>
    %cst_195 = arith.constant 0.000000e+00 : f32
    %540 = vector.broadcast %cst_195 : f32 to vector<8x64xf32>
    %541 = arith.select %539, %537, %540 : vector<8x64xi1>, vector<8x64xf32>
    %542 = vector.extract_strided_slice %541 {offsets = [0, 0], sizes = [8, 32], strides = [1, 1]} : vector<8x64xf32> to vector<8x32xf32>
    %c56_196 = arith.constant 56 : index
    %c0_197 = arith.constant 0 : index
    %543 = vector.load %arg22[%c56_196, %c0_197] : memref<64x64xf32, #tpu.memory_space<vmem>>, vector<8x32xf32>
    tpu.vector_store %arg22[%c56_196, %c0_197], %542 {strides = array<i32>} : memref<64x64xf32, #tpu.memory_space<vmem>>, vector<8x32xf32>,
    %544 = vector.extract_strided_slice %541 {offsets = [0, 32], sizes = [8, 32], strides = [1, 1]} : vector<8x64xf32> to vector<8x32xf32>
    %c0_198 = arith.constant 0 : index
    %c32_199 = arith.constant 32 : index
    %545 = vector.load %arg22[%c0_198, %c32_199] : memref<64x64xf32, #tpu.memory_space<vmem>>, vector<8x32xf32>
    tpu.vector_store %arg22[%c0_198, %c32_199], %544 {strides = array<i32>} : memref<64x64xf32, #tpu.memory_space<vmem>>, vector<8x32xf32>,
    %c0_200 = arith.constant 0 : index
    %c0_201 = arith.constant 0 : index
    %546 = vector.load %arg22[%c0_200, %c0_201] : memref<64x64xf32, #tpu.memory_space<vmem>>, vector<64x64xf32>
    %c0_202 = arith.constant 0 : index
    %c0_203 = arith.constant 0 : index
    %547 = vector.load %arg8[%c0_202, %c0_203] : memref<64x32xf32, #tpu.memory_space<vmem>>, vector<64x32xf32>
    %cst_204 = arith.constant dense<0.000000e+00> : vector<64x32xf32>
    %548 = tpu.matmul %546, %547, %cst_204 {dimension_numbers = #tpu.dot_dimension_numbers<[1], [0], [0], [1], [0, 0, 1, 1], [], []>} : vector<64x64xf32>, vector<64x32xf32>, vector<64x32xf32> -> vector<64x32xf32>
    %c0_205 = arith.constant 0 : index
    %c0_206 = arith.constant 0 : index
    %549 = vector.load %arg9[%c0_205, %c0_206] : memref<1x32xf32, #tpu.memory_space<vmem>>, vector<1x32xf32>
    %550 = vector.broadcast %549 : vector<1x32xf32> to vector<64x32xf32>
    %551 = arith.addf %548, %550 : vector<64x32xf32>
    %552 = math.tanh %551 : vector<64x32xf32>
    %c0_207 = arith.constant 0 : index
    %c0_208 = arith.constant 0 : index
    %553 = vector.load %arg10[%c0_207, %c0_208] : memref<1x32xf32, #tpu.memory_space<vmem>>, vector<1x32xf32>
    %554 = vector.broadcast %553 : vector<1x32xf32> to vector<64x32xf32>
    %555 = arith.mulf %552, %554 : vector<64x32xf32>
    %cst_209 = arith.constant dense<0.000000e+00> : vector<64xf32>
    %556 = vector.multi_reduction <add>, %555, %cst_209 [1] : vector<64x32xf32> to vector<64xf32>
    %557 = vector.shape_cast %556 : vector<64xf32> to vector<64x1xf32>
    %c0_210 = arith.constant 0 : index
    %c0_211 = arith.constant 0 : index
    %558 = vector.load %arg11[%c0_210, %c0_211] : memref<1x1xf32, #tpu.memory_space<vmem>>, vector<1x1xf32>
    %559 = vector.broadcast %558 : vector<1x1xf32> to vector<64x1xf32>
    %560 = arith.addf %557, %559 : vector<64x1xf32>
    %561 = vector.shape_cast %560 : vector<64x1xf32> to vector<8x8x1xf32>
    %cst_212 = arith.constant dense<0xFF800000> : vector<8x1xf32>
    %562 = vector.multi_reduction <maximumf>, %561, %cst_212 [0] : vector<8x8x1xf32> to vector<8x1xf32>
    %563 = vector.shape_cast %562 : vector<8x1xf32> to vector<1x8x1xf32>
    %564 = vector.broadcast %563 : vector<1x8x1xf32> to vector<8x8x1xf32>
    %565 = arith.subf %561, %564 : vector<8x8x1xf32>
    %566 = math.exp %565 : vector<8x8x1xf32>
    %cst_213 = arith.constant dense<0.000000e+00> : vector<8x1xf32>
    %567 = vector.multi_reduction <add>, %566, %cst_213 [0] : vector<8x8x1xf32> to vector<8x1xf32>
    %568 = vector.shape_cast %567 : vector<8x1xf32> to vector<1x8x1xf32>
    %569 = tpu.reciprocal %568 {approx = true} : vector<1x8x1xf32> -> vector<1x8x1xf32>
    %570 = vector.broadcast %569 : vector<1x8x1xf32> to vector<8x8x1xf32>
    %571 = arith.mulf %566, %570 : vector<8x8x1xf32>
    %572 = vector.shape_cast %546 : vector<64x64xf32> to vector<8x8x64xf32>
    %573 = vector.broadcast %571 : vector<8x8x1xf32> to vector<8x8x64xf32>
    %574 = arith.mulf %573, %572 : vector<8x8x64xf32>
    %cst_214 = arith.constant dense<0.000000e+00> : vector<8x64xf32>
    %575 = vector.multi_reduction <add>, %574, %cst_214 [0] : vector<8x8x64xf32> to vector<8x64xf32>
    %c0_215 = arith.constant 0 : index
    %c0_216 = arith.constant 0 : index
    %576 = vector.load %arg14[%c0_215, %c0_216] : memref<1x64xf32, #tpu.memory_space<vmem>>, vector<1x64xf32>
    %577 = vector.broadcast %576 : vector<1x64xf32> to vector<8x64xf32>
    %578 = arith.subf %575, %577 : vector<8x64xf32>
    %c0_217 = arith.constant 0 : index
    %c0_218 = arith.constant 0 : index
    %579 = vector.load %arg15[%c0_217, %c0_218] : memref<1x64xf32, #tpu.memory_space<vmem>>, vector<1x64xf32>
    %cst_219 = arith.constant 9.99999974E-6 : f32
    %580 = vector.broadcast %cst_219 : f32 to vector<1x64xf32>
    %581 = arith.addf %579, %580 : vector<1x64xf32>
    %582 = math.rsqrt %581 : vector<1x64xf32>
    %583 = vector.broadcast %582 : vector<1x64xf32> to vector<8x64xf32>
    %584 = arith.mulf %578, %583 : vector<8x64xf32>
    %c0_220 = arith.constant 0 : index
    %c0_221 = arith.constant 0 : index
    %585 = vector.load %arg12[%c0_220, %c0_221] : memref<1x64xf32, #tpu.memory_space<vmem>>, vector<1x64xf32>
    %586 = vector.broadcast %585 : vector<1x64xf32> to vector<8x64xf32>
    %587 = arith.mulf %584, %586 : vector<8x64xf32>
    %c0_222 = arith.constant 0 : index
    %c0_223 = arith.constant 0 : index
    %588 = vector.load %arg13[%c0_222, %c0_223] : memref<1x64xf32, #tpu.memory_space<vmem>>, vector<1x64xf32>
    %589 = vector.broadcast %588 : vector<1x64xf32> to vector<8x64xf32>
    %590 = arith.addf %587, %589 : vector<8x64xf32>
    %c0_224 = arith.constant 0 : index
    %c0_225 = arith.constant 0 : index
    %591 = vector.load %arg16[%c0_224, %c0_225] : memref<64x32xf32, #tpu.memory_space<vmem>>, vector<64x32xf32>
    %cst_226 = arith.constant dense<0.000000e+00> : vector<8x32xf32>
    %592 = tpu.matmul %590, %591, %cst_226 {dimension_numbers = #tpu.dot_dimension_numbers<[1], [0], [0], [1], [0, 0, 1, 1], [], []>} : vector<8x64xf32>, vector<64x32xf32>, vector<8x32xf32> -> vector<8x32xf32>
    %c0_227 = arith.constant 0 : index
    %c0_228 = arith.constant 0 : index
    %593 = vector.load %arg17[%c0_227, %c0_228] : memref<1x32xf32, #tpu.memory_space<vmem>>, vector<1x32xf32>
    %594 = vector.broadcast %593 : vector<1x32xf32> to vector<8x32xf32>
    %595 = arith.addf %592, %594 : vector<8x32xf32>
    %cst_229 = arith.constant 0.000000e+00 : f32
    %596 = vector.broadcast %cst_229 : f32 to vector<8x32xf32>
    %597 = arith.maximumf %595, %596 : vector<8x32xf32>
    %c0_230 = arith.constant 0 : index
    %c0_231 = arith.constant 0 : index
    %598 = vector.load %arg18[%c0_230, %c0_231] : memref<32x2xf32, #tpu.memory_space<vmem>>, vector<32x2xf32>
    %cst_232 = arith.constant dense<0.000000e+00> : vector<8x2xf32>
    %599 = tpu.matmul %597, %598, %cst_232 {dimension_numbers = #tpu.dot_dimension_numbers<[1], [0], [0], [1], [0, 0, 1, 1], [], []>} : vector<8x32xf32>, vector<32x2xf32>, vector<8x2xf32> -> vector<8x2xf32>
    %c0_233 = arith.constant 0 : index
    %c0_234 = arith.constant 0 : index
    %600 = vector.load %arg19[%c0_233, %c0_234] : memref<1x2xf32, #tpu.memory_space<vmem>>, vector<1x2xf32>
    %601 = vector.broadcast %600 : vector<1x2xf32> to vector<8x2xf32>
    %602 = arith.addf %599, %601 : vector<8x2xf32>
    %c0_235 = arith.constant 0 : index
    %c0_236 = arith.constant 0 : index
    %603 = vector.load %arg20[%c0_235, %c0_236] : memref<8x2xf32, #tpu.memory_space<vmem>>, vector<8x2xf32>
    tpu.vector_store %arg20[%c0_235, %c0_236], %602 {strides = array<i32>} : memref<8x2xf32, #tpu.memory_space<vmem>>, vector<8x2xf32>,
    return
  }
}

</mosaic_0001>

<llo_original>
// kernel: tpu_custom_call.1
$region0: #{tpu_custom_call.1}
  #allocation0 [shape = 'u32[]', space=smem, size = 0x4, offset = 0x4, fixed_abs, tag = 'smem constant byte address 0x4 - core index']
  #allocation1 [shape = 'u32[144,128]{1,0:T(1,128)}', space=vmem, size = 0x12000, scoped, tag = 'internal scratch']
  #allocation2 [shape = 'f32[64,256]{1,0:T(8,128)}', space=vmem, size = 0x10000, scoped, tag = 'scratch operand']
  #allocation3 [shape = 'f32[64,64]{1,0:T(8,128)}', space=vmem, size = 0x8000, scoped, tag = 'scratch operand']
  #allocation4 [shape = 'f32[1,1]{1,0:T(1,128)S(1)}', space=vmem, size = 0x200, scoped, tag = 'scoped memory for tpu_custom_call.1']
  %s0 = inlined_call_operand.vmem [shape: s32[1,8,1], index: 0, kind: input, shape index: {}]
  %s1 = inlined_call_operand.vmem [shape: f32[64,32], index: 1, kind: input, shape index: {}]
  %s2 = inlined_call_operand.vmem [shape: f32[32,256], index: 2, kind: input, shape index: {}]
  %s3 = inlined_call_operand.vmem [shape: f32[64,256], index: 3, kind: input, shape index: {}]
  %s4 = inlined_call_operand.hbm [shape: f32[1,256], index: 4, kind: input, shape index: {}]
  %s5 = inlined_call_operand.vmem [shape: f32[64,256], index: 5, kind: input, shape index: {}]
  %s6 = inlined_call_operand.hbm [shape: f32[64,256], index: 6, kind: input, shape index: {}]
  %s7 = inlined_call_operand.vmem [shape: f32[1,256], index: 7, kind: input, shape index: {}]
  %s8 = inlined_call_operand.vmem [shape: f32[64,32], index: 8, kind: input, shape index: {}]
  %s9 = inlined_call_operand.vmem [shape: f32[1,32], index: 9, kind: input, shape index: {}]
  %s10 = inlined_call_operand.hbm [shape: f32[1,32], index: 10, kind: input, shape index: {}]
  %s11 = inlined_call_operand.<no memory space> [shape: f32[1,1], index: 11, kind: input, shape index: {}]
  %s12 = inlined_call_operand.hbm [shape: f32[1,64], index: 12, kind: input, shape index: {}]
  %s13 = inlined_call_operand.hbm [shape: f32[1,64], index: 13, kind: input, shape index: {}]
  %s14 = inlined_call_operand.hbm [shape: f32[1,64], index: 14, kind: input, shape index: {}]
  %s15 = inlined_call_operand.hbm [shape: f32[1,64], index: 15, kind: input, shape index: {}]
  %s16 = inlined_call_operand.vmem [shape: f32[64,32], index: 16, kind: input, shape index: {}]
  %s17 = inlined_call_operand.vmem [shape: f32[1,32], index: 17, kind: input, shape index: {}]
  %s18 = inlined_call_operand.vmem [shape: f32[32,2], index: 18, kind: input, shape index: {}]
  %s19 = inlined_call_operand.vmem [shape: f32[1,2], index: 19, kind: input, shape index: {}]
  %s20 = inlined_call_operand.vmem [shape: f32[8,2], index: 20, kind: output, shape index: {}]
  %s21 = sld [smem:[#allocation0]]
  $region118: #{tpu_custom_call.1} parent=0
    _
  %s23 = ssub.s32 1, %s21
  %s24 = scalar_select 0, %s23, %s21
  %v25 = vstv %s11
  %26 = vst [vmem:[#allocation4] sm:$0x1] %v25
  $region1: #{tpu_custom_call.1} parent=0
    #allocation5 [shape = 'u8[1024]{0}', space=vmem, size = 0x400, scoped, tag = 'input window, operand 4, single buffered']
    #allocation6 [shape = 's32[1]{0}', space=sflag, size = 0x4, scoped, tag = 'scoped memory for tpu_custom_call.1']
    #allocation7 [shape = 'u8[65536]{0}', space=vmem, size = 0x10000, scoped, tag = 'input window, operand 6, single buffered']
    #allocation8 [shape = 's32[1]{0}', space=sflag, size = 0x4, scoped, tag = 'scoped memory for tpu_custom_call.1']
    #allocation9 [shape = 'u8[512]{0}', space=vmem, size = 0x400, scoped, tag = 'input window, operand 10, single buffered']
    #allocation10 [shape = 'u8[512]{0}', space=vmem, size = 0x400, scoped, tag = 'input window, operand 12, single buffered']
    #allocation11 [shape = 's32[1]{0}', space=sflag, size = 0x4, scoped, tag = 'scoped memory for tpu_custom_call.1']
    #allocation12 [shape = 'u8[512]{0}', space=vmem, size = 0x400, scoped, tag = 'input window, operand 13, single buffered']
    #allocation13 [shape = 'u8[512]{0}', space=vmem, size = 0x400, scoped, tag = 'input window, operand 14, single buffered']
    #allocation14 [shape = 's32[1]{0}', space=sflag, size = 0x4, scoped, tag = 'scoped memory for tpu_custom_call.1']
    #allocation15 [shape = 'u8[512]{0}', space=vmem, size = 0x400, scoped, tag = 'input window, operand 15, single buffered']
    %27 = vsyncpa [#allocation6], 0
    %28 = vsyncpa [#allocation8], 0
    %29 = vsyncpa [#allocation11], 0
    %30 = vsyncpa [#allocation14], 0
    // Predicated region
    $region2: #{tpu_custom_call.1} parent=1 // pred_check
      _
    $region3: #{tpu_custom_call.1} parent=1 // pred_check_branch
      %32 = sbr.rel (0) target = $region5
    $region4: #{tpu_custom_call.1} parent=1 // pred_region
      _
    $region5: #{tpu_custom_call.1} parent=1 // pred_fallthru
      _
    // Predicated region
    $region6: #{tpu_custom_call.1} parent=1 // pred_check
      _
    $region7: #{tpu_custom_call.1} parent=1 // pred_check_branch
      %34 = sbr.rel (0) target = $region9
    $region8: #{tpu_custom_call.1} parent=1 // pred_region
      _
    $region9: #{tpu_custom_call.1} parent=1 // pred_fallthru
      _
    // Predicated region
    $region10: #{tpu_custom_call.1} parent=1 // pred_check
      _
    $region11: #{tpu_custom_call.1} parent=1 // pred_check_branch
      %36 = sbr.rel (0) target = $region13
    $region12: #{tpu_custom_call.1} parent=1 // pred_region
      _
    $region13: #{tpu_custom_call.1} parent=1 // pred_fallthru
      _
    // Predicated region
    $region14: #{tpu_custom_call.1} parent=1 // pred_check
      _
    $region15: #{tpu_custom_call.1} parent=1 // pred_check_branch
      %38 = sbr.rel (0) target = $region17
    $region16: #{tpu_custom_call.1} parent=1 // pred_region
      _
    $region17: #{tpu_custom_call.1} parent=1 // pred_fallthru
      _
    // Predicated region
    $region18: #{tpu_custom_call.1} parent=1 // pred_check
      _
    $region19: #{tpu_custom_call.1} parent=1 // pred_check_branch
      %40 = sbr.rel (0) target = $region21
    $region20: #{tpu_custom_call.1} parent=1 // pred_region
      %s42 = ssub.s32 32, 32
      %43 = vsyncadd [#allocation6], %s42
      %s45 = sshll.u32 [#allocation5], 4
      %s46 = int_to_ptr.vmem [resolvable:$true] %s45
      %48 = dma.hbm_to_vmem [thread:$0]  %s4, 32, %s46, [#allocation6]
    $region21: #{tpu_custom_call.1} parent=1 // pred_fallthru
      _
    // Predicated region
    $region22: #{tpu_custom_call.1} parent=1 // pred_check
      _
    $region23: #{tpu_custom_call.1} parent=1 // pred_check_branch
      %50 = sbr.rel (0) target = $region25
    $region24: #{tpu_custom_call.1} parent=1 // pred_region
      _
    $region25: #{tpu_custom_call.1} parent=1 // pred_fallthru
      _
    // Predicated region
    $region26: #{tpu_custom_call.1} parent=1 // pred_check
      _
    $region27: #{tpu_custom_call.1} parent=1 // pred_check_branch
      %52 = sbr.rel (0) target = $region29
    $region28: #{tpu_custom_call.1} parent=1 // pred_region
      %s54 = ssub.s32 2048, 2048
      %55 = vsyncadd [#allocation8], %s54
      %s56 = sshll.u32 [#allocation7], 4
      %s57 = int_to_ptr.vmem [resolvable:$true] %s56
      %62 = dma.hbm_to_vmem [thread:$0]  %s6, 2048, %s57, [#allocation8], 256, 256, 16
    $region29: #{tpu_custom_call.1} parent=1 // pred_fallthru
      _
    // Predicated region
    $region30: #{tpu_custom_call.1} parent=1 // pred_check
      _
    $region31: #{tpu_custom_call.1} parent=1 // pred_check_branch
      %64 = sbr.rel (0) target = $region33
    $region32: #{tpu_custom_call.1} parent=1 // pred_region
      _
    $region33: #{tpu_custom_call.1} parent=1 // pred_fallthru
      _
    // Predicated region
    $region34: #{tpu_custom_call.1} parent=1 // pred_check
      _
    $region35: #{tpu_custom_call.1} parent=1 // pred_check_branch
      %66 = sbr.rel (0) target = $region37
    $region36: #{tpu_custom_call.1} parent=1 // pred_region
      _
    $region37: #{tpu_custom_call.1} parent=1 // pred_fallthru
      _
    // Predicated region
    $region38: #{tpu_custom_call.1} parent=1 // pred_check
      _
    $region39: #{tpu_custom_call.1} parent=1 // pred_check_branch
      %68 = sbr.rel (0) target = $region41
    $region40: #{tpu_custom_call.1} parent=1 // pred_region
      _
    $region41: #{tpu_custom_call.1} parent=1 // pred_fallthru
      _
    // Predicated region
    $region42: #{tpu_custom_call.1} parent=1 // pred_check
      _
    $region43: #{tpu_custom_call.1} parent=1 // pred_check_branch
      %70 = sbr.rel (0) target = $region45
    $region44: #{tpu_custom_call.1} parent=1 // pred_region
      %s72 = ssub.s32 16, 16
      %73 = vsyncadd [#allocation8], %s72
      %s75 = sshll.u32 [#allocation9], 4
      %s76 = int_to_ptr.vmem [resolvable:$true] %s75
      %78 = dma.hbm_to_vmem [thread:$0]  %s10, 16, %s76, [#allocation8]
    $region45: #{tpu_custom_call.1} parent=1 // pred_fallthru
      _
    // Predicated region
    $region46: #{tpu_custom_call.1} parent=1 // pred_check
      _
    $region47: #{tpu_custom_call.1} parent=1 // pred_check_branch
      %80 = sbr.rel (0) target = $region49
    $region48: #{tpu_custom_call.1} parent=1 // pred_region
      _
    $region49: #{tpu_custom_call.1} parent=1 // pred_fallthru
      _
    // Predicated region
    $region50: #{tpu_custom_call.1} parent=1 // pred_check
      _
    $region51: #{tpu_custom_call.1} parent=1 // pred_check_branch
      %82 = sbr.rel (0) target = $region53
    $region52: #{tpu_custom_call.1} parent=1 // pred_region
      %s84 = ssub.s32 16, 16
      %85 = vsyncadd [#allocation11], %s84
      %s87 = sshll.u32 [#allocation10], 4
      %s88 = int_to_ptr.vmem [resolvable:$true] %s87
      %90 = dma.hbm_to_vmem [thread:$0]  %s12, 16, %s88, [#allocation11]
    $region53: #{tpu_custom_call.1} parent=1 // pred_fallthru
      _
    // Predicated region
    $region54: #{tpu_custom_call.1} parent=1 // pred_check
      _
    $region55: #{tpu_custom_call.1} parent=1 // pred_check_branch
      %92 = sbr.rel (0) target = $region57
    $region56: #{tpu_custom_call.1} parent=1 // pred_region
      %s94 = ssub.s32 16, 16
      %95 = vsyncadd [#allocation11], %s94
      %s97 = sshll.u32 [#allocation12], 4
      %s98 = int_to_ptr.vmem [resolvable:$true] %s97
      %100 = dma.hbm_to_vmem [thread:$0]  %s13, 16, %s98, [#allocation11]
    $region57: #{tpu_custom_call.1} parent=1 // pred_fallthru
      _
    // Predicated region
    $region58: #{tpu_custom_call.1} parent=1 // pred_check
      _
    $region59: #{tpu_custom_call.1} parent=1 // pred_check_branch
      %102 = sbr.rel (0) target = $region61
    $region60: #{tpu_custom_call.1} parent=1 // pred_region
      %s104 = ssub.s32 16, 16
      %105 = vsyncadd [#allocation14], %s104
      %s107 = sshll.u32 [#allocation13], 4
      %s108 = int_to_ptr.vmem [resolvable:$true] %s107
      %110 = dma.hbm_to_vmem [thread:$0]  %s14, 16, %s108, [#allocation14]
    $region61: #{tpu_custom_call.1} parent=1 // pred_fallthru
      _
    // Predicated region
    $region62: #{tpu_custom_call.1} parent=1 // pred_check
      _
    $region63: #{tpu_custom_call.1} parent=1 // pred_check_branch
      %112 = sbr.rel (0) target = $region65
    $region64: #{tpu_custom_call.1} parent=1 // pred_region
      %s114 = ssub.s32 16, 16
      %115 = vsyncadd [#allocation14], %s114
      %s117 = sshll.u32 [#allocation15], 4
      %s118 = int_to_ptr.vmem [resolvable:$true] %s117
      %120 = dma.hbm_to_vmem [thread:$0]  %s15, 16, %s118, [#allocation14]
    $region65: #{tpu_custom_call.1} parent=1 // pred_fallthru
      _
    // Predicated region
    $region66: #{tpu_custom_call.1} parent=1 // pred_check
      _
    $region67: #{tpu_custom_call.1} parent=1 // pred_check_branch
      %122 = sbr.rel (0) target = $region69
    $region68: #{tpu_custom_call.1} parent=1 // pred_region
      _
    $region69: #{tpu_custom_call.1} parent=1 // pred_fallthru
      _
    // Predicated region
    $region70: #{tpu_custom_call.1} parent=1 // pred_check
      _
    $region71: #{tpu_custom_call.1} parent=1 // pred_check_branch
      %124 = sbr.rel (0) target = $region73
    $region72: #{tpu_custom_call.1} parent=1 // pred_region
      _
    $region73: #{tpu_custom_call.1} parent=1 // pred_fallthru
      _
    // Predicated region
    $region74: #{tpu_custom_call.1} parent=1 // pred_check
      _
    $region75: #{tpu_custom_call.1} parent=1 // pred_check_branch
      %126 = sbr.rel (0) target = $region77
    $region76: #{tpu_custom_call.1} parent=1 // pred_region
      _
    $region77: #{tpu_custom_call.1} parent=1 // pred_fallthru
      _
    // Predicated region
    $region78: #{tpu_custom_call.1} parent=1 // pred_check
      _
    $region79: #{tpu_custom_call.1} parent=1 // pred_check_branch
      %128 = sbr.rel (0) target = $region81
    $region80: #{tpu_custom_call.1} parent=1 // pred_region
      _
    $region81: #{tpu_custom_call.1} parent=1 // pred_fallthru
      _
    // Predicated region
    $region82: #{tpu_custom_call.1} parent=1 // pred_check
      _
    $region83: #{tpu_custom_call.1} parent=1 // pred_check_branch
      %130 = sbr.rel (0) target = $region85
    $region84: #{tpu_custom_call.1} parent=1 // pred_region
      %131 = dma.done [#allocation6], 32
    $region85: #{tpu_custom_call.1} parent=1 // pred_fallthru
      _
    // Predicated region
    $region86: #{tpu_custom_call.1} parent=1 // pred_check
      _
    $region87: #{tpu_custom_call.1} parent=1 // pred_check_branch
      %133 = sbr.rel (0) target = $region89
    $region88: #{tpu_custom_call.1} parent=1 // pred_region
      %134 = dma.done [#allocation8], 2048
    $region89: #{tpu_custom_call.1} parent=1 // pred_fallthru
      _
    // Predicated region
    $region90: #{tpu_custom_call.1} parent=1 // pred_check
      _
    $region91: #{tpu_custom_call.1} parent=1 // pred_check_branch
      %136 = sbr.rel (0) target = $region93
    $region92: #{tpu_custom_call.1} parent=1 // pred_region
      %137 = dma.done [#allocation8], 16
    $region93: #{tpu_custom_call.1} parent=1 // pred_fallthru
      _
    // Predicated region
    $region94: #{tpu_custom_call.1} parent=1 // pred_check
      _
    $region95: #{tpu_custom_call.1} parent=1 // pred_check_branch
      %139 = sbr.rel (0) target = $region97
    $region96: #{tpu_custom_call.1} parent=1 // pred_region
      %140 = dma.done [#allocation11], 16
    $region97: #{tpu_custom_call.1} parent=1 // pred_fallthru
      _
    // Predicated region
    $region98: #{tpu_custom_call.1} parent=1 // pred_check
      _
    $region99: #{tpu_custom_call.1} parent=1 // pred_check_branch
      %142 = sbr.rel (0) target = $region101
    $region100: #{tpu_custom_call.1} parent=1 // pred_region
      %143 = dma.done [#allocation11], 16
    $region101: #{tpu_custom_call.1} parent=1 // pred_fallthru
      _
    // Predicated region
    $region102: #{tpu_custom_call.1} parent=1 // pred_check
      _
    $region103: #{tpu_custom_call.1} parent=1 // pred_check_branch
      %145 = sbr.rel (0) target = $region105
    $region104: #{tpu_custom_call.1} parent=1 // pred_region
      %146 = dma.done [#allocation14], 16
    $region105: #{tpu_custom_call.1} parent=1 // pred_fallthru
      _
    // Predicated region
    $region106: #{tpu_custom_call.1} parent=1 // pred_check
      _
    $region107: #{tpu_custom_call.1} parent=1 // pred_check_branch
      %148 = sbr.rel (0) target = $region109
    $region108: #{tpu_custom_call.1} parent=1 // pred_region
      %149 = dma.done [#allocation14], 16
    $region109: #{tpu_custom_call.1} parent=1 // pred_fallthru
      _
    %v150 = vlaneseq
    %v151 = vand.u32 %v150, 127
    %vm152 = vcmp.lt.s32.totalorder %v151, 32
    %v153 = vsel %vm152, 0, 7
    %v154 = vsel %vm152, 1, 6
    %v155 = vsel %vm152, 2, 5
    %v156 = vsel %vm152, 3, 4
    %v157 = vsel %vm152, 4, 3
    %v158 = vsel %vm152, 5, 2
    %v159 = vsel %vm152, 6, 1
    %v160 = vsel %vm152, 7, 0
    %v161 = vld [vmem:[%s0] sm:$0xff]
    %162 = vset.pattern.permute.xlu0 0
    %163 = vperm.xlu0 %162, %v161
    %v164 = vpop.permute.xlu0 %163
    %vm165 = vcmp.lt.s32.totalorder %v153, %v164
    %vm166 = vcmp.lt.s32.totalorder %v154, %v164
    %vm167 = vcmp.lt.s32.totalorder %v155, %v164
    %vm168 = vcmp.lt.s32.totalorder %v156, %v164
    %vm169 = vcmp.lt.s32.totalorder %v157, %v164
    %vm170 = vcmp.lt.s32.totalorder %v158, %v164
    %vm171 = vcmp.lt.s32.totalorder %v159, %v164
    %vm172 = vcmp.lt.s32.totalorder %v160, %v164
    %v173 = vadd.s32 %v151, 128
    %vm174 = vcmp.lt.s32.totalorder %v151, 0
    %v175 = vsub.s32 0, %v151
    %v176 = vsel %vm174, %v175, %v151
    %v177 = vshrl.u32 %v176, 6
    %v178 = vand.u32 %v176, 63
    %v179 = vsub.s32 0, %v178
    %v180 = vsel %vm174, %v179, %v178
    %vm181 = vcmp.lt.s32.totalorder %v173, 0
    %v182 = vsub.s32 0, %v173
    %v183 = vsel %vm181, %v182, %v173
    %v184 = vshrl.u32 %v183, 6
    %v185 = vand.u32 %v183, 63
    %v186 = vsub.s32 0, %v185
    %v187 = vsel %vm181, %v186, %v185
    %vm188 = vcmp.ne.s32.totalorder %v180, 0
    %vm189 = vcmp.ne.s32.totalorder %v187, 0
    %vm190 = vcmp.lt.s32.totalorder %v180, 0
    %vm191 = vcmp.lt.s32.totalorder %v187, 0
    %vm192 = vmand %vm190, %vm188
    %vm193 = vmand %vm191, %vm189
    %v194 = vadd.s32 %v180, 64
    %v195 = vadd.s32 %v187, 64
    %v196 = vsel %vm192, %v194, %v180
    %v197 = vsel %vm193, %v195, %v187
    %vm198 = vcmp.lt.s32.totalorder %v196, 32
    %vm199 = vcmp.lt.s32.totalorder %v197, 32
    %vm200 = vcmp.ge.s32.totalorder %v151, 128
    %vm201 = vcmp.ge.s32.totalorder %v173, 128
    %vm202 = vcmp.lt.s32.totalorder %v151, 192
    %vm203 = vcmp.lt.s32.totalorder %v173, 192
    %vm204 = vmand %vm200, %vm202
    %vm205 = vmand %vm201, %vm203
    %v206 = vld [vmem:[%s1] sm:$0xff]
    %v207 = vld [vmem:[%s1 + $0x8] sm:$0xff]
    %v208 = vld [vmem:[%s1 + $0x10] sm:$0xff]
    %v209 = vld [vmem:[%s1 + $0x18] sm:$0xff]
    %v210 = vld [vmem:[%s1 + $0x20] sm:$0xff]
    %v211 = vld [vmem:[%s1 + $0x28] sm:$0xff]
    %v212 = vld [vmem:[%s1 + $0x30] sm:$0xff]
    %v213 = vld [vmem:[%s1 + $0x38] sm:$0xff]
    %v214 = vld [vmem:[%s2] sm:$0xff]
    %v215 = vld [vmem:[%s2 + $0x8] sm:$0xff]
    %v216 = vld [vmem:[%s2 + $0x10] sm:$0xff]
    %v217 = vld [vmem:[%s2 + $0x18] sm:$0xff]
    %v218 = vld [vmem:[%s2 + $0x20] sm:$0xff]
    %v219 = vld [vmem:[%s2 + $0x28] sm:$0xff]
    %v220 = vld [vmem:[%s2 + $0x30] sm:$0xff]
    %v221 = vld [vmem:[%s2 + $0x38] sm:$0xff]
    %v222 = vld [vmem:[#allocation5] sm:$0x3]
    %v224 = vlaneseq
    %v225 = vshrl.u32 %v224, 7
    %v226 = vsub.s32 0, %v225
    %v227 = vrot.slane %v222, %v226
    %v228 = vlaneseq
    %v229 = vshrl.u32 %v228, 7
    %v230 = vsub.s32 1, %v229
    %v231 = vrot.slane %v222, %v230
    %vm234 = vcmask 261120
    %v236 = vsel %vm234, %v206, 0
    %v239 = vsel %vm234, %v207, 0
    %v242 = vsel %vm234, %v208, 0
    %v245 = vsel %vm234, %v209, 0
    %v248 = vsel %vm234, %v210, 0
    %v251 = vsel %vm234, %v211, 0
    %v254 = vsel %vm234, %v212, 0
    %v257 = vsel %vm234, %v213, 0
    %259 = vmatprep.subr.mxu0 %v215
    %260 = vmatpush1.msra.mxu0 %v214
    %261 = vmatprep.subr.mxu0 %v217
    %262 = vmatpush1.msra.mxu0 %v216
    %263 = vmatprep.subr.mxu0 %v219
    %264 = vmatpush1.msra.mxu0 %v218
    %265 = vmatprep.subr.mxu0 %v221
    %266 = vmatpush1.msra.mxu0 %v220
    %267 = vmatprep.subr.mxu0 0.0
    %268 = vmatpush1.msra.mxu0 0.0
    %269 = vmatprep.subr.mxu0 0.0
    %270 = vmatpush1.msra.mxu0 0.0
    %271 = vmatprep.subr.mxu0 0.0
    %272 = vmatpush1.msra.mxu0 0.0
    %273 = vmatprep.subr.mxu0 0.0
    %274 = vmatpush1.msra.mxu0 0.0
    %275 = vmatprep.subr.mxu0 0.0
    %276 = vmatpush1.msra.mxu0 0.0
    %277 = vmatprep.subr.mxu0 0.0
    %278 = vmatpush1.msra.mxu0 0.0
    %279 = vmatprep.subr.mxu0 0.0
    %280 = vmatpush1.msra.mxu0 0.0
    %281 = vmatprep.subr.mxu0 0.0
    %282 = vmatpush1.msra.mxu0 0.0
    %283 = vmatprep.subr.mxu0 0.0
    %284 = vmatpush1.msra.mxu0 0.0
    %285 = vmatprep.subr.mxu0 0.0
    %286 = vmatpush1.msra.mxu0 0.0
    %287 = vmatprep.subr.mxu0 0.0
    %288 = vmatpush1.msra.mxu0 0.0
    %289 = vmatprep.subr.mxu0 0.0
    %290 = vmatpush1.msra.mxu0 0.0
    %291 = vmatprep.subr.mxu0 0.0
    %292 = vmatpush1.msra.mxu0 0.0
    %293 = vmatprep.subr.mxu0 0.0
    %294 = vmatpush1.msra.mxu0 0.0
    %295 = vmatprep.subr.mxu0 0.0
    %296 = vmatpush1.msra.mxu0 0.0
    %297 = vmatprep.subr.mxu0 0.0
    %298 = vmatpush1.msra.mxu0 0.0
    %299 = vmatprep.subr.mxu0 0.0
    %300 = vmatpush1.msra.mxu0 0.0
    %301 = vmatprep.subr.mxu0 0.0
    %302 = vmatpush1.msra.mxu0 0.0
    %303 = vmatprep.subr.mxu0 0.0
    %304 = vmatpush1.msra.mxu0 0.0
    %305 = vmatprep.subr.mxu0 0.0
    %306 = vmatpush1.msra.mxu0 0.0
    %307 = vmatprep.subr.mxu0 0.0
    %308 = vmatpush1.msra.mxu0 0.0
    %309 = vmatprep.subr.mxu0 0.0
    %310 = vmatpush1.msra.mxu0 0.0
    %311 = vmatprep.subr.mxu0 0.0
    %312 = vmatpush1.msra.mxu0 0.0
    %313 = vmatprep.subr.mxu0 0.0
    %314 = vmatpush1.msra.mxu0 0.0
    %315 = vmatprep.subr.mxu0 0.0
    %316 = vmatpush1.msra.mxu0 0.0
    %317 = vmatprep.subr.mxu0 0.0
    %318 = vmatpush1.msra.mxu0 0.0
    %319 = vmatprep.subr.mxu0 0.0
    %320 = vmatpush1.msra.mxu0 0.0
    %321 = vmatprep.subr.mxu0 0.0
    %322 = vmatpush1.msra.mxu0 0.0
    %323 = vmatprep.mubr.f32.mxu0 0.0
    %324 = vmatmul.mubr.f32.gmra.mrb[0].mxu0 %v236
    %v325 = vpop.f32.mrb[0].mxu0
    %v326 = vadd.f32 %v227, %v325
    %v327 = vpop.f32.mrb[0].mxu0
    %v328 = vadd.f32 %v231, %v327
    %329 = vmatprep.mubr.f32.mxu0 0.0
    %330 = vmatmul.mubr.f32.gmra.mrb[0].mxu0 %v239
    %v331 = vpop.f32.mrb[0].mxu0
    %v332 = vadd.f32 %v227, %v331
    %v333 = vpop.f32.mrb[0].mxu0
    %v334 = vadd.f32 %v231, %v333
    %335 = vmatprep.mubr.f32.mxu0 0.0
    %336 = vmatmul.mubr.f32.gmra.mrb[0].mxu0 %v242
    %v337 = vpop.f32.mrb[0].mxu0
    %v338 = vadd.f32 %v227, %v337
    %v339 = vpop.f32.mrb[0].mxu0
    %v340 = vadd.f32 %v231, %v339
    %341 = vmatprep.mubr.f32.mxu0 0.0
    %342 = vmatmul.mubr.f32.gmra.mrb[0].mxu0 %v245
    %v343 = vpop.f32.mrb[0].mxu0
    %v344 = vadd.f32 %v227, %v343
    %v345 = vpop.f32.mrb[0].mxu0
    %v346 = vadd.f32 %v231, %v345
    %347 = vmatprep.mubr.f32.mxu0 0.0
    %348 = vmatmul.mubr.f32.gmra.mrb[0].mxu0 %v248
    %v349 = vpop.f32.mrb[0].mxu0
    %v350 = vadd.f32 %v227, %v349
    %v351 = vpop.f32.mrb[0].mxu0
    %v352 = vadd.f32 %v231, %v351
    %353 = vmatprep.mubr.f32.mxu0 0.0
    %354 = vmatmul.mubr.f32.gmra.mrb[0].mxu0 %v251
    %v355 = vpop.f32.mrb[0].mxu0
    %v356 = vadd.f32 %v227, %v355
    %v357 = vpop.f32.mrb[0].mxu0
    %v358 = vadd.f32 %v231, %v357
    %359 = vmatprep.mubr.f32.mxu0 0.0
    %360 = vmatmul.mubr.f32.gmra.mrb[0].mxu0 %v254
    %v361 = vpop.f32.mrb[0].mxu0
    %v362 = vadd.f32 %v227, %v361
    %v363 = vpop.f32.mrb[0].mxu0
    %v364 = vadd.f32 %v231, %v363
    %365 = vmatprep.mubr.f32.mxu0 0.0
    %366 = vmatmul.mubr.f32.gmra.mrb[0].mxu0 %v257
    %v367 = vpop.f32.mrb[0].mxu0
    %v368 = vadd.f32 %v227, %v367
    %v369 = vpop.f32.mrb[0].mxu0
    %v370 = vadd.f32 %v231, %v369
    %371 = vdwg.mxu0
    %372 = vst [vmem:[#allocation2] sm:$0xff] %v326
    %373 = vst [vmem:[#allocation2 + $0x8] sm:$0xff] %v328
    %374 = vst [vmem:[#allocation2 + $0x10] sm:$0xff] %v332
    %375 = vst [vmem:[#allocation2 + $0x18] sm:$0xff] %v334
    %376 = vst [vmem:[#allocation2 + $0x20] sm:$0xff] %v338
    %377 = vst [vmem:[#allocation2 + $0x28] sm:$0xff] %v340
    %378 = vst [vmem:[#allocation2 + $0x30] sm:$0xff] %v344
    %379 = vst [vmem:[#allocation2 + $0x38] sm:$0xff] %v346
    %380 = vst [vmem:[#allocation2 + $0x40] sm:$0xff] %v350
    %381 = vst [vmem:[#allocation2 + $0x48] sm:$0xff] %v352
    %382 = vst [vmem:[#allocation2 + $0x50] sm:$0xff] %v356
    %383 = vst [vmem:[#allocation2 + $0x58] sm:$0xff] %v358
    %384 = vst [vmem:[#allocation2 + $0x60] sm:$0xff] %v362
    %385 = vst [vmem:[#allocation2 + $0x68] sm:$0xff] %v364
    %386 = vst [vmem:[#allocation2 + $0x70] sm:$0xff] %v368
    %387 = vst [vmem:[#allocation2 + $0x78] sm:$0xff] %v370
    %v388 = vld [vmem:[%s3] sm:$0xff]
    %v389 = vld [vmem:[%s3 + $0x8] sm:$0xff]
    %v390 = vld [vmem:[%s3 + $0x10] sm:$0xff]
    %v391 = vld [vmem:[%s3 + $0x18] sm:$0xff]
    %v392 = vld [vmem:[%s3 + $0x20] sm:$0xff]
    %v393 = vld [vmem:[%s3 + $0x28] sm:$0xff]
    %v394 = vld [vmem:[%s3 + $0x30] sm:$0xff]
    %v395 = vld [vmem:[%s3 + $0x38] sm:$0xff]
    %v396 = vld [vmem:[%s3 + $0x40] sm:$0xff]
    %v397 = vld [vmem:[%s3 + $0x48] sm:$0xff]
    %v398 = vld [vmem:[%s3 + $0x50] sm:$0xff]
    %v399 = vld [vmem:[%s3 + $0x58] sm:$0xff]
    %v400 = vld [vmem:[%s3 + $0x60] sm:$0xff]
    %v401 = vld [vmem:[%s3 + $0x68] sm:$0xff]
    %v402 = vld [vmem:[%s3 + $0x70] sm:$0xff]
    %v403 = vld [vmem:[%s3 + $0x78] sm:$0xff]
    %v404 = vld [vmem:[#allocation2] sm:$0xff]
    %v405 = vld [vmem:[#allocation2 + $0x8] sm:$0xff]
    %v406 = vld [vmem:[#allocation2 + $0x70] sm:$0xff]
    %v407 = vld [vmem:[#allocation2 + $0x78] sm:$0xff]
    %v408 = vsel %vm198, %v404, %v406
    %v409 = vsel %vm199, %v405, %v407
    %vm410 = vcmask 523264
    %v412 = vsel %vm410, 0.0, 0
    %414 = vmatprep.subr.mxu0 %v389
    %415 = vmatpush1.msra.mxu0 %v388
    %416 = vmatprep.subr.mxu0 %v391
    %417 = vmatpush1.msra.mxu0 %v390
    %418 = vmatprep.subr.mxu0 %v393
    %419 = vmatpush1.msra.mxu0 %v392
    %420 = vmatprep.subr.mxu0 %v395
    %421 = vmatpush1.msra.mxu0 %v394
    %422 = vmatprep.subr.mxu0 %v397
    %423 = vmatpush1.msra.mxu0 %v396
    %424 = vmatprep.subr.mxu0 %v399
    %425 = vmatpush1.msra.mxu0 %v398
    %426 = vmatprep.subr.mxu0 %v401
    %427 = vmatpush1.msra.mxu0 %v400
    %428 = vmatprep.subr.mxu0 %v403
    %429 = vmatpush1.msra.mxu0 %v402
    %430 = vmatprep.subr.mxu0 0.0
    %431 = vmatpush1.msra.mxu0 0.0
    %432 = vmatprep.subr.mxu0 0.0
    %433 = vmatpush1.msra.mxu0 0.0
    %434 = vmatprep.subr.mxu0 0.0
    %435 = vmatpush1.msra.mxu0 0.0
    %436 = vmatprep.subr.mxu0 0.0
    %437 = vmatpush1.msra.mxu0 0.0
    %438 = vmatprep.subr.mxu0 0.0
    %439 = vmatpush1.msra.mxu0 0.0
    %440 = vmatprep.subr.mxu0 0.0
    %441 = vmatpush1.msra.mxu0 0.0
    %442 = vmatprep.subr.mxu0 0.0
    %443 = vmatpush1.msra.mxu0 0.0
    %444 = vmatprep.subr.mxu0 0.0
    %445 = vmatpush1.msra.mxu0 0.0
    %446 = vmatprep.subr.mxu0 0.0
    %447 = vmatpush1.msra.mxu0 0.0
    %448 = vmatprep.subr.mxu0 0.0
    %449 = vmatpush1.msra.mxu0 0.0
    %450 = vmatprep.subr.mxu0 0.0
    %451 = vmatpush1.msra.mxu0 0.0
    %452 = vmatprep.subr.mxu0 0.0
    %453 = vmatpush1.msra.mxu0 0.0
    %454 = vmatprep.subr.mxu0 0.0
    %455 = vmatpush1.msra.mxu0 0.0
    %456 = vmatprep.subr.mxu0 0.0
    %457 = vmatpush1.msra.mxu0 0.0
    %458 = vmatprep.subr.mxu0 0.0
    %459 = vmatpush1.msra.mxu0 0.0
    %460 = vmatprep.subr.mxu0 0.0
    %461 = vmatpush1.msra.mxu0 0.0
    %462 = vmatprep.subr.mxu0 0.0
    %463 = vmatpush1.msra.mxu0 0.0
    %464 = vmatprep.subr.mxu0 0.0
    %465 = vmatpush1.msra.mxu0 0.0
    %466 = vmatprep.subr.mxu0 0.0
    %467 = vmatpush1.msra.mxu0 0.0
    %468 = vmatprep.subr.mxu0 0.0
    %469 = vmatpush1.msra.mxu0 0.0
    %470 = vmatprep.subr.mxu0 0.0
    %471 = vmatpush1.msra.mxu0 0.0
    %472 = vmatprep.subr.mxu0 0.0
    %473 = vmatpush1.msra.mxu0 0.0
    %474 = vmatprep.subr.mxu0 0.0
    %475 = vmatpush1.msra.mxu0 0.0
    %476 = vmatprep.subr.mxu0 0.0
    %477 = vmatpush1.msra.mxu0 0.0
    %478 = vmatprep.mubr.f32.mxu0 0.0
    %479 = vmatmul.mubr.f32.gmra.mrb[0].mxu0 %v412
    %v480 = vpop.f32.mrb[0].mxu0
    %v481 = vadd.f32 0.0, %v480
    %v482 = vpop.f32.mrb[0].mxu0
    %v483 = vadd.f32 0.0, %v482
    %484 = vdwg.mxu0
    %v485 = vadd.f32 %v408, %v481
    %v486 = vadd.f32 %v409, %v483
    %v487 = vtanh.pop %v485
    %v488 = vtanh.pop %v486
    %v489 = vxor.u32 %v485, 2147483648
    %v490 = vxor.u32 %v486, 2147483648
    %v491 = vmul.f32 %v489, 1.442695
    %v492 = vpow.pop %v491
    %v493 = vmul.f32 %v490, 1.442695
    %v494 = vpow.pop %v493
    %v495 = vadd.f32 %v492, 1.0
    %v496 = vadd.f32 %v494, 1.0
    %v497 = vrcp.pop %v495
    %v498 = vmul.f32 1.0, %v497
    %v499 = vrcp.pop %v496
    %v500 = vmul.f32 1.0, %v499
    %v501 = vsel %vm204, %v487, %v498
    %v502 = vsel %vm205, %v488, %v500
    %v503 = vmul.f32 %v501, 0.0
    %v504 = vmul.f32 %v501, %v502
    %506 = vrot.lane.b32.xlu0 %v504, 64
    %v507 = vpop.permute.xlu0 %506
    %v509 = vadd.f32 %v503, %v507
    %v510 = vtanh.pop %v509
    %v511 = vmul.f32 %v502, %v510
    %513 = vrot.lane.b32.xlu0 %v511, 64
    %v514 = vpop.permute.xlu0 %513
    %v516 = vsel %vm165, %v514, 0.0
    %518 = vrot.lane.b32.xlu0 %v509, 64
    %v519 = vpop.permute.xlu0 %518
    %v521 = vsel %vm165, %v519, 0.0
    %522 = vst.msk [vmem:[#allocation3] sm:$0xff] %vm234, %v516
    %vm523 = vcmask 523520
    %524 = vst.msk [vmem:[#allocation3 + $0x38] sm:$0xff] %vm523, %v516
    %v525 = vld [vmem:[#allocation2 + $0x10] sm:$0xff]
    %v526 = vld [vmem:[#allocation2 + $0x18] sm:$0xff]
    %v527 = vld [vmem:[#allocation2 + $0x60] sm:$0xff]
    %v528 = vld [vmem:[#allocation2 + $0x68] sm:$0xff]
    %v529 = vsel %vm198, %v525, %v527
    %v530 = vsel %vm199, %v526, %v528
    %v532 = vsel %vm410, %v516, 0
    %534 = vmatprep.subr.mxu0 %v389
    %535 = vmatpush1.msra.mxu0 %v388
    %536 = vmatprep.subr.mxu0 %v391
    %537 = vmatpush1.msra.mxu0 %v390
    %538 = vmatprep.subr.mxu0 %v393
    %539 = vmatpush1.msra.mxu0 %v392
    %540 = vmatprep.subr.mxu0 %v395
    %541 = vmatpush1.msra.mxu0 %v394
    %542 = vmatprep.subr.mxu0 %v397
    %543 = vmatpush1.msra.mxu0 %v396
    %544 = vmatprep.subr.mxu0 %v399
    %545 = vmatpush1.msra.mxu0 %v398
    %546 = vmatprep.subr.mxu0 %v401
    %547 = vmatpush1.msra.mxu0 %v400
    %548 = vmatprep.subr.mxu0 %v403
    %549 = vmatpush1.msra.mxu0 %v402
    %550 = vmatprep.subr.mxu0 0.0
    %551 = vmatpush1.msra.mxu0 0.0
    %552 = vmatprep.subr.mxu0 0.0
    %553 = vmatpush1.msra.mxu0 0.0
    %554 = vmatprep.subr.mxu0 0.0
    %555 = vmatpush1.msra.mxu0 0.0
    %556 = vmatprep.subr.mxu0 0.0
    %557 = vmatpush1.msra.mxu0 0.0
    %558 = vmatprep.subr.mxu0 0.0
    %559 = vmatpush1.msra.mxu0 0.0
    %560 = vmatprep.subr.mxu0 0.0
    %561 = vmatpush1.msra.mxu0 0.0
    %562 = vmatprep.subr.mxu0 0.0
    %563 = vmatpush1.msra.mxu0 0.0
    %564 = vmatprep.subr.mxu0 0.0
    %565 = vmatpush1.msra.mxu0 0.0
    %566 = vmatprep.subr.mxu0 0.0
    %567 = vmatpush1.msra.mxu0 0.0
    %568 = vmatprep.subr.mxu0 0.0
    %569 = vmatpush1.msra.mxu0 0.0
    %570 = vmatprep.subr.mxu0 0.0
    %571 = vmatpush1.msra.mxu0 0.0
    %572 = vmatprep.subr.mxu0 0.0
    %573 = vmatpush1.msra.mxu0 0.0
    %574 = vmatprep.subr.mxu0 0.0
    %575 = vmatpush1.msra.mxu0 0.0
    %576 = vmatprep.subr.mxu0 0.0
    %577 = vmatpush1.msra.mxu0 0.0
    %578 = vmatprep.subr.mxu0 0.0
    %579 = vmatpush1.msra.mxu0 0.0
    %580 = vmatprep.subr.mxu0 0.0
    %581 = vmatpush1.msra.mxu0 0.0
    %582 = vmatprep.subr.mxu0 0.0
    %583 = vmatpush1.msra.mxu0 0.0
    %584 = vmatprep.subr.mxu0 0.0
    %585 = vmatpush1.msra.mxu0 0.0
    %586 = vmatprep.subr.mxu0 0.0
    %587 = vmatpush1.msra.mxu0 0.0
    %588 = vmatprep.subr.mxu0 0.0
    %589 = vmatpush1.msra.mxu0 0.0
    %590 = vmatprep.subr.mxu0 0.0
    %591 = vmatpush1.msra.mxu0 0.0
    %592 = vmatprep.subr.mxu0 0.0
    %593 = vmatpush1.msra.mxu0 0.0
    %594 = vmatprep.subr.mxu0 0.0
    %595 = vmatpush1.msra.mxu0 0.0
    %596 = vmatprep.subr.mxu0 0.0
    %597 = vmatpush1.msra.mxu0 0.0
    %598 = vmatprep.mubr.f32.mxu0 0.0
    %599 = vmatmul.mubr.f32.gmra.mrb[0].mxu0 %v532
    %v600 = vpop.f32.mrb[0].mxu0
    %v601 = vadd.f32 0.0, %v600
    %v602 = vpop.f32.mrb[0].mxu0
    %v603 = vadd.f32 0.0, %v602
    %604 = vdwg.mxu0
    %v605 = vadd.f32 %v529, %v601
    %v606 = vadd.f32 %v530, %v603
    %v607 = vtanh.pop %v605
    %v608 = vtanh.pop %v606
    %v609 = vxor.u32 %v605, 2147483648
    %v610 = vxor.u32 %v606, 2147483648
    %v611 = vmul.f32 %v609, 1.442695
    %v612 = vpow.pop %v611
    %v613 = vmul.f32 %v610, 1.442695
    %v614 = vpow.pop %v613
    %v615 = vadd.f32 %v612, 1.0
    %v616 = vadd.f32 %v614, 1.0
    %v617 = vrcp.pop %v615
    %v618 = vmul.f32 1.0, %v617
    %v619 = vrcp.pop %v616
    %v620 = vmul.f32 1.0, %v619
    %v621 = vsel %vm204, %v607, %v618
    %v622 = vsel %vm205, %v608, %v620
    %624 = vrot.lane.b32.xlu0 %v521, 64
    %v625 = vpop.permute.xlu0 %624
    %v627 = vmul.f32 %v621, %v625
    %v628 = vmul.f32 %v621, %v622
    %630 = vrot.lane.b32.xlu0 %v628, 64
    %v631 = vpop.permute.xlu0 %630
    %v633 = vadd.f32 %v627, %v631
    %v634 = vtanh.pop %v633
    %v635 = vmul.f32 %v622, %v634
    %637 = vrot.lane.b32.xlu0 %v635, 64
    %v638 = vpop.permute.xlu0 %637
    %v640 = vsel %vm166, %v638, %v516
    %642 = vrot.lane.b32.xlu0 %v633, 64
    %v643 = vpop.permute.xlu0 %642
    %v645 = vsel %vm166, %v643, %v521
    %v646 = vsel %vm166, %v638, 0.0
    %647 = vst.msk [vmem:[#allocation3 + $0x8] sm:$0xff] %vm234, %v646
    %648 = vst.msk [vmem:[#allocation3 + $0x30] sm:$0xff] %vm523, %v646
    %v649 = vld [vmem:[#allocation2 + $0x20] sm:$0xff]
    %v650 = vld [vmem:[#allocation2 + $0x28] sm:$0xff]
    %v651 = vld [vmem:[#allocation2 + $0x50] sm:$0xff]
    %v652 = vld [vmem:[#allocation2 + $0x58] sm:$0xff]
    %v653 = vsel %vm198, %v649, %v651
    %v654 = vsel %vm199, %v650, %v652
    %v656 = vsel %vm410, %v640, 0
    %658 = vmatprep.subr.mxu0 %v389
    %659 = vmatpush1.msra.mxu0 %v388
    %660 = vmatprep.subr.mxu0 %v391
    %661 = vmatpush1.msra.mxu0 %v390
    %662 = vmatprep.subr.mxu0 %v393
    %663 = vmatpush1.msra.mxu0 %v392
    %664 = vmatprep.subr.mxu0 %v395
    %665 = vmatpush1.msra.mxu0 %v394
    %666 = vmatprep.subr.mxu0 %v397
    %667 = vmatpush1.msra.mxu0 %v396
    %668 = vmatprep.subr.mxu0 %v399
    %669 = vmatpush1.msra.mxu0 %v398
    %670 = vmatprep.subr.mxu0 %v401
    %671 = vmatpush1.msra.mxu0 %v400
    %672 = vmatprep.subr.mxu0 %v403
    %673 = vmatpush1.msra.mxu0 %v402
    %674 = vmatprep.subr.mxu0 0.0
    %675 = vmatpush1.msra.mxu0 0.0
    %676 = vmatprep.subr.mxu0 0.0
    %677 = vmatpush1.msra.mxu0 0.0
    %678 = vmatprep.subr.mxu0 0.0
    %679 = vmatpush1.msra.mxu0 0.0
    %680 = vmatprep.subr.mxu0 0.0
    %681 = vmatpush1.msra.mxu0 0.0
    %682 = vmatprep.subr.mxu0 0.0
    %683 = vmatpush1.msra.mxu0 0.0
    %684 = vmatprep.subr.mxu0 0.0
    %685 = vmatpush1.msra.mxu0 0.0
    %686 = vmatprep.subr.mxu0 0.0
    %687 = vmatpush1.msra.mxu0 0.0
    %688 = vmatprep.subr.mxu0 0.0
    %689 = vmatpush1.msra.mxu0 0.0
    %690 = vmatprep.subr.mxu0 0.0
    %691 = vmatpush1.msra.mxu0 0.0
    %692 = vmatprep.subr.mxu0 0.0
    %693 = vmatpush1.msra.mxu0 0.0
    %694 = vmatprep.subr.mxu0 0.0
    %695 = vmatpush1.msra.mxu0 0.0
    %696 = vmatprep.subr.mxu0 0.0
    %697 = vmatpush1.msra.mxu0 0.0
    %698 = vmatprep.subr.mxu0 0.0
    %699 = vmatpush1.msra.mxu0 0.0
    %700 = vmatprep.subr.mxu0 0.0
    %701 = vmatpush1.msra.mxu0 0.0
    %702 = vmatprep.subr.mxu0 0.0
    %703 = vmatpush1.msra.mxu0 0.0
    %704 = vmatprep.subr.mxu0 0.0
    %705 = vmatpush1.msra.mxu0 0.0
    %706 = vmatprep.subr.mxu0 0.0
    %707 = vmatpush1.msra.mxu0 0.0
    %708 = vmatprep.subr.mxu0 0.0
    %709 = vmatpush1.msra.mxu0 0.0
    %710 = vmatprep.subr.mxu0 0.0
    %711 = vmatpush1.msra.mxu0 0.0
    %712 = vmatprep.subr.mxu0 0.0
    %713 = vmatpush1.msra.mxu0 0.0
    %714 = vmatprep.subr.mxu0 0.0
    %715 = vmatpush1.msra.mxu0 0.0
    %716 = vmatprep.subr.mxu0 0.0
    %717 = vmatpush1.msra.mxu0 0.0
    %718 = vmatprep.subr.mxu0 0.0
    %719 = vmatpush1.msra.mxu0 0.0
    %720 = vmatprep.subr.mxu0 0.0
    %721 = vmatpush1.msra.mxu0 0.0
    %722 = vmatprep.mubr.f32.mxu0 0.0
    %723 = vmatmul.mubr.f32.gmra.mrb[0].mxu0 %v656
    %v724 = vpop.f32.mrb[0].mxu0
    %v725 = vadd.f32 0.0, %v724
    %v726 = vpop.f32.mrb[0].mxu0
    %v727 = vadd.f32 0.0, %v726
    %728 = vdwg.mxu0
    %v729 = vadd.f32 %v653, %v725
    %v730 = vadd.f32 %v654, %v727
    %v731 = vtanh.pop %v729
    %v732 = vtanh.pop %v730
    %v733 = vxor.u32 %v729, 2147483648
    %v734 = vxor.u32 %v730, 2147483648
    %v735 = vmul.f32 %v733, 1.442695
    %v736 = vpow.pop %v735
    %v737 = vmul.f32 %v734, 1.442695
    %v738 = vpow.pop %v737
    %v739 = vadd.f32 %v736, 1.0
    %v740 = vadd.f32 %v738, 1.0
    %v741 = vrcp.pop %v739
    %v742 = vmul.f32 1.0, %v741
    %v743 = vrcp.pop %v740
    %v744 = vmul.f32 1.0, %v743
    %v745 = vsel %vm204, %v731, %v742
    %v746 = vsel %vm205, %v732, %v744
    %748 = vrot.lane.b32.xlu0 %v645, 64
    %v749 = vpop.permute.xlu0 %748
    %v751 = vmul.f32 %v745, %v749
    %v752 = vmul.f32 %v745, %v746
    %754 = vrot.lane.b32.xlu0 %v752, 64
    %v755 = vpop.permute.xlu0 %754
    %v757 = vadd.f32 %v751, %v755
    %v758 = vtanh.pop %v757
    %v759 = vmul.f32 %v746, %v758
    %761 = vrot.lane.b32.xlu0 %v759, 64
    %v762 = vpop.permute.xlu0 %761
    %v764 = vsel %vm167, %v762, %v640
    %766 = vrot.lane.b32.xlu0 %v757, 64
    %v767 = vpop.permute.xlu0 %766
    %v769 = vsel %vm167, %v767, %v645
    %v770 = vsel %vm167, %v762, 0.0
    %771 = vst.msk [vmem:[#allocation3 + $0x10] sm:$0xff] %vm234, %v770
    %772 = vst.msk [vmem:[#allocation3 + $0x28] sm:$0xff] %vm523, %v770
    %v773 = vld [vmem:[#allocation2 + $0x30] sm:$0xff]
    %v774 = vld [vmem:[#allocation2 + $0x38] sm:$0xff]
    %v775 = vld [vmem:[#allocation2 + $0x40] sm:$0xff]
    %v776 = vld [vmem:[#allocation2 + $0x48] sm:$0xff]
    %v777 = vsel %vm198, %v773, %v775
    %v778 = vsel %vm199, %v774, %v776
    %v780 = vsel %vm410, %v764, 0
    %782 = vmatprep.subr.mxu0 %v389
    %783 = vmatpush1.msra.mxu0 %v388
    %784 = vmatprep.subr.mxu0 %v391
    %785 = vmatpush1.msra.mxu0 %v390
    %786 = vmatprep.subr.mxu0 %v393
    %787 = vmatpush1.msra.mxu0 %v392
    %788 = vmatprep.subr.mxu0 %v395
    %789 = vmatpush1.msra.mxu0 %v394
    %790 = vmatprep.subr.mxu0 %v397
    %791 = vmatpush1.msra.mxu0 %v396
    %792 = vmatprep.subr.mxu0 %v399
    %793 = vmatpush1.msra.mxu0 %v398
    %794 = vmatprep.subr.mxu0 %v401
    %795 = vmatpush1.msra.mxu0 %v400
    %796 = vmatprep.subr.mxu0 %v403
    %797 = vmatpush1.msra.mxu0 %v402
    %798 = vmatprep.subr.mxu0 0.0
    %799 = vmatpush1.msra.mxu0 0.0
    %800 = vmatprep.subr.mxu0 0.0
    %801 = vmatpush1.msra.mxu0 0.0
    %802 = vmatprep.subr.mxu0 0.0
    %803 = vmatpush1.msra.mxu0 0.0
    %804 = vmatprep.subr.mxu0 0.0
    %805 = vmatpush1.msra.mxu0 0.0
    %806 = vmatprep.subr.mxu0 0.0
    %807 = vmatpush1.msra.mxu0 0.0
    %808 = vmatprep.subr.mxu0 0.0
    %809 = vmatpush1.msra.mxu0 0.0
    %810 = vmatprep.subr.mxu0 0.0
    %811 = vmatpush1.msra.mxu0 0.0
    %812 = vmatprep.subr.mxu0 0.0
    %813 = vmatpush1.msra.mxu0 0.0
    %814 = vmatprep.subr.mxu0 0.0
    %815 = vmatpush1.msra.mxu0 0.0
    %816 = vmatprep.subr.mxu0 0.0
    %817 = vmatpush1.msra.mxu0 0.0
    %818 = vmatprep.subr.mxu0 0.0
    %819 = vmatpush1.msra.mxu0 0.0
    %820 = vmatprep.subr.mxu0 0.0
    %821 = vmatpush1.msra.mxu0 0.0
    %822 = vmatprep.subr.mxu0 0.0
    %823 = vmatpush1.msra.mxu0 0.0
    %824 = vmatprep.subr.mxu0 0.0
    %825 = vmatpush1.msra.mxu0 0.0
    %826 = vmatprep.subr.mxu0 0.0
    %827 = vmatpush1.msra.mxu0 0.0
    %828 = vmatprep.subr.mxu0 0.0
    %829 = vmatpush1.msra.mxu0 0.0
    %830 = vmatprep.subr.mxu0 0.0
    %831 = vmatpush1.msra.mxu0 0.0
    %832 = vmatprep.subr.mxu0 0.0
    %833 = vmatpush1.msra.mxu0 0.0
    %834 = vmatprep.subr.mxu0 0.0
    %835 = vmatpush1.msra.mxu0 0.0
    %836 = vmatprep.subr.mxu0 0.0
    %837 = vmatpush1.msra.mxu0 0.0
    %838 = vmatprep.subr.mxu0 0.0
    %839 = vmatpush1.msra.mxu0 0.0
    %840 = vmatprep.subr.mxu0 0.0
    %841 = vmatpush1.msra.mxu0 0.0
    %842 = vmatprep.subr.mxu0 0.0
    %843 = vmatpush1.msra.mxu0 0.0
    %844 = vmatprep.subr.mxu0 0.0
    %845 = vmatpush1.msra.mxu0 0.0
    %846 = vmatprep.mubr.f32.mxu0 0.0
    %847 = vmatmul.mubr.f32.gmra.mrb[0].mxu0 %v780
    %v848 = vpop.f32.mrb[0].mxu0
    %v849 = vadd.f32 0.0, %v848
    %v850 = vpop.f32.mrb[0].mxu0
    %v851 = vadd.f32 0.0, %v850
    %852 = vdwg.mxu0
    %v853 = vadd.f32 %v777, %v849
    %v854 = vadd.f32 %v778, %v851
    %v855 = vtanh.pop %v853
    %v856 = vtanh.pop %v854
    %v857 = vxor.u32 %v853, 2147483648
    %v858 = vxor.u32 %v854, 2147483648
    %v859 = vmul.f32 %v857, 1.442695
    %v860 = vpow.pop %v859
    %v861 = vmul.f32 %v858, 1.442695
    %v862 = vpow.pop %v861
    %v863 = vadd.f32 %v860, 1.0
    %v864 = vadd.f32 %v862, 1.0
    %v865 = vrcp.pop %v863
    %v866 = vmul.f32 1.0, %v865
    %v867 = vrcp.pop %v864
    %v868 = vmul.f32 1.0, %v867
    %v869 = vsel %vm204, %v855, %v866
    %v870 = vsel %vm205, %v856, %v868
    %872 = vrot.lane.b32.xlu0 %v769, 64
    %v873 = vpop.permute.xlu0 %872
    %v875 = vmul.f32 %v869, %v873
    %v876 = vmul.f32 %v869, %v870
    %878 = vrot.lane.b32.xlu0 %v876, 64
    %v879 = vpop.permute.xlu0 %878
    %v881 = vadd.f32 %v875, %v879
    %v882 = vtanh.pop %v881
    %v883 = vmul.f32 %v870, %v882
    %885 = vrot.lane.b32.xlu0 %v883, 64
    %v886 = vpop.permute.xlu0 %885
    %v888 = vsel %vm168, %v886, %v764
    %890 = vrot.lane.b32.xlu0 %v881, 64
    %v891 = vpop.permute.xlu0 %890
    %v893 = vsel %vm168, %v891, %v769
    %v894 = vsel %vm168, %v886, 0.0
    %895 = vst.msk [vmem:[#allocation3 + $0x18] sm:$0xff] %vm234, %v894
    %896 = vst.msk [vmem:[#allocation3 + $0x20] sm:$0xff] %vm523, %v894
    %v897 = vld [vmem:[#allocation2 + $0x40] sm:$0xff]
    %v898 = vld [vmem:[#allocation2 + $0x48] sm:$0xff]
    %v899 = vld [vmem:[#allocation2 + $0x30] sm:$0xff]
    %v900 = vld [vmem:[#allocation2 + $0x38] sm:$0xff]
    %v901 = vsel %vm198, %v897, %v899
    %v902 = vsel %vm199, %v898, %v900
    %v904 = vsel %vm410, %v888, 0
    %906 = vmatprep.subr.mxu0 %v389
    %907 = vmatpush1.msra.mxu0 %v388
    %908 = vmatprep.subr.mxu0 %v391
    %909 = vmatpush1.msra.mxu0 %v390
    %910 = vmatprep.subr.mxu0 %v393
    %911 = vmatpush1.msra.mxu0 %v392
    %912 = vmatprep.subr.mxu0 %v395
    %913 = vmatpush1.msra.mxu0 %v394
    %914 = vmatprep.subr.mxu0 %v397
    %915 = vmatpush1.msra.mxu0 %v396
    %916 = vmatprep.subr.mxu0 %v399
    %917 = vmatpush1.msra.mxu0 %v398
    %918 = vmatprep.subr.mxu0 %v401
    %919 = vmatpush1.msra.mxu0 %v400
    %920 = vmatprep.subr.mxu0 %v403
    %921 = vmatpush1.msra.mxu0 %v402
    %922 = vmatprep.subr.mxu0 0.0
    %923 = vmatpush1.msra.mxu0 0.0
    %924 = vmatprep.subr.mxu0 0.0
    %925 = vmatpush1.msra.mxu0 0.0
    %926 = vmatprep.subr.mxu0 0.0
    %927 = vmatpush1.msra.mxu0 0.0
    %928 = vmatprep.subr.mxu0 0.0
    %929 = vmatpush1.msra.mxu0 0.0
    %930 = vmatprep.subr.mxu0 0.0
    %931 = vmatpush1.msra.mxu0 0.0
    %932 = vmatprep.subr.mxu0 0.0
    %933 = vmatpush1.msra.mxu0 0.0
    %934 = vmatprep.subr.mxu0 0.0
    %935 = vmatpush1.msra.mxu0 0.0
    %936 = vmatprep.subr.mxu0 0.0
    %937 = vmatpush1.msra.mxu0 0.0
    %938 = vmatprep.subr.mxu0 0.0
    %939 = vmatpush1.msra.mxu0 0.0
    %940 = vmatprep.subr.mxu0 0.0
    %941 = vmatpush1.msra.mxu0 0.0
    %942 = vmatprep.subr.mxu0 0.0
    %943 = vmatpush1.msra.mxu0 0.0
    %944 = vmatprep.subr.mxu0 0.0
    %945 = vmatpush1.msra.mxu0 0.0
    %946 = vmatprep.subr.mxu0 0.0
    %947 = vmatpush1.msra.mxu0 0.0
    %948 = vmatprep.subr.mxu0 0.0
    %949 = vmatpush1.msra.mxu0 0.0
    %950 = vmatprep.subr.mxu0 0.0
    %951 = vmatpush1.msra.mxu0 0.0
    %952 = vmatprep.subr.mxu0 0.0
    %953 = vmatpush1.msra.mxu0 0.0
    %954 = vmatprep.subr.mxu0 0.0
    %955 = vmatpush1.msra.mxu0 0.0
    %956 = vmatprep.subr.mxu0 0.0
    %957 = vmatpush1.msra.mxu0 0.0
    %958 = vmatprep.subr.mxu0 0.0
    %959 = vmatpush1.msra.mxu0 0.0
    %960 = vmatprep.subr.mxu0 0.0
    %961 = vmatpush1.msra.mxu0 0.0
    %962 = vmatprep.subr.mxu0 0.0
    %963 = vmatpush1.msra.mxu0 0.0
    %964 = vmatprep.subr.mxu0 0.0
    %965 = vmatpush1.msra.mxu0 0.0
    %966 = vmatprep.subr.mxu0 0.0
    %967 = vmatpush1.msra.mxu0 0.0
    %968 = vmatprep.subr.mxu0 0.0
    %969 = vmatpush1.msra.mxu0 0.0
    %970 = vmatprep.mubr.f32.mxu0 0.0
    %971 = vmatmul.mubr.f32.gmra.mrb[0].mxu0 %v904
    %v972 = vpop.f32.mrb[0].mxu0
    %v973 = vadd.f32 0.0, %v972
    %v974 = vpop.f32.mrb[0].mxu0
    %v975 = vadd.f32 0.0, %v974
    %976 = vdwg.mxu0
    %v977 = vadd.f32 %v901, %v973
    %v978 = vadd.f32 %v902, %v975
    %v979 = vtanh.pop %v977
    %v980 = vtanh.pop %v978
    %v981 = vxor.u32 %v977, 2147483648
    %v982 = vxor.u32 %v978, 2147483648
    %v983 = vmul.f32 %v981, 1.442695
    %v984 = vpow.pop %v983
    %v985 = vmul.f32 %v982, 1.442695
    %v986 = vpow.pop %v985
    %v987 = vadd.f32 %v984, 1.0
    %v988 = vadd.f32 %v986, 1.0
    %v989 = vrcp.pop %v987
    %v990 = vmul.f32 1.0, %v989
    %v991 = vrcp.pop %v988
    %v992 = vmul.f32 1.0, %v991
    %v993 = vsel %vm204, %v979, %v990
    %v994 = vsel %vm205, %v980, %v992
    %996 = vrot.lane.b32.xlu0 %v893, 64
    %v997 = vpop.permute.xlu0 %996
    %v999 = vmul.f32 %v993, %v997
    %v1000 = vmul.f32 %v993, %v994
    %1002 = vrot.lane.b32.xlu0 %v1000, 64
    %v1003 = vpop.permute.xlu0 %1002
    %v1005 = vadd.f32 %v999, %v1003
    %v1006 = vtanh.pop %v1005
    %v1007 = vmul.f32 %v994, %v1006
    %1009 = vrot.lane.b32.xlu0 %v1007, 64
    %v1010 = vpop.permute.xlu0 %1009
    %v1012 = vsel %vm169, %v1010, %v888
    %1014 = vrot.lane.b32.xlu0 %v1005, 64
    %v1015 = vpop.permute.xlu0 %1014
    %v1017 = vsel %vm169, %v1015, %v893
    %v1018 = vsel %vm169, %v1010, 0.0
    %1019 = vst.msk [vmem:[#allocation3 + $0x20] sm:$0xff] %vm234, %v1018
    %1020 = vst.msk [vmem:[#allocation3 + $0x18] sm:$0xff] %vm523, %v1018
    %v1021 = vld [vmem:[#allocation2 + $0x50] sm:$0xff]
    %v1022 = vld [vmem:[#allocation2 + $0x58] sm:$0xff]
    %v1023 = vld [vmem:[#allocation2 + $0x20] sm:$0xff]
    %v1024 = vld [vmem:[#allocation2 + $0x28] sm:$0xff]
    %v1025 = vsel %vm198, %v1021, %v1023
    %v1026 = vsel %vm199, %v1022, %v1024
    %v1028 = vsel %vm410, %v1012, 0
    %1030 = vmatprep.subr.mxu0 %v389
    %1031 = vmatpush1.msra.mxu0 %v388
    %1032 = vmatprep.subr.mxu0 %v391
    %1033 = vmatpush1.msra.mxu0 %v390
    %1034 = vmatprep.subr.mxu0 %v393
    %1035 = vmatpush1.msra.mxu0 %v392
    %1036 = vmatprep.subr.mxu0 %v395
    %1037 = vmatpush1.msra.mxu0 %v394
    %1038 = vmatprep.subr.mxu0 %v397
    %1039 = vmatpush1.msra.mxu0 %v396
    %1040 = vmatprep.subr.mxu0 %v399
    %1041 = vmatpush1.msra.mxu0 %v398
    %1042 = vmatprep.subr.mxu0 %v401
    %1043 = vmatpush1.msra.mxu0 %v400
    %1044 = vmatprep.subr.mxu0 %v403
    %1045 = vmatpush1.msra.mxu0 %v402
    %1046 = vmatprep.subr.mxu0 0.0
    %1047 = vmatpush1.msra.mxu0 0.0
    %1048 = vmatprep.subr.mxu0 0.0
    %1049 = vmatpush1.msra.mxu0 0.0
    %1050 = vmatprep.subr.mxu0 0.0
    %1051 = vmatpush1.msra.mxu0 0.0
    %1052 = vmatprep.subr.mxu0 0.0
    %1053 = vmatpush1.msra.mxu0 0.0
    %1054 = vmatprep.subr.mxu0 0.0
    %1055 = vmatpush1.msra.mxu0 0.0
    %1056 = vmatprep.subr.mxu0 0.0
    %1057 = vmatpush1.msra.mxu0 0.0
    %1058 = vmatprep.subr.mxu0 0.0
    %1059 = vmatpush1.msra.mxu0 0.0
    %1060 = vmatprep.subr.mxu0 0.0
    %1061 = vmatpush1.msra.mxu0 0.0
    %1062 = vmatprep.subr.mxu0 0.0
    %1063 = vmatpush1.msra.mxu0 0.0
    %1064 = vmatprep.subr.mxu0 0.0
    %1065 = vmatpush1.msra.mxu0 0.0
    %1066 = vmatprep.subr.mxu0 0.0
    %1067 = vmatpush1.msra.mxu0 0.0
    %1068 = vmatprep.subr.mxu0 0.0
    %1069 = vmatpush1.msra.mxu0 0.0
    %1070 = vmatprep.subr.mxu0 0.0
    %1071 = vmatpush1.msra.mxu0 0.0
    %1072 = vmatprep.subr.mxu0 0.0
    %1073 = vmatpush1.msra.mxu0 0.0
    %1074 = vmatprep.subr.mxu0 0.0
    %1075 = vmatpush1.msra.mxu0 0.0
    %1076 = vmatprep.subr.mxu0 0.0
    %1077 = vmatpush1.msra.mxu0 0.0
    %1078 = vmatprep.subr.mxu0 0.0
    %1079 = vmatpush1.msra.mxu0 0.0
    %1080 = vmatprep.subr.mxu0 0.0
    %1081 = vmatpush1.msra.mxu0 0.0
    %1082 = vmatprep.subr.mxu0 0.0
    %1083 = vmatpush1.msra.mxu0 0.0
    %1084 = vmatprep.subr.mxu0 0.0
    %1085 = vmatpush1.msra.mxu0 0.0
    %1086 = vmatprep.subr.mxu0 0.0
    %1087 = vmatpush1.msra.mxu0 0.0
    %1088 = vmatprep.subr.mxu0 0.0
    %1089 = vmatpush1.msra.mxu0 0.0
    %1090 = vmatprep.subr.mxu0 0.0
    %1091 = vmatpush1.msra.mxu0 0.0
    %1092 = vmatprep.subr.mxu0 0.0
    %1093 = vmatpush1.msra.mxu0 0.0
    %1094 = vmatprep.mubr.f32.mxu0 0.0
    %1095 = vmatmul.mubr.f32.gmra.mrb[0].mxu0 %v1028
    %v1096 = vpop.f32.mrb[0].mxu0
    %v1097 = vadd.f32 0.0, %v1096
    %v1098 = vpop.f32.mrb[0].mxu0
    %v1099 = vadd.f32 0.0, %v1098
    %1100 = vdwg.mxu0
    %v1101 = vadd.f32 %v1025, %v1097
    %v1102 = vadd.f32 %v1026, %v1099
    %v1103 = vtanh.pop %v1101
    %v1104 = vtanh.pop %v1102
    %v1105 = vxor.u32 %v1101, 2147483648
    %v1106 = vxor.u32 %v1102, 2147483648
    %v1107 = vmul.f32 %v1105, 1.442695
    %v1108 = vpow.pop %v1107
    %v1109 = vmul.f32 %v1106, 1.442695
    %v1110 = vpow.pop %v1109
    %v1111 = vadd.f32 %v1108, 1.0
    %v1112 = vadd.f32 %v1110, 1.0
    %v1113 = vrcp.pop %v1111
    %v1114 = vmul.f32 1.0, %v1113
    %v1115 = vrcp.pop %v1112
    %v1116 = vmul.f32 1.0, %v1115
    %v1117 = vsel %vm204, %v1103, %v1114
    %v1118 = vsel %vm205, %v1104, %v1116
    %1120 = vrot.lane.b32.xlu0 %v1017, 64
    %v1121 = vpop.permute.xlu0 %1120
    %v1123 = vmul.f32 %v1117, %v1121
    %v1124 = vmul.f32 %v1117, %v1118
    %1126 = vrot.lane.b32.xlu0 %v1124, 64
    %v1127 = vpop.permute.xlu0 %1126
    %v1129 = vadd.f32 %v1123, %v1127
    %v1130 = vtanh.pop %v1129
    %v1131 = vmul.f32 %v1118, %v1130
    %1133 = vrot.lane.b32.xlu0 %v1131, 64
    %v1134 = vpop.permute.xlu0 %1133
    %v1136 = vsel %vm170, %v1134, %v1012
    %1138 = vrot.lane.b32.xlu0 %v1129, 64
    %v1139 = vpop.permute.xlu0 %1138
    %v1141 = vsel %vm170, %v1139, %v1017
    %v1142 = vsel %vm170, %v1134, 0.0
    %1143 = vst.msk [vmem:[#allocation3 + $0x28] sm:$0xff] %vm234, %v1142
    %1144 = vst.msk [vmem:[#allocation3 + $0x10] sm:$0xff] %vm523, %v1142
    %v1145 = vld [vmem:[#allocation2 + $0x60] sm:$0xff]
    %v1146 = vld [vmem:[#allocation2 + $0x68] sm:$0xff]
    %v1147 = vld [vmem:[#allocation2 + $0x10] sm:$0xff]
    %v1148 = vld [vmem:[#allocation2 + $0x18] sm:$0xff]
    %v1149 = vsel %vm198, %v1145, %v1147
    %v1150 = vsel %vm199, %v1146, %v1148
    %v1152 = vsel %vm410, %v1136, 0
    %1154 = vmatprep.subr.mxu0 %v389
    %1155 = vmatpush1.msra.mxu0 %v388
    %1156 = vmatprep.subr.mxu0 %v391
    %1157 = vmatpush1.msra.mxu0 %v390
    %1158 = vmatprep.subr.mxu0 %v393
    %1159 = vmatpush1.msra.mxu0 %v392
    %1160 = vmatprep.subr.mxu0 %v395
    %1161 = vmatpush1.msra.mxu0 %v394
    %1162 = vmatprep.subr.mxu0 %v397
    %1163 = vmatpush1.msra.mxu0 %v396
    %1164 = vmatprep.subr.mxu0 %v399
    %1165 = vmatpush1.msra.mxu0 %v398
    %1166 = vmatprep.subr.mxu0 %v401
    %1167 = vmatpush1.msra.mxu0 %v400
    %1168 = vmatprep.subr.mxu0 %v403
    %1169 = vmatpush1.msra.mxu0 %v402
    %1170 = vmatprep.subr.mxu0 0.0
    %1171 = vmatpush1.msra.mxu0 0.0
    %1172 = vmatprep.subr.mxu0 0.0
    %1173 = vmatpush1.msra.mxu0 0.0
    %1174 = vmatprep.subr.mxu0 0.0
    %1175 = vmatpush1.msra.mxu0 0.0
    %1176 = vmatprep.subr.mxu0 0.0
    %1177 = vmatpush1.msra.mxu0 0.0
    %1178 = vmatprep.subr.mxu0 0.0
    %1179 = vmatpush1.msra.mxu0 0.0
    %1180 = vmatprep.subr.mxu0 0.0
    %1181 = vmatpush1.msra.mxu0 0.0
    %1182 = vmatprep.subr.mxu0 0.0
    %1183 = vmatpush1.msra.mxu0 0.0
    %1184 = vmatprep.subr.mxu0 0.0
    %1185 = vmatpush1.msra.mxu0 0.0
    %1186 = vmatprep.subr.mxu0 0.0
    %1187 = vmatpush1.msra.mxu0 0.0
    %1188 = vmatprep.subr.mxu0 0.0
    %1189 = vmatpush1.msra.mxu0 0.0
    %1190 = vmatprep.subr.mxu0 0.0
    %1191 = vmatpush1.msra.mxu0 0.0
    %1192 = vmatprep.subr.mxu0 0.0
    %1193 = vmatpush1.msra.mxu0 0.0
    %1194 = vmatprep.subr.mxu0 0.0
    %1195 = vmatpush1.msra.mxu0 0.0
    %1196 = vmatprep.subr.mxu0 0.0
    %1197 = vmatpush1.msra.mxu0 0.0
    %1198 = vmatprep.subr.mxu0 0.0
    %1199 = vmatpush1.msra.mxu0 0.0
    %1200 = vmatprep.subr.mxu0 0.0
    %1201 = vmatpush1.msra.mxu0 0.0
    %1202 = vmatprep.subr.mxu0 0.0
    %1203 = vmatpush1.msra.mxu0 0.0
    %1204 = vmatprep.subr.mxu0 0.0
    %1205 = vmatpush1.msra.mxu0 0.0
    %1206 = vmatprep.subr.mxu0 0.0
    %1207 = vmatpush1.msra.mxu0 0.0
    %1208 = vmatprep.subr.mxu0 0.0
    %1209 = vmatpush1.msra.mxu0 0.0
    %1210 = vmatprep.subr.mxu0 0.0
    %1211 = vmatpush1.msra.mxu0 0.0
    %1212 = vmatprep.subr.mxu0 0.0
    %1213 = vmatpush1.msra.mxu0 0.0
    %1214 = vmatprep.subr.mxu0 0.0
    %1215 = vmatpush1.msra.mxu0 0.0
    %1216 = vmatprep.subr.mxu0 0.0
    %1217 = vmatpush1.msra.mxu0 0.0
    %1218 = vmatprep.mubr.f32.mxu0 0.0
    %1219 = vmatmul.mubr.f32.gmra.mrb[0].mxu0 %v1152
    %v1220 = vpop.f32.mrb[0].mxu0
    %v1221 = vadd.f32 0.0, %v1220
    %v1222 = vpop.f32.mrb[0].mxu0
    %v1223 = vadd.f32 0.0, %v1222
    %1224 = vdwg.mxu0
    %v1225 = vadd.f32 %v1149, %v1221
    %v1226 = vadd.f32 %v1150, %v1223
    %v1227 = vtanh.pop %v1225
    %v1228 = vtanh.pop %v1226
    %v1229 = vxor.u32 %v1225, 2147483648
    %v1230 = vxor.u32 %v1226, 2147483648
    %v1231 = vmul.f32 %v1229, 1.442695
    %v1232 = vpow.pop %v1231
    %v1233 = vmul.f32 %v1230, 1.442695
    %v1234 = vpow.pop %v1233
    %v1235 = vadd.f32 %v1232, 1.0
    %v1236 = vadd.f32 %v1234, 1.0
    %v1237 = vrcp.pop %v1235
    %v1238 = vmul.f32 1.0, %v1237
    %v1239 = vrcp.pop %v1236
    %v1240 = vmul.f32 1.0, %v1239
    %v1241 = vsel %vm204, %v1227, %v1238
    %v1242 = vsel %vm205, %v1228, %v1240
    %1244 = vrot.lane.b32.xlu0 %v1141, 64
    %v1245 = vpop.permute.xlu0 %1244
    %v1247 = vmul.f32 %v1241, %v1245
    %v1248 = vmul.f32 %v1241, %v1242
    %1250 = vrot.lane.b32.xlu0 %v1248, 64
    %v1251 = vpop.permute.xlu0 %1250
    %v1253 = vadd.f32 %v1247, %v1251
    %v1254 = vtanh.pop %v1253
    %v1255 = vmul.f32 %v1242, %v1254
    %1257 = vrot.lane.b32.xlu0 %v1255, 64
    %v1258 = vpop.permute.xlu0 %1257
    %v1260 = vsel %vm171, %v1258, %v1136
    %1262 = vrot.lane.b32.xlu0 %v1253, 64
    %v1263 = vpop.permute.xlu0 %1262
    %v1265 = vsel %vm171, %v1263, %v1141
    %v1266 = vsel %vm171, %v1258, 0.0
    %1267 = vst.msk [vmem:[#allocation3 + $0x30] sm:$0xff] %vm234, %v1266
    %1268 = vst.msk [vmem:[#allocation3 + $0x8] sm:$0xff] %vm523, %v1266
    %v1269 = vld [vmem:[#allocation2 + $0x70] sm:$0xff]
    %v1270 = vld [vmem:[#allocation2 + $0x78] sm:$0xff]
    %v1271 = vld [vmem:[#allocation2] sm:$0xff]
    %v1272 = vld [vmem:[#allocation2 + $0x8] sm:$0xff]
    %v1273 = vsel %vm198, %v1269, %v1271
    %v1274 = vsel %vm199, %v1270, %v1272
    %v1276 = vsel %vm410, %v1260, 0
    %1278 = vmatprep.subr.mxu0 %v389
    %1279 = vmatpush1.msra.mxu0 %v388
    %1280 = vmatprep.subr.mxu0 %v391
    %1281 = vmatpush1.msra.mxu0 %v390
    %1282 = vmatprep.subr.mxu0 %v393
    %1283 = vmatpush1.msra.mxu0 %v392
    %1284 = vmatprep.subr.mxu0 %v395
    %1285 = vmatpush1.msra.mxu0 %v394
    %1286 = vmatprep.subr.mxu0 %v397
    %1287 = vmatpush1.msra.mxu0 %v396
    %1288 = vmatprep.subr.mxu0 %v399
    %1289 = vmatpush1.msra.mxu0 %v398
    %1290 = vmatprep.subr.mxu0 %v401
    %1291 = vmatpush1.msra.mxu0 %v400
    %1292 = vmatprep.subr.mxu0 %v403
    %1293 = vmatpush1.msra.mxu0 %v402
    %1294 = vmatprep.subr.mxu0 0.0
    %1295 = vmatpush1.msra.mxu0 0.0
    %1296 = vmatprep.subr.mxu0 0.0
    %1297 = vmatpush1.msra.mxu0 0.0
    %1298 = vmatprep.subr.mxu0 0.0
    %1299 = vmatpush1.msra.mxu0 0.0
    %1300 = vmatprep.subr.mxu0 0.0
    %1301 = vmatpush1.msra.mxu0 0.0
    %1302 = vmatprep.subr.mxu0 0.0
    %1303 = vmatpush1.msra.mxu0 0.0
    %1304 = vmatprep.subr.mxu0 0.0
    %1305 = vmatpush1.msra.mxu0 0.0
    %1306 = vmatprep.subr.mxu0 0.0
    %1307 = vmatpush1.msra.mxu0 0.0
    %1308 = vmatprep.subr.mxu0 0.0
    %1309 = vmatpush1.msra.mxu0 0.0
    %1310 = vmatprep.subr.mxu0 0.0
    %1311 = vmatpush1.msra.mxu0 0.0
    %1312 = vmatprep.subr.mxu0 0.0
    %1313 = vmatpush1.msra.mxu0 0.0
    %1314 = vmatprep.subr.mxu0 0.0
    %1315 = vmatpush1.msra.mxu0 0.0
    %1316 = vmatprep.subr.mxu0 0.0
    %1317 = vmatpush1.msra.mxu0 0.0
    %1318 = vmatprep.subr.mxu0 0.0
    %1319 = vmatpush1.msra.mxu0 0.0
    %1320 = vmatprep.subr.mxu0 0.0
    %1321 = vmatpush1.msra.mxu0 0.0
    %1322 = vmatprep.subr.mxu0 0.0
    %1323 = vmatpush1.msra.mxu0 0.0
    %1324 = vmatprep.subr.mxu0 0.0
    %1325 = vmatpush1.msra.mxu0 0.0
    %1326 = vmatprep.subr.mxu0 0.0
    %1327 = vmatpush1.msra.mxu0 0.0
    %1328 = vmatprep.subr.mxu0 0.0
    %1329 = vmatpush1.msra.mxu0 0.0
    %1330 = vmatprep.subr.mxu0 0.0
    %1331 = vmatpush1.msra.mxu0 0.0
    %1332 = vmatprep.subr.mxu0 0.0
    %1333 = vmatpush1.msra.mxu0 0.0
    %1334 = vmatprep.subr.mxu0 0.0
    %1335 = vmatpush1.msra.mxu0 0.0
    %1336 = vmatprep.subr.mxu0 0.0
    %1337 = vmatpush1.msra.mxu0 0.0
    %1338 = vmatprep.subr.mxu0 0.0
    %1339 = vmatpush1.msra.mxu0 0.0
    %1340 = vmatprep.subr.mxu0 0.0
    %1341 = vmatpush1.msra.mxu0 0.0
    %1342 = vmatprep.mubr.f32.mxu0 0.0
    %1343 = vmatmul.mubr.f32.gmra.mrb[0].mxu0 %v1276
    %v1344 = vpop.f32.mrb[0].mxu0
    %v1345 = vadd.f32 0.0, %v1344
    %v1346 = vpop.f32.mrb[0].mxu0
    %v1347 = vadd.f32 0.0, %v1346
    %1348 = vdwg.mxu0
    %v1349 = vadd.f32 %v1273, %v1345
    %v1350 = vadd.f32 %v1274, %v1347
    %v1351 = vtanh.pop %v1349
    %v1352 = vtanh.pop %v1350
    %v1353 = vxor.u32 %v1349, 2147483648
    %v1354 = vxor.u32 %v1350, 2147483648
    %v1355 = vmul.f32 %v1353, 1.442695
    %v1356 = vpow.pop %v1355
    %v1357 = vmul.f32 %v1354, 1.442695
    %v1358 = vpow.pop %v1357
    %v1359 = vadd.f32 %v1356, 1.0
    %v1360 = vadd.f32 %v1358, 1.0
    %v1361 = vrcp.pop %v1359
    %v1362 = vmul.f32 1.0, %v1361
    %v1363 = vrcp.pop %v1360
    %v1364 = vmul.f32 1.0, %v1363
    %v1365 = vsel %vm204, %v1351, %v1362
    %v1366 = vsel %vm205, %v1352, %v1364
    %1368 = vrot.lane.b32.xlu0 %v1265, 64
    %v1369 = vpop.permute.xlu0 %1368
    %v1371 = vmul.f32 %v1365, %v1369
    %v1372 = vmul.f32 %v1365, %v1366
    %1374 = vrot.lane.b32.xlu0 %v1372, 64
    %v1375 = vpop.permute.xlu0 %1374
    %v1377 = vadd.f32 %v1371, %v1375
    %v1378 = vtanh.pop %v1377
    %v1379 = vmul.f32 %v1366, %v1378
    %1381 = vrot.lane.b32.xlu0 %v1379, 64
    %v1382 = vpop.permute.xlu0 %1381
    %v1384 = vsel %vm172, %v1382, 0.0
    %1385 = vst.msk [vmem:[#allocation3 + $0x38] sm:$0xff] %vm234, %v1384
    %1386 = vst.msk [vmem:[#allocation3] sm:$0xff] %vm523, %v1384
    %v1387 = vld [vmem:[#allocation3] sm:$0xff]
    %v1388 = vld [vmem:[#allocation3 + $0x8] sm:$0xff]
    %v1389 = vld [vmem:[#allocation3 + $0x10] sm:$0xff]
    %v1390 = vld [vmem:[#allocation3 + $0x18] sm:$0xff]
    %v1391 = vld [vmem:[#allocation3 + $0x20] sm:$0xff]
    %v1392 = vld [vmem:[#allocation3 + $0x28] sm:$0xff]
    %v1393 = vld [vmem:[#allocation3 + $0x30] sm:$0xff]
    %v1394 = vld [vmem:[#allocation3 + $0x38] sm:$0xff]
    %v1395 = vld [vmem:[%s5] sm:$0xff]
    %v1396 = vld [vmem:[%s5 + $0x8] sm:$0xff]
    %v1397 = vld [vmem:[%s5 + $0x10] sm:$0xff]
    %v1398 = vld [vmem:[%s5 + $0x18] sm:$0xff]
    %v1399 = vld [vmem:[%s5 + $0x20] sm:$0xff]
    %v1400 = vld [vmem:[%s5 + $0x28] sm:$0xff]
    %v1401 = vld [vmem:[%s5 + $0x30] sm:$0xff]
    %v1402 = vld [vmem:[%s5 + $0x38] sm:$0xff]
    %v1403 = vld [vmem:[%s5 + $0x40] sm:$0xff]
    %v1404 = vld [vmem:[%s5 + $0x48] sm:$0xff]
    %v1405 = vld [vmem:[%s5 + $0x50] sm:$0xff]
    %v1406 = vld [vmem:[%s5 + $0x58] sm:$0xff]
    %v1407 = vld [vmem:[%s5 + $0x60] sm:$0xff]
    %v1408 = vld [vmem:[%s5 + $0x68] sm:$0xff]
    %v1409 = vld [vmem:[%s5 + $0x70] sm:$0xff]
    %v1410 = vld [vmem:[%s5 + $0x78] sm:$0xff]
    %v1411 = vld [vmem:[%s7] sm:$0x3]
    %v1413 = vlaneseq
    %v1414 = vshrl.u32 %v1413, 7
    %v1415 = vsub.s32 0, %v1414
    %v1416 = vrot.slane %v1411, %v1415
    %v1417 = vlaneseq
    %v1418 = vshrl.u32 %v1417, 7
    %v1419 = vsub.s32 1, %v1418
    %v1420 = vrot.slane %v1411, %v1419
    %v1424 = vsel %vm410, %v1387, 0
    %v1427 = vsel %vm410, %v1388, 0
    %v1430 = vsel %vm410, %v1389, 0
    %v1433 = vsel %vm410, %v1390, 0
    %v1436 = vsel %vm410, %v1391, 0
    %v1439 = vsel %vm410, %v1392, 0
    %v1442 = vsel %vm410, %v1393, 0
    %v1445 = vsel %vm410, %v1394, 0
    %1447 = vmatprep.subr.mxu0 %v1396
    %1448 = vmatpush1.msra.mxu0 %v1395
    %1449 = vmatprep.subr.mxu0 %v1398
    %1450 = vmatpush1.msra.mxu0 %v1397
    %1451 = vmatprep.subr.mxu0 %v1400
    %1452 = vmatpush1.msra.mxu0 %v1399
    %1453 = vmatprep.subr.mxu0 %v1402
    %1454 = vmatpush1.msra.mxu0 %v1401
    %1455 = vmatprep.subr.mxu0 %v1404
    %1456 = vmatpush1.msra.mxu0 %v1403
    %1457 = vmatprep.subr.mxu0 %v1406
    %1458 = vmatpush1.msra.mxu0 %v1405
    %1459 = vmatprep.subr.mxu0 %v1408
    %1460 = vmatpush1.msra.mxu0 %v1407
    %1461 = vmatprep.subr.mxu0 %v1410
    %1462 = vmatpush1.msra.mxu0 %v1409
    %1463 = vmatprep.subr.mxu0 0.0
    %1464 = vmatpush1.msra.mxu0 0.0
    %1465 = vmatprep.subr.mxu0 0.0
    %1466 = vmatpush1.msra.mxu0 0.0
    %1467 = vmatprep.subr.mxu0 0.0
    %1468 = vmatpush1.msra.mxu0 0.0
    %1469 = vmatprep.subr.mxu0 0.0
    %1470 = vmatpush1.msra.mxu0 0.0
    %1471 = vmatprep.subr.mxu0 0.0
    %1472 = vmatpush1.msra.mxu0 0.0
    %1473 = vmatprep.subr.mxu0 0.0
    %1474 = vmatpush1.msra.mxu0 0.0
    %1475 = vmatprep.subr.mxu0 0.0
    %1476 = vmatpush1.msra.mxu0 0.0
    %1477 = vmatprep.subr.mxu0 0.0
    %1478 = vmatpush1.msra.mxu0 0.0
    %1479 = vmatprep.subr.mxu0 0.0
    %1480 = vmatpush1.msra.mxu0 0.0
    %1481 = vmatprep.subr.mxu0 0.0
    %1482 = vmatpush1.msra.mxu0 0.0
    %1483 = vmatprep.subr.mxu0 0.0
    %1484 = vmatpush1.msra.mxu0 0.0
    %1485 = vmatprep.subr.mxu0 0.0
    %1486 = vmatpush1.msra.mxu0 0.0
    %1487 = vmatprep.subr.mxu0 0.0
    %1488 = vmatpush1.msra.mxu0 0.0
    %1489 = vmatprep.subr.mxu0 0.0
    %1490 = vmatpush1.msra.mxu0 0.0
    %1491 = vmatprep.subr.mxu0 0.0
    %1492 = vmatpush1.msra.mxu0 0.0
    %1493 = vmatprep.subr.mxu0 0.0
    %1494 = vmatpush1.msra.mxu0 0.0
    %1495 = vmatprep.subr.mxu0 0.0
    %1496 = vmatpush1.msra.mxu0 0.0
    %1497 = vmatprep.subr.mxu0 0.0
    %1498 = vmatpush1.msra.mxu0 0.0
    %1499 = vmatprep.subr.mxu0 0.0
    %1500 = vmatpush1.msra.mxu0 0.0
    %1501 = vmatprep.subr.mxu0 0.0
    %1502 = vmatpush1.msra.mxu0 0.0
    %1503 = vmatprep.subr.mxu0 0.0
    %1504 = vmatpush1.msra.mxu0 0.0
    %1505 = vmatprep.subr.mxu0 0.0
    %1506 = vmatpush1.msra.mxu0 0.0
    %1507 = vmatprep.subr.mxu0 0.0
    %1508 = vmatpush1.msra.mxu0 0.0
    %1509 = vmatprep.subr.mxu0 0.0
    %1510 = vmatpush1.msra.mxu0 0.0
    %1511 = vmatprep.mubr.f32.mxu0 0.0
    %1512 = vmatmul.mubr.f32.gmra.mrb[0].mxu0 %v1424
    %v1513 = vpop.f32.mrb[0].mxu0
    %v1514 = vadd.f32 %v1416, %v1513
    %v1515 = vpop.f32.mrb[0].mxu0
    %v1516 = vadd.f32 %v1420, %v1515
    %1517 = vmatprep.mubr.f32.mxu0 0.0
    %1518 = vmatmul.mubr.f32.gmra.mrb[0].mxu0 %v1427
    %v1519 = vpop.f32.mrb[0].mxu0
    %v1520 = vadd.f32 %v1416, %v1519
    %v1521 = vpop.f32.mrb[0].mxu0
    %v1522 = vadd.f32 %v1420, %v1521
    %1523 = vmatprep.mubr.f32.mxu0 0.0
    %1524 = vmatmul.mubr.f32.gmra.mrb[0].mxu0 %v1430
    %v1525 = vpop.f32.mrb[0].mxu0
    %v1526 = vadd.f32 %v1416, %v1525
    %v1527 = vpop.f32.mrb[0].mxu0
    %v1528 = vadd.f32 %v1420, %v1527
    %1529 = vmatprep.mubr.f32.mxu0 0.0
    %1530 = vmatmul.mubr.f32.gmra.mrb[0].mxu0 %v1433
    %v1531 = vpop.f32.mrb[0].mxu0
    %v1532 = vadd.f32 %v1416, %v1531
    %v1533 = vpop.f32.mrb[0].mxu0
    %v1534 = vadd.f32 %v1420, %v1533
    %1535 = vmatprep.mubr.f32.mxu0 0.0
    %1536 = vmatmul.mubr.f32.gmra.mrb[0].mxu0 %v1436
    %v1537 = vpop.f32.mrb[0].mxu0
    %v1538 = vadd.f32 %v1416, %v1537
    %v1539 = vpop.f32.mrb[0].mxu0
    %v1540 = vadd.f32 %v1420, %v1539
    %1541 = vmatprep.mubr.f32.mxu0 0.0
    %1542 = vmatmul.mubr.f32.gmra.mrb[0].mxu0 %v1439
    %v1543 = vpop.f32.mrb[0].mxu0
    %v1544 = vadd.f32 %v1416, %v1543
    %v1545 = vpop.f32.mrb[0].mxu0
    %v1546 = vadd.f32 %v1420, %v1545
    %1547 = vmatprep.mubr.f32.mxu0 0.0
    %1548 = vmatmul.mubr.f32.gmra.mrb[0].mxu0 %v1442
    %v1549 = vpop.f32.mrb[0].mxu0
    %v1550 = vadd.f32 %v1416, %v1549
    %v1551 = vpop.f32.mrb[0].mxu0
    %v1552 = vadd.f32 %v1420, %v1551
    %1553 = vmatprep.mubr.f32.mxu0 0.0
    %1554 = vmatmul.mubr.f32.gmra.mrb[0].mxu0 %v1445
    %v1555 = vpop.f32.mrb[0].mxu0
    %v1556 = vadd.f32 %v1416, %v1555
    %v1557 = vpop.f32.mrb[0].mxu0
    %v1558 = vadd.f32 %v1420, %v1557
    %1559 = vdwg.mxu0
    %1560 = vst [vmem:[#allocation2] sm:$0xff] %v1514
    %1561 = vst [vmem:[#allocation2 + $0x8] sm:$0xff] %v1516
    %1562 = vst [vmem:[#allocation2 + $0x10] sm:$0xff] %v1520
    %1563 = vst [vmem:[#allocation2 + $0x18] sm:$0xff] %v1522
    %1564 = vst [vmem:[#allocation2 + $0x20] sm:$0xff] %v1526
    %1565 = vst [vmem:[#allocation2 + $0x28] sm:$0xff] %v1528
    %1566 = vst [vmem:[#allocation2 + $0x30] sm:$0xff] %v1532
    %1567 = vst [vmem:[#allocation2 + $0x38] sm:$0xff] %v1534
    %1568 = vst [vmem:[#allocation2 + $0x40] sm:$0xff] %v1538
    %1569 = vst [vmem:[#allocation2 + $0x48] sm:$0xff] %v1540
    %1570 = vst [vmem:[#allocation2 + $0x50] sm:$0xff] %v1544
    %1571 = vst [vmem:[#allocation2 + $0x58] sm:$0xff] %v1546
    %1572 = vst [vmem:[#allocation2 + $0x60] sm:$0xff] %v1550
    %1573 = vst [vmem:[#allocation2 + $0x68] sm:$0xff] %v1552
    %1574 = vst [vmem:[#allocation2 + $0x70] sm:$0xff] %v1556
    %1575 = vst [vmem:[#allocation2 + $0x78] sm:$0xff] %v1558
    %v1576 = vld [vmem:[#allocation7] sm:$0xff]
    %v1577 = vld [vmem:[#allocation7 + $0x8] sm:$0xff]
    %v1578 = vld [vmem:[#allocation7 + $0x10] sm:$0xff]
    %v1579 = vld [vmem:[#allocation7 + $0x18] sm:$0xff]
    %v1580 = vld [vmem:[#allocation7 + $0x20] sm:$0xff]
    %v1581 = vld [vmem:[#allocation7 + $0x28] sm:$0xff]
    %v1582 = vld [vmem:[#allocation7 + $0x30] sm:$0xff]
    %v1583 = vld [vmem:[#allocation7 + $0x38] sm:$0xff]
    %v1584 = vld [vmem:[#allocation7 + $0x40] sm:$0xff]
    %v1585 = vld [vmem:[#allocation7 + $0x48] sm:$0xff]
    %v1586 = vld [vmem:[#allocation7 + $0x50] sm:$0xff]
    %v1587 = vld [vmem:[#allocation7 + $0x58] sm:$0xff]
    %v1588 = vld [vmem:[#allocation7 + $0x60] sm:$0xff]
    %v1589 = vld [vmem:[#allocation7 + $0x68] sm:$0xff]
    %v1590 = vld [vmem:[#allocation7 + $0x70] sm:$0xff]
    %v1591 = vld [vmem:[#allocation7 + $0x78] sm:$0xff]
    %v1592 = vld [vmem:[#allocation2] sm:$0xff]
    %v1593 = vld [vmem:[#allocation2 + $0x8] sm:$0xff]
    %v1594 = vld [vmem:[#allocation2 + $0x70] sm:$0xff]
    %v1595 = vld [vmem:[#allocation2 + $0x78] sm:$0xff]
    %v1596 = vsel %vm198, %v1592, %v1594
    %v1597 = vsel %vm199, %v1593, %v1595
    %1598 = vmatprep.subr.mxu0 %v1577
    %1599 = vmatpush1.msra.mxu0 %v1576
    %1600 = vmatprep.subr.mxu0 %v1579
    %1601 = vmatpush1.msra.mxu0 %v1578
    %1602 = vmatprep.subr.mxu0 %v1581
    %1603 = vmatpush1.msra.mxu0 %v1580
    %1604 = vmatprep.subr.mxu0 %v1583
    %1605 = vmatpush1.msra.mxu0 %v1582
    %1606 = vmatprep.subr.mxu0 %v1585
    %1607 = vmatpush1.msra.mxu0 %v1584
    %1608 = vmatprep.subr.mxu0 %v1587
    %1609 = vmatpush1.msra.mxu0 %v1586
    %1610 = vmatprep.subr.mxu0 %v1589
    %1611 = vmatpush1.msra.mxu0 %v1588
    %1612 = vmatprep.subr.mxu0 %v1591
    %1613 = vmatpush1.msra.mxu0 %v1590
    %1614 = vmatprep.subr.mxu0 0.0
    %1615 = vmatpush1.msra.mxu0 0.0
    %1616 = vmatprep.subr.mxu0 0.0
    %1617 = vmatpush1.msra.mxu0 0.0
    %1618 = vmatprep.subr.mxu0 0.0
    %1619 = vmatpush1.msra.mxu0 0.0
    %1620 = vmatprep.subr.mxu0 0.0
    %1621 = vmatpush1.msra.mxu0 0.0
    %1622 = vmatprep.subr.mxu0 0.0
    %1623 = vmatpush1.msra.mxu0 0.0
    %1624 = vmatprep.subr.mxu0 0.0
    %1625 = vmatpush1.msra.mxu0 0.0
    %1626 = vmatprep.subr.mxu0 0.0
    %1627 = vmatpush1.msra.mxu0 0.0
    %1628 = vmatprep.subr.mxu0 0.0
    %1629 = vmatpush1.msra.mxu0 0.0
    %1630 = vmatprep.subr.mxu0 0.0
    %1631 = vmatpush1.msra.mxu0 0.0
    %1632 = vmatprep.subr.mxu0 0.0
    %1633 = vmatpush1.msra.mxu0 0.0
    %1634 = vmatprep.subr.mxu0 0.0
    %1635 = vmatpush1.msra.mxu0 0.0
    %1636 = vmatprep.subr.mxu0 0.0
    %1637 = vmatpush1.msra.mxu0 0.0
    %1638 = vmatprep.subr.mxu0 0.0
    %1639 = vmatpush1.msra.mxu0 0.0
    %1640 = vmatprep.subr.mxu0 0.0
    %1641 = vmatpush1.msra.mxu0 0.0
    %1642 = vmatprep.subr.mxu0 0.0
    %1643 = vmatpush1.msra.mxu0 0.0
    %1644 = vmatprep.subr.mxu0 0.0
    %1645 = vmatpush1.msra.mxu0 0.0
    %1646 = vmatprep.subr.mxu0 0.0
    %1647 = vmatpush1.msra.mxu0 0.0
    %1648 = vmatprep.subr.mxu0 0.0
    %1649 = vmatpush1.msra.mxu0 0.0
    %1650 = vmatprep.subr.mxu0 0.0
    %1651 = vmatpush1.msra.mxu0 0.0
    %1652 = vmatprep.subr.mxu0 0.0
    %1653 = vmatpush1.msra.mxu0 0.0
    %1654 = vmatprep.subr.mxu0 0.0
    %1655 = vmatpush1.msra.mxu0 0.0
    %1656 = vmatprep.subr.mxu0 0.0
    %1657 = vmatpush1.msra.mxu0 0.0
    %1658 = vmatprep.subr.mxu0 0.0
    %1659 = vmatpush1.msra.mxu0 0.0
    %1660 = vmatprep.subr.mxu0 0.0
    %1661 = vmatpush1.msra.mxu0 0.0
    %1662 = vmatprep.mubr.f32.mxu0 0.0
    %1663 = vmatmul.mubr.f32.gmra.mrb[0].mxu0 %v412
    %v1664 = vpop.f32.mrb[0].mxu0
    %v1665 = vadd.f32 0.0, %v1664
    %v1666 = vpop.f32.mrb[0].mxu0
    %v1667 = vadd.f32 0.0, %v1666
    %1668 = vdwg.mxu0
    %v1669 = vadd.f32 %v1596, %v1665
    %v1670 = vadd.f32 %v1597, %v1667
    %v1671 = vtanh.pop %v1669
    %v1672 = vtanh.pop %v1670
    %v1673 = vxor.u32 %v1669, 2147483648
    %v1674 = vxor.u32 %v1670, 2147483648
    %v1675 = vmul.f32 %v1673, 1.442695
    %v1676 = vpow.pop %v1675
    %v1677 = vmul.f32 %v1674, 1.442695
    %v1678 = vpow.pop %v1677
    %v1679 = vadd.f32 %v1676, 1.0
    %v1680 = vadd.f32 %v1678, 1.0
    %v1681 = vrcp.pop %v1679
    %v1682 = vmul.f32 1.0, %v1681
    %v1683 = vrcp.pop %v1680
    %v1684 = vmul.f32 1.0, %v1683
    %v1685 = vsel %vm204, %v1671, %v1682
    %v1686 = vsel %vm205, %v1672, %v1684
    %v1687 = vmul.f32 %v1685, 0.0
    %v1688 = vmul.f32 %v1685, %v1686
    %1690 = vrot.lane.b32.xlu0 %v1688, 64
    %v1691 = vpop.permute.xlu0 %1690
    %v1693 = vadd.f32 %v1687, %v1691
    %v1694 = vtanh.pop %v1693
    %v1695 = vmul.f32 %v1686, %v1694
    %1697 = vrot.lane.b32.xlu0 %v1695, 64
    %v1698 = vpop.permute.xlu0 %1697
    %v1700 = vsel %vm165, %v1698, 0.0
    %1702 = vrot.lane.b32.xlu0 %v1693, 64
    %v1703 = vpop.permute.xlu0 %1702
    %v1705 = vsel %vm165, %v1703, 0.0
    %1706 = vst.msk [vmem:[#allocation3] sm:$0xff] %vm234, %v1700
    %1707 = vst.msk [vmem:[#allocation3 + $0x38] sm:$0xff] %vm523, %v1700
    %v1708 = vld [vmem:[#allocation2 + $0x10] sm:$0xff]
    %v1709 = vld [vmem:[#allocation2 + $0x18] sm:$0xff]
    %v1710 = vld [vmem:[#allocation2 + $0x60] sm:$0xff]
    %v1711 = vld [vmem:[#allocation2 + $0x68] sm:$0xff]
    %v1712 = vsel %vm198, %v1708, %v1710
    %v1713 = vsel %vm199, %v1709, %v1711
    %v1715 = vsel %vm410, %v1700, 0
    %1717 = vmatprep.subr.mxu0 %v1577
    %1718 = vmatpush1.msra.mxu0 %v1576
    %1719 = vmatprep.subr.mxu0 %v1579
    %1720 = vmatpush1.msra.mxu0 %v1578
    %1721 = vmatprep.subr.mxu0 %v1581
    %1722 = vmatpush1.msra.mxu0 %v1580
    %1723 = vmatprep.subr.mxu0 %v1583
    %1724 = vmatpush1.msra.mxu0 %v1582
    %1725 = vmatprep.subr.mxu0 %v1585
    %1726 = vmatpush1.msra.mxu0 %v1584
    %1727 = vmatprep.subr.mxu0 %v1587
    %1728 = vmatpush1.msra.mxu0 %v1586
    %1729 = vmatprep.subr.mxu0 %v1589
    %1730 = vmatpush1.msra.mxu0 %v1588
    %1731 = vmatprep.subr.mxu0 %v1591
    %1732 = vmatpush1.msra.mxu0 %v1590
    %1733 = vmatprep.subr.mxu0 0.0
    %1734 = vmatpush1.msra.mxu0 0.0
    %1735 = vmatprep.subr.mxu0 0.0
    %1736 = vmatpush1.msra.mxu0 0.0
    %1737 = vmatprep.subr.mxu0 0.0
    %1738 = vmatpush1.msra.mxu0 0.0
    %1739 = vmatprep.subr.mxu0 0.0
    %1740 = vmatpush1.msra.mxu0 0.0
    %1741 = vmatprep.subr.mxu0 0.0
    %1742 = vmatpush1.msra.mxu0 0.0
    %1743 = vmatprep.subr.mxu0 0.0
    %1744 = vmatpush1.msra.mxu0 0.0
    %1745 = vmatprep.subr.mxu0 0.0
    %1746 = vmatpush1.msra.mxu0 0.0
    %1747 = vmatprep.subr.mxu0 0.0
    %1748 = vmatpush1.msra.mxu0 0.0
    %1749 = vmatprep.subr.mxu0 0.0
    %1750 = vmatpush1.msra.mxu0 0.0
    %1751 = vmatprep.subr.mxu0 0.0
    %1752 = vmatpush1.msra.mxu0 0.0
    %1753 = vmatprep.subr.mxu0 0.0
    %1754 = vmatpush1.msra.mxu0 0.0
    %1755 = vmatprep.subr.mxu0 0.0
    %1756 = vmatpush1.msra.mxu0 0.0
    %1757 = vmatprep.subr.mxu0 0.0
    %1758 = vmatpush1.msra.mxu0 0.0
    %1759 = vmatprep.subr.mxu0 0.0
    %1760 = vmatpush1.msra.mxu0 0.0
    %1761 = vmatprep.subr.mxu0 0.0
    %1762 = vmatpush1.msra.mxu0 0.0
    %1763 = vmatprep.subr.mxu0 0.0
    %1764 = vmatpush1.msra.mxu0 0.0
    %1765 = vmatprep.subr.mxu0 0.0
    %1766 = vmatpush1.msra.mxu0 0.0
    %1767 = vmatprep.subr.mxu0 0.0
    %1768 = vmatpush1.msra.mxu0 0.0
    %1769 = vmatprep.subr.mxu0 0.0
    %1770 = vmatpush1.msra.mxu0 0.0
    %1771 = vmatprep.subr.mxu0 0.0
    %1772 = vmatpush1.msra.mxu0 0.0
    %1773 = vmatprep.subr.mxu0 0.0
    %1774 = vmatpush1.msra.mxu0 0.0
    %1775 = vmatprep.subr.mxu0 0.0
    %1776 = vmatpush1.msra.mxu0 0.0
    %1777 = vmatprep.subr.mxu0 0.0
    %1778 = vmatpush1.msra.mxu0 0.0
    %1779 = vmatprep.subr.mxu0 0.0
    %1780 = vmatpush1.msra.mxu0 0.0
    %1781 = vmatprep.mubr.f32.mxu0 0.0
    %1782 = vmatmul.mubr.f32.gmra.mrb[0].mxu0 %v1715
    %v1783 = vpop.f32.mrb[0].mxu0
    %v1784 = vadd.f32 0.0, %v1783
    %v1785 = vpop.f32.mrb[0].mxu0
    %v1786 = vadd.f32 0.0, %v1785
    %1787 = vdwg.mxu0
    %v1788 = vadd.f32 %v1712, %v1784
    %v1789 = vadd.f32 %v1713, %v1786
    %v1790 = vtanh.pop %v1788
    %v1791 = vtanh.pop %v1789
    %v1792 = vxor.u32 %v1788, 2147483648
    %v1793 = vxor.u32 %v1789, 2147483648
    %v1794 = vmul.f32 %v1792, 1.442695
    %v1795 = vpow.pop %v1794
    %v1796 = vmul.f32 %v1793, 1.442695
    %v1797 = vpow.pop %v1796
    %v1798 = vadd.f32 %v1795, 1.0
    %v1799 = vadd.f32 %v1797, 1.0
    %v1800 = vrcp.pop %v1798
    %v1801 = vmul.f32 1.0, %v1800
    %v1802 = vrcp.pop %v1799
    %v1803 = vmul.f32 1.0, %v1802
    %v1804 = vsel %vm204, %v1790, %v1801
    %v1805 = vsel %vm205, %v1791, %v1803
    %1807 = vrot.lane.b32.xlu0 %v1705, 64
    %v1808 = vpop.permute.xlu0 %1807
    %v1810 = vmul.f32 %v1804, %v1808
    %v1811 = vmul.f32 %v1804, %v1805
    %1813 = vrot.lane.b32.xlu0 %v1811, 64
    %v1814 = vpop.permute.xlu0 %1813
    %v1816 = vadd.f32 %v1810, %v1814
    %v1817 = vtanh.pop %v1816
    %v1818 = vmul.f32 %v1805, %v1817
    %1820 = vrot.lane.b32.xlu0 %v1818, 64
    %v1821 = vpop.permute.xlu0 %1820
    %v1823 = vsel %vm166, %v1821, %v1700
    %1825 = vrot.lane.b32.xlu0 %v1816, 64
    %v1826 = vpop.permute.xlu0 %1825
    %v1828 = vsel %vm166, %v1826, %v1705
    %v1829 = vsel %vm166, %v1821, 0.0
    %1830 = vst.msk [vmem:[#allocation3 + $0x8] sm:$0xff] %vm234, %v1829
    %1831 = vst.msk [vmem:[#allocation3 + $0x30] sm:$0xff] %vm523, %v1829
    %v1832 = vld [vmem:[#allocation2 + $0x20] sm:$0xff]
    %v1833 = vld [vmem:[#allocation2 + $0x28] sm:$0xff]
    %v1834 = vld [vmem:[#allocation2 + $0x50] sm:$0xff]
    %v1835 = vld [vmem:[#allocation2 + $0x58] sm:$0xff]
    %v1836 = vsel %vm198, %v1832, %v1834
    %v1837 = vsel %vm199, %v1833, %v1835
    %v1839 = vsel %vm410, %v1823, 0
    %1841 = vmatprep.subr.mxu0 %v1577
    %1842 = vmatpush1.msra.mxu0 %v1576
    %1843 = vmatprep.subr.mxu0 %v1579
    %1844 = vmatpush1.msra.mxu0 %v1578
    %1845 = vmatprep.subr.mxu0 %v1581
    %1846 = vmatpush1.msra.mxu0 %v1580
    %1847 = vmatprep.subr.mxu0 %v1583
    %1848 = vmatpush1.msra.mxu0 %v1582
    %1849 = vmatprep.subr.mxu0 %v1585
    %1850 = vmatpush1.msra.mxu0 %v1584
    %1851 = vmatprep.subr.mxu0 %v1587
    %1852 = vmatpush1.msra.mxu0 %v1586
    %1853 = vmatprep.subr.mxu0 %v1589
    %1854 = vmatpush1.msra.mxu0 %v1588
    %1855 = vmatprep.subr.mxu0 %v1591
    %1856 = vmatpush1.msra.mxu0 %v1590
    %1857 = vmatprep.subr.mxu0 0.0
    %1858 = vmatpush1.msra.mxu0 0.0
    %1859 = vmatprep.subr.mxu0 0.0
    %1860 = vmatpush1.msra.mxu0 0.0
    %1861 = vmatprep.subr.mxu0 0.0
    %1862 = vmatpush1.msra.mxu0 0.0
    %1863 = vmatprep.subr.mxu0 0.0
    %1864 = vmatpush1.msra.mxu0 0.0
    %1865 = vmatprep.subr.mxu0 0.0
    %1866 = vmatpush1.msra.mxu0 0.0
    %1867 = vmatprep.subr.mxu0 0.0
    %1868 = vmatpush1.msra.mxu0 0.0
    %1869 = vmatprep.subr.mxu0 0.0
    %1870 = vmatpush1.msra.mxu0 0.0
    %1871 = vmatprep.subr.mxu0 0.0
    %1872 = vmatpush1.msra.mxu0 0.0
    %1873 = vmatprep.subr.mxu0 0.0
    %1874 = vmatpush1.msra.mxu0 0.0
    %1875 = vmatprep.subr.mxu0 0.0
    %1876 = vmatpush1.msra.mxu0 0.0
    %1877 = vmatprep.subr.mxu0 0.0
    %1878 = vmatpush1.msra.mxu0 0.0
    %1879 = vmatprep.subr.mxu0 0.0
    %1880 = vmatpush1.msra.mxu0 0.0
    %1881 = vmatprep.subr.mxu0 0.0
    %1882 = vmatpush1.msra.mxu0 0.0
    %1883 = vmatprep.subr.mxu0 0.0
    %1884 = vmatpush1.msra.mxu0 0.0
    %1885 = vmatprep.subr.mxu0 0.0
    %1886 = vmatpush1.msra.mxu0 0.0
    %1887 = vmatprep.subr.mxu0 0.0
    %1888 = vmatpush1.msra.mxu0 0.0
    %1889 = vmatprep.subr.mxu0 0.0
    %1890 = vmatpush1.msra.mxu0 0.0
    %1891 = vmatprep.subr.mxu0 0.0
    %1892 = vmatpush1.msra.mxu0 0.0
    %1893 = vmatprep.subr.mxu0 0.0
    %1894 = vmatpush1.msra.mxu0 0.0
    %1895 = vmatprep.subr.mxu0 0.0
    %1896 = vmatpush1.msra.mxu0 0.0
    %1897 = vmatprep.subr.mxu0 0.0
    %1898 = vmatpush1.msra.mxu0 0.0
    %1899 = vmatprep.subr.mxu0 0.0
    %1900 = vmatpush1.msra.mxu0 0.0
    %1901 = vmatprep.subr.mxu0 0.0
    %1902 = vmatpush1.msra.mxu0 0.0
    %1903 = vmatprep.subr.mxu0 0.0
    %1904 = vmatpush1.msra.mxu0 0.0
    %1905 = vmatprep.mubr.f32.mxu0 0.0
    %1906 = vmatmul.mubr.f32.gmra.mrb[0].mxu0 %v1839
    %v1907 = vpop.f32.mrb[0].mxu0
    %v1908 = vadd.f32 0.0, %v1907
    %v1909 = vpop.f32.mrb[0].mxu0
    %v1910 = vadd.f32 0.0, %v1909
    %1911 = vdwg.mxu0
    %v1912 = vadd.f32 %v1836, %v1908
    %v1913 = vadd.f32 %v1837, %v1910
    %v1914 = vtanh.pop %v1912
    %v1915 = vtanh.pop %v1913
    %v1916 = vxor.u32 %v1912, 2147483648
    %v1917 = vxor.u32 %v1913, 2147483648
    %v1918 = vmul.f32 %v1916, 1.442695
    %v1919 = vpow.pop %v1918
    %v1920 = vmul.f32 %v1917, 1.442695
    %v1921 = vpow.pop %v1920
    %v1922 = vadd.f32 %v1919, 1.0
    %v1923 = vadd.f32 %v1921, 1.0
    %v1924 = vrcp.pop %v1922
    %v1925 = vmul.f32 1.0, %v1924
    %v1926 = vrcp.pop %v1923
    %v1927 = vmul.f32 1.0, %v1926
    %v1928 = vsel %vm204, %v1914, %v1925
    %v1929 = vsel %vm205, %v1915, %v1927
    %1931 = vrot.lane.b32.xlu0 %v1828, 64
    %v1932 = vpop.permute.xlu0 %1931
    %v1934 = vmul.f32 %v1928, %v1932
    %v1935 = vmul.f32 %v1928, %v1929
    %1937 = vrot.lane.b32.xlu0 %v1935, 64
    %v1938 = vpop.permute.xlu0 %1937
    %v1940 = vadd.f32 %v1934, %v1938
    %v1941 = vtanh.pop %v1940
    %v1942 = vmul.f32 %v1929, %v1941
    %1944 = vrot.lane.b32.xlu0 %v1942, 64
    %v1945 = vpop.permute.xlu0 %1944
    %v1947 = vsel %vm167, %v1945, %v1823
    %1949 = vrot.lane.b32.xlu0 %v1940, 64
    %v1950 = vpop.permute.xlu0 %1949
    %v1952 = vsel %vm167, %v1950, %v1828
    %v1953 = vsel %vm167, %v1945, 0.0
    %1954 = vst.msk [vmem:[#allocation3 + $0x10] sm:$0xff] %vm234, %v1953
    %1955 = vst.msk [vmem:[#allocation3 + $0x28] sm:$0xff] %vm523, %v1953
    %v1956 = vld [vmem:[#allocation2 + $0x30] sm:$0xff]
    %v1957 = vld [vmem:[#allocation2 + $0x38] sm:$0xff]
    %v1958 = vld [vmem:[#allocation2 + $0x40] sm:$0xff]
    %v1959 = vld [vmem:[#allocation2 + $0x48] sm:$0xff]
    %v1960 = vsel %vm198, %v1956, %v1958
    %v1961 = vsel %vm199, %v1957, %v1959
    %v1963 = vsel %vm410, %v1947, 0
    %1965 = vmatprep.subr.mxu0 %v1577
    %1966 = vmatpush1.msra.mxu0 %v1576
    %1967 = vmatprep.subr.mxu0 %v1579
    %1968 = vmatpush1.msra.mxu0 %v1578
    %1969 = vmatprep.subr.mxu0 %v1581
    %1970 = vmatpush1.msra.mxu0 %v1580
    %1971 = vmatprep.subr.mxu0 %v1583
    %1972 = vmatpush1.msra.mxu0 %v1582
    %1973 = vmatprep.subr.mxu0 %v1585
    %1974 = vmatpush1.msra.mxu0 %v1584
    %1975 = vmatprep.subr.mxu0 %v1587
    %1976 = vmatpush1.msra.mxu0 %v1586
    %1977 = vmatprep.subr.mxu0 %v1589
    %1978 = vmatpush1.msra.mxu0 %v1588
    %1979 = vmatprep.subr.mxu0 %v1591
    %1980 = vmatpush1.msra.mxu0 %v1590
    %1981 = vmatprep.subr.mxu0 0.0
    %1982 = vmatpush1.msra.mxu0 0.0
    %1983 = vmatprep.subr.mxu0 0.0
    %1984 = vmatpush1.msra.mxu0 0.0
    %1985 = vmatprep.subr.mxu0 0.0
    %1986 = vmatpush1.msra.mxu0 0.0
    %1987 = vmatprep.subr.mxu0 0.0
    %1988 = vmatpush1.msra.mxu0 0.0
    %1989 = vmatprep.subr.mxu0 0.0
    %1990 = vmatpush1.msra.mxu0 0.0
    %1991 = vmatprep.subr.mxu0 0.0
    %1992 = vmatpush1.msra.mxu0 0.0
    %1993 = vmatprep.subr.mxu0 0.0
    %1994 = vmatpush1.msra.mxu0 0.0
    %1995 = vmatprep.subr.mxu0 0.0
    %1996 = vmatpush1.msra.mxu0 0.0
    %1997 = vmatprep.subr.mxu0 0.0
    %1998 = vmatpush1.msra.mxu0 0.0
    %1999 = vmatprep.subr.mxu0 0.0
    %2000 = vmatpush1.msra.mxu0 0.0
    %2001 = vmatprep.subr.mxu0 0.0
    %2002 = vmatpush1.msra.mxu0 0.0
    %2003 = vmatprep.subr.mxu0 0.0
    %2004 = vmatpush1.msra.mxu0 0.0
    %2005 = vmatprep.subr.mxu0 0.0
    %2006 = vmatpush1.msra.mxu0 0.0
    %2007 = vmatprep.subr.mxu0 0.0
    %2008 = vmatpush1.msra.mxu0 0.0
    %2009 = vmatprep.subr.mxu0 0.0
    %2010 = vmatpush1.msra.mxu0 0.0
    %2011 = vmatprep.subr.mxu0 0.0
    %2012 = vmatpush1.msra.mxu0 0.0
    %2013 = vmatprep.subr.mxu0 0.0
    %2014 = vmatpush1.msra.mxu0 0.0
    %2015 = vmatprep.subr.mxu0 0.0
    %2016 = vmatpush1.msra.mxu0 0.0
    %2017 = vmatprep.subr.mxu0 0.0
    %2018 = vmatpush1.msra.mxu0 0.0
    %2019 = vmatprep.subr.mxu0 0.0
    %2020 = vmatpush1.msra.mxu0 0.0
    %2021 = vmatprep.subr.mxu0 0.0
    %2022 = vmatpush1.msra.mxu0 0.0
    %2023 = vmatprep.subr.mxu0 0.0
    %2024 = vmatpush1.msra.mxu0 0.0
    %2025 = vmatprep.subr.mxu0 0.0
    %2026 = vmatpush1.msra.mxu0 0.0
    %2027 = vmatprep.subr.mxu0 0.0
    %2028 = vmatpush1.msra.mxu0 0.0
    %2029 = vmatprep.mubr.f32.mxu0 0.0
    %2030 = vmatmul.mubr.f32.gmra.mrb[0].mxu0 %v1963
    %v2031 = vpop.f32.mrb[0].mxu0
    %v2032 = vadd.f32 0.0, %v2031
    %v2033 = vpop.f32.mrb[0].mxu0
    %v2034 = vadd.f32 0.0, %v2033
    %2035 = vdwg.mxu0
    %v2036 = vadd.f32 %v1960, %v2032
    %v2037 = vadd.f32 %v1961, %v2034
    %v2038 = vtanh.pop %v2036
    %v2039 = vtanh.pop %v2037
    %v2040 = vxor.u32 %v2036, 2147483648
    %v2041 = vxor.u32 %v2037, 2147483648
    %v2042 = vmul.f32 %v2040, 1.442695
    %v2043 = vpow.pop %v2042
    %v2044 = vmul.f32 %v2041, 1.442695
    %v2045 = vpow.pop %v2044
    %v2046 = vadd.f32 %v2043, 1.0
    %v2047 = vadd.f32 %v2045, 1.0
    %v2048 = vrcp.pop %v2046
    %v2049 = vmul.f32 1.0, %v2048
    %v2050 = vrcp.pop %v2047
    %v2051 = vmul.f32 1.0, %v2050
    %v2052 = vsel %vm204, %v2038, %v2049
    %v2053 = vsel %vm205, %v2039, %v2051
    %2055 = vrot.lane.b32.xlu0 %v1952, 64
    %v2056 = vpop.permute.xlu0 %2055
    %v2058 = vmul.f32 %v2052, %v2056
    %v2059 = vmul.f32 %v2052, %v2053
    %2061 = vrot.lane.b32.xlu0 %v2059, 64
    %v2062 = vpop.permute.xlu0 %2061
    %v2064 = vadd.f32 %v2058, %v2062
    %v2065 = vtanh.pop %v2064
    %v2066 = vmul.f32 %v2053, %v2065
    %2068 = vrot.lane.b32.xlu0 %v2066, 64
    %v2069 = vpop.permute.xlu0 %2068
    %v2071 = vsel %vm168, %v2069, %v1947
    %2073 = vrot.lane.b32.xlu0 %v2064, 64
    %v2074 = vpop.permute.xlu0 %2073
    %v2076 = vsel %vm168, %v2074, %v1952
    %v2077 = vsel %vm168, %v2069, 0.0
    %2078 = vst.msk [vmem:[#allocation3 + $0x18] sm:$0xff] %vm234, %v2077
    %2079 = vst.msk [vmem:[#allocation3 + $0x20] sm:$0xff] %vm523, %v2077
    %v2080 = vld [vmem:[#allocation2 + $0x40] sm:$0xff]
    %v2081 = vld [vmem:[#allocation2 + $0x48] sm:$0xff]
    %v2082 = vld [vmem:[#allocation2 + $0x30] sm:$0xff]
    %v2083 = vld [vmem:[#allocation2 + $0x38] sm:$0xff]
    %v2084 = vsel %vm198, %v2080, %v2082
    %v2085 = vsel %vm199, %v2081, %v2083
    %v2087 = vsel %vm410, %v2071, 0
    %2089 = vmatprep.subr.mxu0 %v1577
    %2090 = vmatpush1.msra.mxu0 %v1576
    %2091 = vmatprep.subr.mxu0 %v1579
    %2092 = vmatpush1.msra.mxu0 %v1578
    %2093 = vmatprep.subr.mxu0 %v1581
    %2094 = vmatpush1.msra.mxu0 %v1580
    %2095 = vmatprep.subr.mxu0 %v1583
    %2096 = vmatpush1.msra.mxu0 %v1582
    %2097 = vmatprep.subr.mxu0 %v1585
    %2098 = vmatpush1.msra.mxu0 %v1584
    %2099 = vmatprep.subr.mxu0 %v1587
    %2100 = vmatpush1.msra.mxu0 %v1586
    %2101 = vmatprep.subr.mxu0 %v1589
    %2102 = vmatpush1.msra.mxu0 %v1588
    %2103 = vmatprep.subr.mxu0 %v1591
    %2104 = vmatpush1.msra.mxu0 %v1590
    %2105 = vmatprep.subr.mxu0 0.0
    %2106 = vmatpush1.msra.mxu0 0.0
    %2107 = vmatprep.subr.mxu0 0.0
    %2108 = vmatpush1.msra.mxu0 0.0
    %2109 = vmatprep.subr.mxu0 0.0
    %2110 = vmatpush1.msra.mxu0 0.0
    %2111 = vmatprep.subr.mxu0 0.0
    %2112 = vmatpush1.msra.mxu0 0.0
    %2113 = vmatprep.subr.mxu0 0.0
    %2114 = vmatpush1.msra.mxu0 0.0
    %2115 = vmatprep.subr.mxu0 0.0
    %2116 = vmatpush1.msra.mxu0 0.0
    %2117 = vmatprep.subr.mxu0 0.0
    %2118 = vmatpush1.msra.mxu0 0.0
    %2119 = vmatprep.subr.mxu0 0.0
    %2120 = vmatpush1.msra.mxu0 0.0
    %2121 = vmatprep.subr.mxu0 0.0
    %2122 = vmatpush1.msra.mxu0 0.0
    %2123 = vmatprep.subr.mxu0 0.0
    %2124 = vmatpush1.msra.mxu0 0.0
    %2125 = vmatprep.subr.mxu0 0.0
    %2126 = vmatpush1.msra.mxu0 0.0
    %2127 = vmatprep.subr.mxu0 0.0
    %2128 = vmatpush1.msra.mxu0 0.0
    %2129 = vmatprep.subr.mxu0 0.0
    %2130 = vmatpush1.msra.mxu0 0.0
    %2131 = vmatprep.subr.mxu0 0.0
    %2132 = vmatpush1.msra.mxu0 0.0
    %2133 = vmatprep.subr.mxu0 0.0
    %2134 = vmatpush1.msra.mxu0 0.0
    %2135 = vmatprep.subr.mxu0 0.0
    %2136 = vmatpush1.msra.mxu0 0.0
    %2137 = vmatprep.subr.mxu0 0.0
    %2138 = vmatpush1.msra.mxu0 0.0
    %2139 = vmatprep.subr.mxu0 0.0
    %2140 = vmatpush1.msra.mxu0 0.0
    %2141 = vmatprep.subr.mxu0 0.0
    %2142 = vmatpush1.msra.mxu0 0.0
    %2143 = vmatprep.subr.mxu0 0.0
    %2144 = vmatpush1.msra.mxu0 0.0
    %2145 = vmatprep.subr.mxu0 0.0
    %2146 = vmatpush1.msra.mxu0 0.0
    %2147 = vmatprep.subr.mxu0 0.0
    %2148 = vmatpush1.msra.mxu0 0.0
    %2149 = vmatprep.subr.mxu0 0.0
    %2150 = vmatpush1.msra.mxu0 0.0
    %2151 = vmatprep.subr.mxu0 0.0
    %2152 = vmatpush1.msra.mxu0 0.0
    %2153 = vmatprep.mubr.f32.mxu0 0.0
    %2154 = vmatmul.mubr.f32.gmra.mrb[0].mxu0 %v2087
    %v2155 = vpop.f32.mrb[0].mxu0
    %v2156 = vadd.f32 0.0, %v2155
    %v2157 = vpop.f32.mrb[0].mxu0
    %v2158 = vadd.f32 0.0, %v2157
    %2159 = vdwg.mxu0
    %v2160 = vadd.f32 %v2084, %v2156
    %v2161 = vadd.f32 %v2085, %v2158
    %v2162 = vtanh.pop %v2160
    %v2163 = vtanh.pop %v2161
    %v2164 = vxor.u32 %v2160, 2147483648
    %v2165 = vxor.u32 %v2161, 2147483648
    %v2166 = vmul.f32 %v2164, 1.442695
    %v2167 = vpow.pop %v2166
    %v2168 = vmul.f32 %v2165, 1.442695
    %v2169 = vpow.pop %v2168
    %v2170 = vadd.f32 %v2167, 1.0
    %v2171 = vadd.f32 %v2169, 1.0
    %v2172 = vrcp.pop %v2170
    %v2173 = vmul.f32 1.0, %v2172
    %v2174 = vrcp.pop %v2171
    %v2175 = vmul.f32 1.0, %v2174
    %v2176 = vsel %vm204, %v2162, %v2173
    %v2177 = vsel %vm205, %v2163, %v2175
    %2179 = vrot.lane.b32.xlu0 %v2076, 64
    %v2180 = vpop.permute.xlu0 %2179
    %v2182 = vmul.f32 %v2176, %v2180
    %v2183 = vmul.f32 %v2176, %v2177
    %2185 = vrot.lane.b32.xlu0 %v2183, 64
    %v2186 = vpop.permute.xlu0 %2185
    %v2188 = vadd.f32 %v2182, %v2186
    %v2189 = vtanh.pop %v2188
    %v2190 = vmul.f32 %v2177, %v2189
    %2192 = vrot.lane.b32.xlu0 %v2190, 64
    %v2193 = vpop.permute.xlu0 %2192
    %v2195 = vsel %vm169, %v2193, %v2071
    %2197 = vrot.lane.b32.xlu0 %v2188, 64
    %v2198 = vpop.permute.xlu0 %2197
    %v2200 = vsel %vm169, %v2198, %v2076
    %v2201 = vsel %vm169, %v2193, 0.0
    %2202 = vst.msk [vmem:[#allocation3 + $0x20] sm:$0xff] %vm234, %v2201
    %2203 = vst.msk [vmem:[#allocation3 + $0x18] sm:$0xff] %vm523, %v2201
    %v2204 = vld [vmem:[#allocation2 + $0x50] sm:$0xff]
    %v2205 = vld [vmem:[#allocation2 + $0x58] sm:$0xff]
    %v2206 = vld [vmem:[#allocation2 + $0x20] sm:$0xff]
    %v2207 = vld [vmem:[#allocation2 + $0x28] sm:$0xff]
    %v2208 = vsel %vm198, %v2204, %v2206
    %v2209 = vsel %vm199, %v2205, %v2207
    %v2211 = vsel %vm410, %v2195, 0
    %2213 = vmatprep.subr.mxu0 %v1577
    %2214 = vmatpush1.msra.mxu0 %v1576
    %2215 = vmatprep.subr.mxu0 %v1579
    %2216 = vmatpush1.msra.mxu0 %v1578
    %2217 = vmatprep.subr.mxu0 %v1581
    %2218 = vmatpush1.msra.mxu0 %v1580
    %2219 = vmatprep.subr.mxu0 %v1583
    %2220 = vmatpush1.msra.mxu0 %v1582
    %2221 = vmatprep.subr.mxu0 %v1585
    %2222 = vmatpush1.msra.mxu0 %v1584
    %2223 = vmatprep.subr.mxu0 %v1587
    %2224 = vmatpush1.msra.mxu0 %v1586
    %2225 = vmatprep.subr.mxu0 %v1589
    %2226 = vmatpush1.msra.mxu0 %v1588
    %2227 = vmatprep.subr.mxu0 %v1591
    %2228 = vmatpush1.msra.mxu0 %v1590
    %2229 = vmatprep.subr.mxu0 0.0
    %2230 = vmatpush1.msra.mxu0 0.0
    %2231 = vmatprep.subr.mxu0 0.0
    %2232 = vmatpush1.msra.mxu0 0.0
    %2233 = vmatprep.subr.mxu0 0.0
    %2234 = vmatpush1.msra.mxu0 0.0
    %2235 = vmatprep.subr.mxu0 0.0
    %2236 = vmatpush1.msra.mxu0 0.0
    %2237 = vmatprep.subr.mxu0 0.0
    %2238 = vmatpush1.msra.mxu0 0.0
    %2239 = vmatprep.subr.mxu0 0.0
    %2240 = vmatpush1.msra.mxu0 0.0
    %2241 = vmatprep.subr.mxu0 0.0
    %2242 = vmatpush1.msra.mxu0 0.0
    %2243 = vmatprep.subr.mxu0 0.0
    %2244 = vmatpush1.msra.mxu0 0.0
    %2245 = vmatprep.subr.mxu0 0.0
    %2246 = vmatpush1.msra.mxu0 0.0
    %2247 = vmatprep.subr.mxu0 0.0
    %2248 = vmatpush1.msra.mxu0 0.0
    %2249 = vmatprep.subr.mxu0 0.0
    %2250 = vmatpush1.msra.mxu0 0.0
    %2251 = vmatprep.subr.mxu0 0.0
    %2252 = vmatpush1.msra.mxu0 0.0
    %2253 = vmatprep.subr.mxu0 0.0
    %2254 = vmatpush1.msra.mxu0 0.0
    %2255 = vmatprep.subr.mxu0 0.0
    %2256 = vmatpush1.msra.mxu0 0.0
    %2257 = vmatprep.subr.mxu0 0.0
    %2258 = vmatpush1.msra.mxu0 0.0
    %2259 = vmatprep.subr.mxu0 0.0
    %2260 = vmatpush1.msra.mxu0 0.0
    %2261 = vmatprep.subr.mxu0 0.0
    %2262 = vmatpush1.msra.mxu0 0.0
    %2263 = vmatprep.subr.mxu0 0.0
    %2264 = vmatpush1.msra.mxu0 0.0
    %2265 = vmatprep.subr.mxu0 0.0
    %2266 = vmatpush1.msra.mxu0 0.0
    %2267 = vmatprep.subr.mxu0 0.0
    %2268 = vmatpush1.msra.mxu0 0.0
    %2269 = vmatprep.subr.mxu0 0.0
    %2270 = vmatpush1.msra.mxu0 0.0
    %2271 = vmatprep.subr.mxu0 0.0
    %2272 = vmatpush1.msra.mxu0 0.0
    %2273 = vmatprep.subr.mxu0 0.0
    %2274 = vmatpush1.msra.mxu0 0.0
    %2275 = vmatprep.subr.mxu0 0.0
    %2276 = vmatpush1.msra.mxu0 0.0
    %2277 = vmatprep.mubr.f32.mxu0 0.0
    %2278 = vmatmul.mubr.f32.gmra.mrb[0].mxu0 %v2211
    %v2279 = vpop.f32.mrb[0].mxu0
    %v2280 = vadd.f32 0.0, %v2279
    %v2281 = vpop.f32.mrb[0].mxu0
    %v2282 = vadd.f32 0.0, %v2281
    %2283 = vdwg.mxu0
    %v2284 = vadd.f32 %v2208, %v2280
    %v2285 = vadd.f32 %v2209, %v2282
    %v2286 = vtanh.pop %v2284
    %v2287 = vtanh.pop %v2285
    %v2288 = vxor.u32 %v2284, 2147483648
    %v2289 = vxor.u32 %v2285, 2147483648
    %v2290 = vmul.f32 %v2288, 1.442695
    %v2291 = vpow.pop %v2290
    %v2292 = vmul.f32 %v2289, 1.442695
    %v2293 = vpow.pop %v2292
    %v2294 = vadd.f32 %v2291, 1.0
    %v2295 = vadd.f32 %v2293, 1.0
    %v2296 = vrcp.pop %v2294
    %v2297 = vmul.f32 1.0, %v2296
    %v2298 = vrcp.pop %v2295
    %v2299 = vmul.f32 1.0, %v2298
    %v2300 = vsel %vm204, %v2286, %v2297
    %v2301 = vsel %vm205, %v2287, %v2299
    %2303 = vrot.lane.b32.xlu0 %v2200, 64
    %v2304 = vpop.permute.xlu0 %2303
    %v2306 = vmul.f32 %v2300, %v2304
    %v2307 = vmul.f32 %v2300, %v2301
    %2309 = vrot.lane.b32.xlu0 %v2307, 64
    %v2310 = vpop.permute.xlu0 %2309
    %v2312 = vadd.f32 %v2306, %v2310
    %v2313 = vtanh.pop %v2312
    %v2314 = vmul.f32 %v2301, %v2313
    %2316 = vrot.lane.b32.xlu0 %v2314, 64
    %v2317 = vpop.permute.xlu0 %2316
    %v2319 = vsel %vm170, %v2317, %v2195
    %2321 = vrot.lane.b32.xlu0 %v2312, 64
    %v2322 = vpop.permute.xlu0 %2321
    %v2324 = vsel %vm170, %v2322, %v2200
    %v2325 = vsel %vm170, %v2317, 0.0
    %2326 = vst.msk [vmem:[#allocation3 + $0x28] sm:$0xff] %vm234, %v2325
    %2327 = vst.msk [vmem:[#allocation3 + $0x10] sm:$0xff] %vm523, %v2325
    %v2328 = vld [vmem:[#allocation2 + $0x60] sm:$0xff]
    %v2329 = vld [vmem:[#allocation2 + $0x68] sm:$0xff]
    %v2330 = vld [vmem:[#allocation2 + $0x10] sm:$0xff]
    %v2331 = vld [vmem:[#allocation2 + $0x18] sm:$0xff]
    %v2332 = vsel %vm198, %v2328, %v2330
    %v2333 = vsel %vm199, %v2329, %v2331
    %v2335 = vsel %vm410, %v2319, 0
    %2337 = vmatprep.subr.mxu0 %v1577
    %2338 = vmatpush1.msra.mxu0 %v1576
    %2339 = vmatprep.subr.mxu0 %v1579
    %2340 = vmatpush1.msra.mxu0 %v1578
    %2341 = vmatprep.subr.mxu0 %v1581
    %2342 = vmatpush1.msra.mxu0 %v1580
    %2343 = vmatprep.subr.mxu0 %v1583
    %2344 = vmatpush1.msra.mxu0 %v1582
    %2345 = vmatprep.subr.mxu0 %v1585
    %2346 = vmatpush1.msra.mxu0 %v1584
    %2347 = vmatprep.subr.mxu0 %v1587
    %2348 = vmatpush1.msra.mxu0 %v1586
    %2349 = vmatprep.subr.mxu0 %v1589
    %2350 = vmatpush1.msra.mxu0 %v1588
    %2351 = vmatprep.subr.mxu0 %v1591
    %2352 = vmatpush1.msra.mxu0 %v1590
    %2353 = vmatprep.subr.mxu0 0.0
    %2354 = vmatpush1.msra.mxu0 0.0
    %2355 = vmatprep.subr.mxu0 0.0
    %2356 = vmatpush1.msra.mxu0 0.0
    %2357 = vmatprep.subr.mxu0 0.0
    %2358 = vmatpush1.msra.mxu0 0.0
    %2359 = vmatprep.subr.mxu0 0.0
    %2360 = vmatpush1.msra.mxu0 0.0
    %2361 = vmatprep.subr.mxu0 0.0
    %2362 = vmatpush1.msra.mxu0 0.0
    %2363 = vmatprep.subr.mxu0 0.0
    %2364 = vmatpush1.msra.mxu0 0.0
    %2365 = vmatprep.subr.mxu0 0.0
    %2366 = vmatpush1.msra.mxu0 0.0
    %2367 = vmatprep.subr.mxu0 0.0
    %2368 = vmatpush1.msra.mxu0 0.0
    %2369 = vmatprep.subr.mxu0 0.0
    %2370 = vmatpush1.msra.mxu0 0.0
    %2371 = vmatprep.subr.mxu0 0.0
    %2372 = vmatpush1.msra.mxu0 0.0
    %2373 = vmatprep.subr.mxu0 0.0
    %2374 = vmatpush1.msra.mxu0 0.0
    %2375 = vmatprep.subr.mxu0 0.0
    %2376 = vmatpush1.msra.mxu0 0.0
    %2377 = vmatprep.subr.mxu0 0.0
    %2378 = vmatpush1.msra.mxu0 0.0
    %2379 = vmatprep.subr.mxu0 0.0
    %2380 = vmatpush1.msra.mxu0 0.0
    %2381 = vmatprep.subr.mxu0 0.0
    %2382 = vmatpush1.msra.mxu0 0.0
    %2383 = vmatprep.subr.mxu0 0.0
    %2384 = vmatpush1.msra.mxu0 0.0
    %2385 = vmatprep.subr.mxu0 0.0
    %2386 = vmatpush1.msra.mxu0 0.0
    %2387 = vmatprep.subr.mxu0 0.0
    %2388 = vmatpush1.msra.mxu0 0.0
    %2389 = vmatprep.subr.mxu0 0.0
    %2390 = vmatpush1.msra.mxu0 0.0
    %2391 = vmatprep.subr.mxu0 0.0
    %2392 = vmatpush1.msra.mxu0 0.0
    %2393 = vmatprep.subr.mxu0 0.0
    %2394 = vmatpush1.msra.mxu0 0.0
    %2395 = vmatprep.subr.mxu0 0.0
    %2396 = vmatpush1.msra.mxu0 0.0
    %2397 = vmatprep.subr.mxu0 0.0
    %2398 = vmatpush1.msra.mxu0 0.0
    %2399 = vmatprep.subr.mxu0 0.0
    %2400 = vmatpush1.msra.mxu0 0.0
    %2401 = vmatprep.mubr.f32.mxu0 0.0
    %2402 = vmatmul.mubr.f32.gmra.mrb[0].mxu0 %v2335
    %v2403 = vpop.f32.mrb[0].mxu0
    %v2404 = vadd.f32 0.0, %v2403
    %v2405 = vpop.f32.mrb[0].mxu0
    %v2406 = vadd.f32 0.0, %v2405
    %2407 = vdwg.mxu0
    %v2408 = vadd.f32 %v2332, %v2404
    %v2409 = vadd.f32 %v2333, %v2406
    %v2410 = vtanh.pop %v2408
    %v2411 = vtanh.pop %v2409
    %v2412 = vxor.u32 %v2408, 2147483648
    %v2413 = vxor.u32 %v2409, 2147483648
    %v2414 = vmul.f32 %v2412, 1.442695
    %v2415 = vpow.pop %v2414
    %v2416 = vmul.f32 %v2413, 1.442695
    %v2417 = vpow.pop %v2416
    %v2418 = vadd.f32 %v2415, 1.0
    %v2419 = vadd.f32 %v2417, 1.0
    %v2420 = vrcp.pop %v2418
    %v2421 = vmul.f32 1.0, %v2420
    %v2422 = vrcp.pop %v2419
    %v2423 = vmul.f32 1.0, %v2422
    %v2424 = vsel %vm204, %v2410, %v2421
    %v2425 = vsel %vm205, %v2411, %v2423
    %2427 = vrot.lane.b32.xlu0 %v2324, 64
    %v2428 = vpop.permute.xlu0 %2427
    %v2430 = vmul.f32 %v2424, %v2428
    %v2431 = vmul.f32 %v2424, %v2425
    %2433 = vrot.lane.b32.xlu0 %v2431, 64
    %v2434 = vpop.permute.xlu0 %2433
    %v2436 = vadd.f32 %v2430, %v2434
    %v2437 = vtanh.pop %v2436
    %v2438 = vmul.f32 %v2425, %v2437
    %2440 = vrot.lane.b32.xlu0 %v2438, 64
    %v2441 = vpop.permute.xlu0 %2440
    %v2443 = vsel %vm171, %v2441, %v2319
    %2445 = vrot.lane.b32.xlu0 %v2436, 64
    %v2446 = vpop.permute.xlu0 %2445
    %v2448 = vsel %vm171, %v2446, %v2324
    %v2449 = vsel %vm171, %v2441, 0.0
    %2450 = vst.msk [vmem:[#allocation3 + $0x30] sm:$0xff] %vm234, %v2449
    %2451 = vst.msk [vmem:[#allocation3 + $0x8] sm:$0xff] %vm523, %v2449
    %v2452 = vld [vmem:[#allocation2 + $0x70] sm:$0xff]
    %v2453 = vld [vmem:[#allocation2 + $0x78] sm:$0xff]
    %v2454 = vld [vmem:[#allocation2] sm:$0xff]
    %v2455 = vld [vmem:[#allocation2 + $0x8] sm:$0xff]
    %v2456 = vsel %vm198, %v2452, %v2454
    %v2457 = vsel %vm199, %v2453, %v2455
    %v2459 = vsel %vm410, %v2443, 0
    %2461 = vmatprep.subr.mxu0 %v1577
    %2462 = vmatpush1.msra.mxu0 %v1576
    %2463 = vmatprep.subr.mxu0 %v1579
    %2464 = vmatpush1.msra.mxu0 %v1578
    %2465 = vmatprep.subr.mxu0 %v1581
    %2466 = vmatpush1.msra.mxu0 %v1580
    %2467 = vmatprep.subr.mxu0 %v1583
    %2468 = vmatpush1.msra.mxu0 %v1582
    %2469 = vmatprep.subr.mxu0 %v1585
    %2470 = vmatpush1.msra.mxu0 %v1584
    %2471 = vmatprep.subr.mxu0 %v1587
    %2472 = vmatpush1.msra.mxu0 %v1586
    %2473 = vmatprep.subr.mxu0 %v1589
    %2474 = vmatpush1.msra.mxu0 %v1588
    %2475 = vmatprep.subr.mxu0 %v1591
    %2476 = vmatpush1.msra.mxu0 %v1590
    %2477 = vmatprep.subr.mxu0 0.0
    %2478 = vmatpush1.msra.mxu0 0.0
    %2479 = vmatprep.subr.mxu0 0.0
    %2480 = vmatpush1.msra.mxu0 0.0
    %2481 = vmatprep.subr.mxu0 0.0
    %2482 = vmatpush1.msra.mxu0 0.0
    %2483 = vmatprep.subr.mxu0 0.0
    %2484 = vmatpush1.msra.mxu0 0.0
    %2485 = vmatprep.subr.mxu0 0.0
    %2486 = vmatpush1.msra.mxu0 0.0
    %2487 = vmatprep.subr.mxu0 0.0
    %2488 = vmatpush1.msra.mxu0 0.0
    %2489 = vmatprep.subr.mxu0 0.0
    %2490 = vmatpush1.msra.mxu0 0.0
    %2491 = vmatprep.subr.mxu0 0.0
    %2492 = vmatpush1.msra.mxu0 0.0
    %2493 = vmatprep.subr.mxu0 0.0
    %2494 = vmatpush1.msra.mxu0 0.0
    %2495 = vmatprep.subr.mxu0 0.0
    %2496 = vmatpush1.msra.mxu0 0.0
    %2497 = vmatprep.subr.mxu0 0.0
    %2498 = vmatpush1.msra.mxu0 0.0
    %2499 = vmatprep.subr.mxu0 0.0
    %2500 = vmatpush1.msra.mxu0 0.0
    %2501 = vmatprep.subr.mxu0 0.0
    %2502 = vmatpush1.msra.mxu0 0.0
    %2503 = vmatprep.subr.mxu0 0.0
    %2504 = vmatpush1.msra.mxu0 0.0
    %2505 = vmatprep.subr.mxu0 0.0
    %2506 = vmatpush1.msra.mxu0 0.0
    %2507 = vmatprep.subr.mxu0 0.0
    %2508 = vmatpush1.msra.mxu0 0.0
    %2509 = vmatprep.subr.mxu0 0.0
    %2510 = vmatpush1.msra.mxu0 0.0
    %2511 = vmatprep.subr.mxu0 0.0
    %2512 = vmatpush1.msra.mxu0 0.0
    %2513 = vmatprep.subr.mxu0 0.0
    %2514 = vmatpush1.msra.mxu0 0.0
    %2515 = vmatprep.subr.mxu0 0.0
    %2516 = vmatpush1.msra.mxu0 0.0
    %2517 = vmatprep.subr.mxu0 0.0
    %2518 = vmatpush1.msra.mxu0 0.0
    %2519 = vmatprep.subr.mxu0 0.0
    %2520 = vmatpush1.msra.mxu0 0.0
    %2521 = vmatprep.subr.mxu0 0.0
    %2522 = vmatpush1.msra.mxu0 0.0
    %2523 = vmatprep.subr.mxu0 0.0
    %2524 = vmatpush1.msra.mxu0 0.0
    %2525 = vmatprep.mubr.f32.mxu0 0.0
    %2526 = vmatmul.mubr.f32.gmra.mrb[0].mxu0 %v2459
    %v2527 = vpop.f32.mrb[0].mxu0
    %v2528 = vadd.f32 0.0, %v2527
    %v2529 = vpop.f32.mrb[0].mxu0
    %v2530 = vadd.f32 0.0, %v2529
    %2531 = vdwg.mxu0
    %v2532 = vadd.f32 %v2456, %v2528
    %v2533 = vadd.f32 %v2457, %v2530
    %v2534 = vtanh.pop %v2532
    %v2535 = vtanh.pop %v2533
    %v2536 = vxor.u32 %v2532, 2147483648
    %v2537 = vxor.u32 %v2533, 2147483648
    %v2538 = vmul.f32 %v2536, 1.442695
    %v2539 = vpow.pop %v2538
    %v2540 = vmul.f32 %v2537, 1.442695
    %v2541 = vpow.pop %v2540
    %v2542 = vadd.f32 %v2539, 1.0
    %v2543 = vadd.f32 %v2541, 1.0
    %v2544 = vrcp.pop %v2542
    %v2545 = vmul.f32 1.0, %v2544
    %v2546 = vrcp.pop %v2543
    %v2547 = vmul.f32 1.0, %v2546
    %v2548 = vsel %vm204, %v2534, %v2545
    %v2549 = vsel %vm205, %v2535, %v2547
    %2551 = vrot.lane.b32.xlu0 %v2448, 64
    %v2552 = vpop.permute.xlu0 %2551
    %v2554 = vmul.f32 %v2548, %v2552
    %v2555 = vmul.f32 %v2548, %v2549
    %2557 = vrot.lane.b32.xlu0 %v2555, 64
    %v2558 = vpop.permute.xlu0 %2557
    %v2560 = vadd.f32 %v2554, %v2558
    %v2561 = vtanh.pop %v2560
    %v2562 = vmul.f32 %v2549, %v2561
    %2564 = vrot.lane.b32.xlu0 %v2562, 64
    %v2565 = vpop.permute.xlu0 %2564
    %v2567 = vsel %vm172, %v2565, 0.0
    %2568 = vst.msk [vmem:[#allocation3 + $0x38] sm:$0xff] %vm234, %v2567
    %2569 = vst.msk [vmem:[#allocation3] sm:$0xff] %vm523, %v2567
    %v2570 = vld [vmem:[#allocation3] sm:$0xff]
    %v2571 = vld [vmem:[#allocation3 + $0x8] sm:$0xff]
    %v2572 = vld [vmem:[#allocation3 + $0x10] sm:$0xff]
    %v2573 = vld [vmem:[#allocation3 + $0x18] sm:$0xff]
    %v2574 = vld [vmem:[#allocation3 + $0x20] sm:$0xff]
    %v2575 = vld [vmem:[#allocation3 + $0x28] sm:$0xff]
    %v2576 = vld [vmem:[#allocation3 + $0x30] sm:$0xff]
    %v2577 = vld [vmem:[#allocation3 + $0x38] sm:$0xff]
    %v2578 = vld [vmem:[%s8] sm:$0xff]
    %v2579 = vld [vmem:[%s8 + $0x8] sm:$0xff]
    %v2580 = vld [vmem:[%s8 + $0x10] sm:$0xff]
    %v2581 = vld [vmem:[%s8 + $0x18] sm:$0xff]
    %v2582 = vld [vmem:[%s8 + $0x20] sm:$0xff]
    %v2583 = vld [vmem:[%s8 + $0x28] sm:$0xff]
    %v2584 = vld [vmem:[%s8 + $0x30] sm:$0xff]
    %v2585 = vld [vmem:[%s8 + $0x38] sm:$0xff]
    %v2586 = vld [vmem:[%s9] sm:$0x1]
    %v2588 = vlaneseq
    %v2589 = vshrl.u32 %v2588, 7
    %v2590 = vsub.s32 0, %v2589
    %v2591 = vrot.slane %v2586, %v2590
    %v2594 = vsel %vm410, %v2570, 0
    %v2597 = vsel %vm410, %v2571, 0
    %v2600 = vsel %vm410, %v2572, 0
    %v2603 = vsel %vm410, %v2573, 0
    %v2606 = vsel %vm410, %v2574, 0
    %v2609 = vsel %vm410, %v2575, 0
    %v2612 = vsel %vm410, %v2576, 0
    %v2615 = vsel %vm410, %v2577, 0
    %2617 = vmatprep.subr.mxu0 0.0
    %2618 = vmatpush1.msra.mxu0 %v2578
    %2619 = vmatprep.subr.mxu0 0.0
    %2620 = vmatpush1.msra.mxu0 %v2579
    %2621 = vmatprep.subr.mxu0 0.0
    %2622 = vmatpush1.msra.mxu0 %v2580
    %2623 = vmatprep.subr.mxu0 0.0
    %2624 = vmatpush1.msra.mxu0 %v2581
    %2625 = vmatprep.subr.mxu0 0.0
    %2626 = vmatpush1.msra.mxu0 %v2582
    %2627 = vmatprep.subr.mxu0 0.0
    %2628 = vmatpush1.msra.mxu0 %v2583
    %2629 = vmatprep.subr.mxu0 0.0
    %2630 = vmatpush1.msra.mxu0 %v2584
    %2631 = vmatprep.subr.mxu0 0.0
    %2632 = vmatpush1.msra.mxu0 %v2585
    %2633 = vmatprep.subr.mxu0 0.0
    %2634 = vmatpush1.msra.mxu0 0.0
    %2635 = vmatprep.subr.mxu0 0.0
    %2636 = vmatpush1.msra.mxu0 0.0
    %2637 = vmatprep.subr.mxu0 0.0
    %2638 = vmatpush1.msra.mxu0 0.0
    %2639 = vmatprep.subr.mxu0 0.0
    %2640 = vmatpush1.msra.mxu0 0.0
    %2641 = vmatprep.subr.mxu0 0.0
    %2642 = vmatpush1.msra.mxu0 0.0
    %2643 = vmatprep.subr.mxu0 0.0
    %2644 = vmatpush1.msra.mxu0 0.0
    %2645 = vmatprep.subr.mxu0 0.0
    %2646 = vmatpush1.msra.mxu0 0.0
    %2647 = vmatprep.subr.mxu0 0.0
    %2648 = vmatpush1.msra.mxu0 0.0
    %2649 = vmatprep.subr.mxu0 0.0
    %2650 = vmatpush1.msra.mxu0 0.0
    %2651 = vmatprep.subr.mxu0 0.0
    %2652 = vmatpush1.msra.mxu0 0.0
    %2653 = vmatprep.subr.mxu0 0.0
    %2654 = vmatpush1.msra.mxu0 0.0
    %2655 = vmatprep.subr.mxu0 0.0
    %2656 = vmatpush1.msra.mxu0 0.0
    %2657 = vmatprep.subr.mxu0 0.0
    %2658 = vmatpush1.msra.mxu0 0.0
    %2659 = vmatprep.subr.mxu0 0.0
    %2660 = vmatpush1.msra.mxu0 0.0
    %2661 = vmatprep.subr.mxu0 0.0
    %2662 = vmatpush1.msra.mxu0 0.0
    %2663 = vmatprep.subr.mxu0 0.0
    %2664 = vmatpush1.msra.mxu0 0.0
    %2665 = vmatprep.subr.mxu0 0.0
    %2666 = vmatpush1.msra.mxu0 0.0
    %2667 = vmatprep.subr.mxu0 0.0
    %2668 = vmatpush1.msra.mxu0 0.0
    %2669 = vmatprep.subr.mxu0 0.0
    %2670 = vmatpush1.msra.mxu0 0.0
    %2671 = vmatprep.subr.mxu0 0.0
    %2672 = vmatpush1.msra.mxu0 0.0
    %2673 = vmatprep.subr.mxu0 0.0
    %2674 = vmatpush1.msra.mxu0 0.0
    %2675 = vmatprep.subr.mxu0 0.0
    %2676 = vmatpush1.msra.mxu0 0.0
    %2677 = vmatprep.subr.mxu0 0.0
    %2678 = vmatpush1.msra.mxu0 0.0
    %2679 = vmatprep.subr.mxu0 0.0
    %2680 = vmatpush1.msra.mxu0 0.0
    %2681 = vmatprep.mubr.f32.mxu0 0.0
    %2682 = vmatmul.mubr.f32.gmra.mrb[0].mxu0 %v2594
    %v2683 = vpop.f32.mrb[0].mxu0
    %v2684 = vadd.f32 %v2591, %v2683
    %v2685 = vpop.f32.mrb[0].mxu0
    %2686 = vmatprep.mubr.f32.mxu0 0.0
    %2687 = vmatmul.mubr.f32.gmra.mrb[0].mxu0 %v2597
    %v2688 = vpop.f32.mrb[0].mxu0
    %v2689 = vadd.f32 %v2591, %v2688
    %v2690 = vpop.f32.mrb[0].mxu0
    %2691 = vmatprep.mubr.f32.mxu0 0.0
    %2692 = vmatmul.mubr.f32.gmra.mrb[0].mxu0 %v2600
    %v2693 = vpop.f32.mrb[0].mxu0
    %v2694 = vadd.f32 %v2591, %v2693
    %v2695 = vpop.f32.mrb[0].mxu0
    %2696 = vmatprep.mubr.f32.mxu0 0.0
    %2697 = vmatmul.mubr.f32.gmra.mrb[0].mxu0 %v2603
    %v2698 = vpop.f32.mrb[0].mxu0
    %v2699 = vadd.f32 %v2591, %v2698
    %v2700 = vpop.f32.mrb[0].mxu0
    %2701 = vmatprep.mubr.f32.mxu0 0.0
    %2702 = vmatmul.mubr.f32.gmra.mrb[0].mxu0 %v2606
    %v2703 = vpop.f32.mrb[0].mxu0
    %v2704 = vadd.f32 %v2591, %v2703
    %v2705 = vpop.f32.mrb[0].mxu0
    %2706 = vmatprep.mubr.f32.mxu0 0.0
    %2707 = vmatmul.mubr.f32.gmra.mrb[0].mxu0 %v2609
    %v2708 = vpop.f32.mrb[0].mxu0
    %v2709 = vadd.f32 %v2591, %v2708
    %v2710 = vpop.f32.mrb[0].mxu0
    %2711 = vmatprep.mubr.f32.mxu0 0.0
    %2712 = vmatmul.mubr.f32.gmra.mrb[0].mxu0 %v2612
    %v2713 = vpop.f32.mrb[0].mxu0
    %v2714 = vadd.f32 %v2591, %v2713
    %v2715 = vpop.f32.mrb[0].mxu0
    %2716 = vmatprep.mubr.f32.mxu0 0.0
    %2717 = vmatmul.mubr.f32.gmra.mrb[0].mxu0 %v2615
    %v2718 = vpop.f32.mrb[0].mxu0
    %v2719 = vadd.f32 %v2591, %v2718
    %v2720 = vpop.f32.mrb[0].mxu0
    %2721 = vdwg.mxu0
    %v2722 = vtanh.pop %v2684
    %v2723 = vtanh.pop %v2689
    %v2724 = vtanh.pop %v2694
    %v2725 = vtanh.pop %v2699
    %v2726 = vtanh.pop %v2704
    %v2727 = vtanh.pop %v2709
    %v2728 = vtanh.pop %v2714
    %v2729 = vtanh.pop %v2719
    %v2730 = vld [vmem:[#allocation9] sm:$0x1]
    %v2732 = vlaneseq
    %v2733 = vshrl.u32 %v2732, 7
    %v2734 = vsub.s32 0, %v2733
    %v2735 = vrot.slane %v2730, %v2734
    %v2737 = vmul.f32 %v2722, %v2735
    %v2738 = vmul.f32 %v2723, %v2735
    %v2739 = vmul.f32 %v2724, %v2735
    %v2740 = vmul.f32 %v2725, %v2735
    %v2741 = vmul.f32 %v2726, %v2735
    %v2742 = vmul.f32 %v2727, %v2735
    %v2743 = vmul.f32 %v2728, %v2735
    %v2744 = vmul.f32 %v2729, %v2735
    %v2745 = vsel %vm234, %v2737, 0.0
    %2746 = vadd.xlane.f32.xlu0 %v2745
    %v2747 = vpop.xlane.xlu0 %2746
    %v2748 = vsel %vm234, %v2738, 0.0
    %2749 = vadd.xlane.f32.xlu0 %v2748
    %v2750 = vpop.xlane.xlu0 %2749
    %v2751 = vsel %vm234, %v2739, 0.0
    %2752 = vadd.xlane.f32.xlu0 %v2751
    %v2753 = vpop.xlane.xlu0 %2752
    %v2754 = vsel %vm234, %v2740, 0.0
    %2755 = vadd.xlane.f32.xlu0 %v2754
    %v2756 = vpop.xlane.xlu0 %2755
    %v2757 = vsel %vm234, %v2741, 0.0
    %2758 = vadd.xlane.f32.xlu0 %v2757
    %v2759 = vpop.xlane.xlu0 %2758
    %v2760 = vsel %vm234, %v2742, 0.0
    %2761 = vadd.xlane.f32.xlu0 %v2760
    %v2762 = vpop.xlane.xlu0 %2761
    %v2763 = vsel %vm234, %v2743, 0.0
    %2764 = vadd.xlane.f32.xlu0 %v2763
    %v2765 = vpop.xlane.xlu0 %2764
    %v2766 = vsel %vm234, %v2744, 0.0
    %2767 = vadd.xlane.f32.xlu0 %v2766
    %v2768 = vpop.xlane.xlu0 %2767
    %v2769 = vld [vmem:[#allocation4] sm:$0x1]
    %v2771 = vlaneseq
    %v2772 = vshrl.u32 %v2771, 7
    %v2773 = vsub.s32 0, %v2772
    %v2774 = vrot.slane %v2769, %v2773
    %v2776 = vadd.f32 %v2747, %v2774
    %v2777 = vadd.f32 %v2750, %v2774
    %v2778 = vadd.f32 %v2753, %v2774
    %v2779 = vadd.f32 %v2756, %v2774
    %v2780 = vadd.f32 %v2759, %v2774
    %v2781 = vadd.f32 %v2762, %v2774
    %v2782 = vadd.f32 %v2765, %v2774
    %v2783 = vadd.f32 %v2768, %v2774
    %vm2784 = vcmask 7168
    %v2785 = vsel %vm2784, %v2776, -inf
    %v2786 = vsel %vm2784, %v2777, -inf
    %v2787 = vsel %vm2784, %v2778, -inf
    %v2788 = vsel %vm2784, %v2779, -inf
    %v2789 = vsel %vm2784, %v2780, -inf
    %v2790 = vmax.f32 %v2785, %v2789
    %v2791 = vsel %vm2784, %v2781, -inf
    %v2792 = vmax.f32 %v2786, %v2791
    %v2793 = vsel %vm2784, %v2782, -inf
    %v2794 = vmax.f32 %v2787, %v2793
    %v2795 = vsel %vm2784, %v2783, -inf
    %v2796 = vmax.f32 %v2788, %v2795
    %v2797 = vmax.f32 %v2790, %v2792
    %v2798 = vmax.f32 %v2794, %v2796
    %v2799 = vmax.f32 %v2797, %v2798
    %v2800 = vsub.f32 %v2776, %v2799
    %v2801 = vsub.f32 %v2777, %v2799
    %v2802 = vsub.f32 %v2778, %v2799
    %v2803 = vsub.f32 %v2779, %v2799
    %v2804 = vsub.f32 %v2780, %v2799
    %v2805 = vsub.f32 %v2781, %v2799
    %v2806 = vsub.f32 %v2782, %v2799
    %v2807 = vsub.f32 %v2783, %v2799
    %v2808 = vmul.f32 %v2800, 1.442695
    %v2809 = vpow.pop %v2808
    %v2810 = vmul.f32 %v2801, 1.442695
    %v2811 = vpow.pop %v2810
    %v2812 = vmul.f32 %v2802, 1.442695
    %v2813 = vpow.pop %v2812
    %v2814 = vmul.f32 %v2803, 1.442695
    %v2815 = vpow.pop %v2814
    %v2816 = vmul.f32 %v2804, 1.442695
    %v2817 = vpow.pop %v2816
    %v2818 = vmul.f32 %v2805, 1.442695
    %v2819 = vpow.pop %v2818
    %v2820 = vmul.f32 %v2806, 1.442695
    %v2821 = vpow.pop %v2820
    %v2822 = vmul.f32 %v2807, 1.442695
    %v2823 = vpow.pop %v2822
    %v2824 = vsel %vm2784, %v2809, 0.0
    %v2825 = vsel %vm2784, %v2811, 0.0
    %v2826 = vadd.f32 %v2824, %v2825
    %v2827 = vsel %vm2784, %v2813, 0.0
    %v2828 = vadd.f32 %v2826, %v2827
    %v2829 = vsel %vm2784, %v2815, 0.0
    %v2830 = vadd.f32 %v2828, %v2829
    %v2831 = vsel %vm2784, %v2817, 0.0
    %v2832 = vadd.f32 %v2830, %v2831
    %v2833 = vsel %vm2784, %v2819, 0.0
    %v2834 = vadd.f32 %v2832, %v2833
    %v2835 = vsel %vm2784, %v2821, 0.0
    %v2836 = vadd.f32 %v2834, %v2835
    %v2837 = vsel %vm2784, %v2823, 0.0
    %v2838 = vadd.f32 %v2836, %v2837
    %v2839 = vrcp.pop %v2838
    %v2840 = vmul.f32 %v2809, %v2839
    %v2841 = vmul.f32 %v2811, %v2839
    %v2842 = vmul.f32 %v2813, %v2839
    %v2843 = vmul.f32 %v2815, %v2839
    %v2844 = vmul.f32 %v2817, %v2839
    %v2845 = vmul.f32 %v2819, %v2839
    %v2846 = vmul.f32 %v2821, %v2839
    %v2847 = vmul.f32 %v2823, %v2839
    %2849 = vset.pattern.permute.xlu0 0
    %2850 = vperm.xlu0 %2849, %v2840
    %v2851 = vpop.permute.xlu0 %2850
    %2854 = vset.pattern.permute.xlu0 0
    %2855 = vperm.xlu0 %2854, %v2841
    %v2856 = vpop.permute.xlu0 %2855
    %2859 = vset.pattern.permute.xlu0 0
    %2860 = vperm.xlu0 %2859, %v2842
    %v2861 = vpop.permute.xlu0 %2860
    %2864 = vset.pattern.permute.xlu0 0
    %2865 = vperm.xlu0 %2864, %v2843
    %v2866 = vpop.permute.xlu0 %2865
    %2869 = vset.pattern.permute.xlu0 0
    %2870 = vperm.xlu0 %2869, %v2844
    %v2871 = vpop.permute.xlu0 %2870
    %2874 = vset.pattern.permute.xlu0 0
    %2875 = vperm.xlu0 %2874, %v2845
    %v2876 = vpop.permute.xlu0 %2875
    %2879 = vset.pattern.permute.xlu0 0
    %2880 = vperm.xlu0 %2879, %v2846
    %v2881 = vpop.permute.xlu0 %2880
    %2884 = vset.pattern.permute.xlu0 0
    %2885 = vperm.xlu0 %2884, %v2847
    %v2886 = vpop.permute.xlu0 %2885
    %v2888 = vmul.f32 %v2851, %v2570
    %v2889 = vmul.f32 %v2856, %v2571
    %v2890 = vmul.f32 %v2861, %v2572
    %v2891 = vmul.f32 %v2866, %v2573
    %v2892 = vmul.f32 %v2871, %v2574
    %v2893 = vmul.f32 %v2876, %v2575
    %v2894 = vmul.f32 %v2881, %v2576
    %v2895 = vmul.f32 %v2886, %v2577
    %v2896 = vsel %vm410, %v2888, 0.0
    %v2897 = vsel %vm410, %v2889, 0.0
    %v2898 = vadd.f32 %v2896, %v2897
    %v2899 = vsel %vm410, %v2890, 0.0
    %v2900 = vadd.f32 %v2898, %v2899
    %v2901 = vsel %vm410, %v2891, 0.0
    %v2902 = vadd.f32 %v2900, %v2901
    %v2903 = vsel %vm410, %v2892, 0.0
    %v2904 = vadd.f32 %v2902, %v2903
    %v2905 = vsel %vm410, %v2893, 0.0
    %v2906 = vadd.f32 %v2904, %v2905
    %v2907 = vsel %vm410, %v2894, 0.0
    %v2908 = vadd.f32 %v2906, %v2907
    %v2909 = vsel %vm410, %v2895, 0.0
    %v2910 = vadd.f32 %v2908, %v2909
    %v2911 = vld [vmem:[#allocation13] sm:$0x1]
    %v2913 = vlaneseq
    %v2914 = vshrl.u32 %v2913, 7
    %v2915 = vsub.s32 0, %v2914
    %v2916 = vrot.slane %v2911, %v2915
    %v2918 = vsub.f32 %v2910, %v2916
    %v2919 = vld [vmem:[#allocation15] sm:$0x1]
    %v2920 = vadd.f32 %v2919, 1e-05
    %v2921 = vrsqrt.pop %v2920
    %v2923 = vlaneseq
    %v2924 = vshrl.u32 %v2923, 7
    %v2925 = vsub.s32 0, %v2924
    %v2926 = vrot.slane %v2921, %v2925
    %v2928 = vmul.f32 %v2918, %v2926
    %v2929 = vld [vmem:[#allocation10] sm:$0x1]
    %v2931 = vlaneseq
    %v2932 = vshrl.u32 %v2931, 7
    %v2933 = vsub.s32 0, %v2932
    %v2934 = vrot.slane %v2929, %v2933
    %v2936 = vmul.f32 %v2928, %v2934
    %v2937 = vld [vmem:[#allocation12] sm:$0x1]
    %v2939 = vlaneseq
    %v2940 = vshrl.u32 %v2939, 7
    %v2941 = vsub.s32 0, %v2940
    %v2942 = vrot.slane %v2937, %v2941
    %v2944 = vadd.f32 %v2936, %v2942
    %v2945 = vld [vmem:[%s16] sm:$0xff]
    %v2946 = vld [vmem:[%s16 + $0x8] sm:$0xff]
    %v2947 = vld [vmem:[%s16 + $0x10] sm:$0xff]
    %v2948 = vld [vmem:[%s16 + $0x18] sm:$0xff]
    %v2949 = vld [vmem:[%s16 + $0x20] sm:$0xff]
    %v2950 = vld [vmem:[%s16 + $0x28] sm:$0xff]
    %v2951 = vld [vmem:[%s16 + $0x30] sm:$0xff]
    %v2952 = vld [vmem:[%s16 + $0x38] sm:$0xff]
    %v2953 = vld [vmem:[%s17] sm:$0x1]
    %v2955 = vlaneseq
    %v2956 = vshrl.u32 %v2955, 7
    %v2957 = vsub.s32 0, %v2956
    %v2958 = vrot.slane %v2953, %v2957
    %v2961 = vsel %vm410, %v2944, 0
    %2963 = vmatprep.subr.mxu0 0.0
    %2964 = vmatpush1.msra.mxu0 %v2945
    %2965 = vmatprep.subr.mxu0 0.0
    %2966 = vmatpush1.msra.mxu0 %v2946
    %2967 = vmatprep.subr.mxu0 0.0
    %2968 = vmatpush1.msra.mxu0 %v2947
    %2969 = vmatprep.subr.mxu0 0.0
    %2970 = vmatpush1.msra.mxu0 %v2948
    %2971 = vmatprep.subr.mxu0 0.0
    %2972 = vmatpush1.msra.mxu0 %v2949
    %2973 = vmatprep.subr.mxu0 0.0
    %2974 = vmatpush1.msra.mxu0 %v2950
    %2975 = vmatprep.subr.mxu0 0.0
    %2976 = vmatpush1.msra.mxu0 %v2951
    %2977 = vmatprep.subr.mxu0 0.0
    %2978 = vmatpush1.msra.mxu0 %v2952
    %2979 = vmatprep.subr.mxu0 0.0
    %2980 = vmatpush1.msra.mxu0 0.0
    %2981 = vmatprep.subr.mxu0 0.0
    %2982 = vmatpush1.msra.mxu0 0.0
    %2983 = vmatprep.subr.mxu0 0.0
    %2984 = vmatpush1.msra.mxu0 0.0
    %2985 = vmatprep.subr.mxu0 0.0
    %2986 = vmatpush1.msra.mxu0 0.0
    %2987 = vmatprep.subr.mxu0 0.0
    %2988 = vmatpush1.msra.mxu0 0.0
    %2989 = vmatprep.subr.mxu0 0.0
    %2990 = vmatpush1.msra.mxu0 0.0
    %2991 = vmatprep.subr.mxu0 0.0
    %2992 = vmatpush1.msra.mxu0 0.0
    %2993 = vmatprep.subr.mxu0 0.0
    %2994 = vmatpush1.msra.mxu0 0.0
    %2995 = vmatprep.subr.mxu0 0.0
    %2996 = vmatpush1.msra.mxu0 0.0
    %2997 = vmatprep.subr.mxu0 0.0
    %2998 = vmatpush1.msra.mxu0 0.0
    %2999 = vmatprep.subr.mxu0 0.0
    %3000 = vmatpush1.msra.mxu0 0.0
    %3001 = vmatprep.subr.mxu0 0.0
    %3002 = vmatpush1.msra.mxu0 0.0
    %3003 = vmatprep.subr.mxu0 0.0
    %3004 = vmatpush1.msra.mxu0 0.0
    %3005 = vmatprep.subr.mxu0 0.0
    %3006 = vmatpush1.msra.mxu0 0.0
    %3007 = vmatprep.subr.mxu0 0.0
    %3008 = vmatpush1.msra.mxu0 0.0
    %3009 = vmatprep.subr.mxu0 0.0
    %3010 = vmatpush1.msra.mxu0 0.0
    %3011 = vmatprep.subr.mxu0 0.0
    %3012 = vmatpush1.msra.mxu0 0.0
    %3013 = vmatprep.subr.mxu0 0.0
    %3014 = vmatpush1.msra.mxu0 0.0
    %3015 = vmatprep.subr.mxu0 0.0
    %3016 = vmatpush1.msra.mxu0 0.0
    %3017 = vmatprep.subr.mxu0 0.0
    %3018 = vmatpush1.msra.mxu0 0.0
    %3019 = vmatprep.subr.mxu0 0.0
    %3020 = vmatpush1.msra.mxu0 0.0
    %3021 = vmatprep.subr.mxu0 0.0
    %3022 = vmatpush1.msra.mxu0 0.0
    %3023 = vmatprep.subr.mxu0 0.0
    %3024 = vmatpush1.msra.mxu0 0.0
    %3025 = vmatprep.subr.mxu0 0.0
    %3026 = vmatpush1.msra.mxu0 0.0
    %3027 = vmatprep.mubr.f32.mxu0 0.0
    %3028 = vmatmul.mubr.f32.gmra.mrb[0].mxu0 %v2961
    %v3029 = vpop.f32.mrb[0].mxu0
    %v3030 = vadd.f32 %v2958, %v3029
    %v3031 = vpop.f32.mrb[0].mxu0
    %3032 = vdwg.mxu0
    %v3033 = vmax.f32 %v3030, 0.0
    %v3034 = vld [vmem:[%s18] sm:$0xff]
    %v3035 = vld [vmem:[%s18 + $0x8] sm:$0xff]
    %v3036 = vld [vmem:[%s18 + $0x10] sm:$0xff]
    %v3037 = vld [vmem:[%s18 + $0x18] sm:$0xff]
    %v3038 = vld [vmem:[%s19] sm:$0x1]
    %v3040 = vlaneseq
    %v3041 = vshrl.u32 %v3040, 7
    %v3042 = vsub.s32 0, %v3041
    %v3043 = vrot.slane %v3038, %v3042
    %v3046 = vsel %vm234, %v3033, 0
    %3048 = vmatprep.subr.mxu0 0.0
    %3049 = vmatpush1.msra.mxu0 %v3034
    %3050 = vmatprep.subr.mxu0 0.0
    %3051 = vmatpush1.msra.mxu0 %v3035
    %3052 = vmatprep.subr.mxu0 0.0
    %3053 = vmatpush1.msra.mxu0 %v3036
    %3054 = vmatprep.subr.mxu0 0.0
    %3055 = vmatpush1.msra.mxu0 %v3037
    %3056 = vmatprep.subr.mxu0 0.0
    %3057 = vmatpush1.msra.mxu0 0.0
    %3058 = vmatprep.subr.mxu0 0.0
    %3059 = vmatpush1.msra.mxu0 0.0
    %3060 = vmatprep.subr.mxu0 0.0
    %3061 = vmatpush1.msra.mxu0 0.0
    %3062 = vmatprep.subr.mxu0 0.0
    %3063 = vmatpush1.msra.mxu0 0.0
    %3064 = vmatprep.subr.mxu0 0.0
    %3065 = vmatpush1.msra.mxu0 0.0
    %3066 = vmatprep.subr.mxu0 0.0
    %3067 = vmatpush1.msra.mxu0 0.0
    %3068 = vmatprep.subr.mxu0 0.0
    %3069 = vmatpush1.msra.mxu0 0.0
    %3070 = vmatprep.subr.mxu0 0.0
    %3071 = vmatpush1.msra.mxu0 0.0
    %3072 = vmatprep.subr.mxu0 0.0
    %3073 = vmatpush1.msra.mxu0 0.0
    %3074 = vmatprep.subr.mxu0 0.0
    %3075 = vmatpush1.msra.mxu0 0.0
    %3076 = vmatprep.subr.mxu0 0.0
    %3077 = vmatpush1.msra.mxu0 0.0
    %3078 = vmatprep.subr.mxu0 0.0
    %3079 = vmatpush1.msra.mxu0 0.0
    %3080 = vmatprep.subr.mxu0 0.0
    %3081 = vmatpush1.msra.mxu0 0.0
    %3082 = vmatprep.subr.mxu0 0.0
    %3083 = vmatpush1.msra.mxu0 0.0
    %3084 = vmatprep.subr.mxu0 0.0
    %3085 = vmatpush1.msra.mxu0 0.0
    %3086 = vmatprep.subr.mxu0 0.0
    %3087 = vmatpush1.msra.mxu0 0.0
    %3088 = vmatprep.subr.mxu0 0.0
    %3089 = vmatpush1.msra.mxu0 0.0
    %3090 = vmatprep.subr.mxu0 0.0
    %3091 = vmatpush1.msra.mxu0 0.0
    %3092 = vmatprep.subr.mxu0 0.0
    %3093 = vmatpush1.msra.mxu0 0.0
    %3094 = vmatprep.subr.mxu0 0.0
    %3095 = vmatpush1.msra.mxu0 0.0
    %3096 = vmatprep.subr.mxu0 0.0
    %3097 = vmatpush1.msra.mxu0 0.0
    %3098 = vmatprep.subr.mxu0 0.0
    %3099 = vmatpush1.msra.mxu0 0.0
    %3100 = vmatprep.subr.mxu0 0.0
    %3101 = vmatpush1.msra.mxu0 0.0
    %3102 = vmatprep.subr.mxu0 0.0
    %3103 = vmatpush1.msra.mxu0 0.0
    %3104 = vmatprep.subr.mxu0 0.0
    %3105 = vmatpush1.msra.mxu0 0.0
    %3106 = vmatprep.subr.mxu0 0.0
    %3107 = vmatpush1.msra.mxu0 0.0
    %3108 = vmatprep.subr.mxu0 0.0
    %3109 = vmatpush1.msra.mxu0 0.0
    %3110 = vmatprep.subr.mxu0 0.0
    %3111 = vmatpush1.msra.mxu0 0.0
    %3112 = vmatprep.mubr.f32.mxu0 0.0
    %3113 = vmatmul.mubr.f32.gmra.mrb[0].mxu0 %v3046
    %v3114 = vpop.f32.mrb[0].mxu0
    %v3115 = vadd.f32 %v3043, %v3114
    %v3116 = vpop.f32.mrb[0].mxu0
    %3117 = vdwg.mxu0
    %vm3118 = vcmask 15360
    %3119 = vst.msk [vmem:[%s20] sm:$0xff] %vm3118, %v3115
    // Predicated region
    $region110: #{tpu_custom_call.1} parent=1 // pred_check
      _
    $region111: #{tpu_custom_call.1} parent=1 // pred_check_branch
      %3121 = sbr.rel (0) target = $region113
    $region112: #{tpu_custom_call.1} parent=1 // pred_region
      _
    $region113: #{tpu_custom_call.1} parent=1 // pred_fallthru
      _
    // Predicated region
    $region114: #{tpu_custom_call.1} parent=1 // pred_check
      _
    $region115: #{tpu_custom_call.1} parent=1 // pred_check_branch
      %3123 = sbr.rel (0) target = $region117
    $region116: #{tpu_custom_call.1} parent=1 // pred_region
      _
    $region117: #{tpu_custom_call.1} parent=1 // pred_fallthru
      _
    %3124 = vsyncpa [#allocation6], 1
    %3125 = vsyncpa [#allocation8], 1
    %3126 = vsyncpa [#allocation11], 1
    %3127 = vsyncpa [#allocation14], 1

</llo_original>
